<compile_context>
chip_gen: v7x
topology: tpu7x:2x2x1
jax: 0.10.0
libtpu: 0.0.40
codegen_flags: <defaults>
</compile_context>

<pallas_src>
from functools import partial

import numpy as np
import jax
import jax.numpy as jnp
from jax.experimental import pallas as pl
from jax.experimental.pallas import tpu as pltpu

EPS = 1e-5

PARTS = [
    np.array([5, 6, 7, 8, 22, 23]) - 1,
    np.array([9, 10, 11, 12, 24, 25]) - 1,
    np.array([13, 14, 15, 16]) - 1,
    np.array([17, 18, 19, 20]) - 1,
    np.array([1, 2, 3, 4, 21]) - 1,
]
PERM = np.concatenate(PARTS)   # permutation of the 25 joints (concat order)


# ----------------------------------------------------------------------------
# Fused kernel: one grid step == B lane-packed samples, everything in VMEM.
# Row layout: c*T + t.  Lane layout: b*V + v (zero-padded to LVp lanes).
# ----------------------------------------------------------------------------
def _fused_kernel(x_ref, xop_ref, ablk_ref, rs_ref, qt_ref, qtp_ref, pblk_ref,
                  shc_ref, shsg_ref, sht_ref, shsgp_ref, shtp_ref, o_ref):
    f32 = jnp.float32
    bf16 = jnp.bfloat16

    x = x_ref[0]                          # (CT, LVp) bf16
    K = ablk_ref.shape[0]
    Ro = shc_ref.shape[0]                 # Cout*Tout
    CT = x.shape[0]                       # Cin*T
    CoT = shsgp_ref.shape[0]              # Cout*T

    # One stacked matmul for everything that multiplies x:
    #   rows [0,Ro)           : cnn 2x1-s2 conv (+BN scale folded)
    #   rows [Ro, Ro+K*CT)    : res-sgcn 1x1 conv, K kernels stacked
    #   rows [Ro+K*CT, end)   : part-sgcn 1x1 conv, K kernels stacked
    ybig = jnp.dot(xop_ref[...], x, preferred_element_type=f32)

    # ---- res branch : cnn (bias+BN shift pre-broadcast, ReLU) ----
    cnn_y = jnp.maximum(ybig[:Ro] + shc_ref[...], 0.0)

    # ---- res branch : sgcn graph mix (per-sample block-diagonal A_k) ----
    acc = None
    for k in range(K):
        yk = ybig[Ro + k * CT: Ro + (k + 1) * CT].astype(bf16)
        term = jnp.dot(yk, ablk_ref[k], preferred_element_type=f32)
        acc = term if acc is None else acc + term
    h = jnp.maximum(acc + shsg_ref[...], 0.0).astype(bf16)

    # ---- res branch : tcn ; outer ReLU dropped (both operands >= 0) ----
    g = jnp.maximum(jnp.dot(qt_ref[...], h, preferred_element_type=f32)
                    + sht_ref[...], 0.0)
    res = cnn_y + g                                       # (Ro, LVp) f32

    # ---- part branch : sgcn_part, rowsum(A_k) lane weighting on the VPU ----
    off = Ro + K * CT
    accp = None
    for k in range(K):
        term = ybig[off + k * CoT: off + (k + 1) * CoT] * rs_ref[k]
        accp = term if accp is None else accp + term
    hp = jnp.maximum(accp + shsgp_ref[...], 0.0).astype(bf16)

    # ---- part branch : tcn, then lane permutation to concat-part order ----
    gp = jnp.maximum(jnp.dot(qtp_ref[...], hp, preferred_element_type=f32)
                     + shtp_ref[...], 0.0)
    gpp = jnp.dot(gp.astype(bf16), pblk_ref[...], preferred_element_type=f32)

    # final ReLU dropped: gpp and res are both non-negative.
    o_ref[0] = (gpp + res).astype(o_ref.dtype)


# ----------------------------------------------------------------------------
# Wrapper: fold conv/BN/bias/padding/stride into constant operators and launch
# exactly one pallas_call over grid=(ceil(N/B),).
# ----------------------------------------------------------------------------
def _fold_bn(p):
    gamma, beta, mean, var = p
    s = gamma / jnp.sqrt(var + EPS)
    return s, beta - mean * s


def _time_select(T, Tout, stride, offset):
    # P[t, t'] = 1 iff t' == stride*t + offset (in range); zero rows == padding.
    t = np.arange(Tout)[:, None]
    tp = np.arange(T)[None, :]
    src = stride * t + offset
    return ((tp == src) & (src >= 0) & (src < T)).astype(np.float32)


@partial(jax.jit, static_argnames=("B", "single_buffer_consts"))
def _forward_impl(x_nchw, A, P, *, B, single_buffer_consts):
    N, Cin, T, V = x_nchw.shape
    assert T % 2 == 0 and V == 25
    K = A.shape[0]
    Cout = P['cnn_w'].shape[0]
    Tout = T // 2
    CT = Cin * T
    CoT = Cout * T
    Ro = Cout * Tout

    # ---- lane-pack B samples per grid step; pad lanes to a multiple of 128 ----
    G = -(-N // B)
    Np = G * B
    LV = B * V
    LVp = max(128, (-(-LV // 128)) * 128)

    xp = x_nchw
    if Np != N:
        xp = jnp.pad(xp, ((0, Np - N), (0, 0), (0, 0), (0, 0)))
    x2d = xp.reshape(G, B, Cin, T, V).transpose(0, 2, 3, 1, 4).reshape(G, CT, LV)
    if LVp != LV:
        x2d = jnp.pad(x2d, ((0, 0), (0, 0), (0, LVp - LV)))
    x2d = x2d.astype(jnp.bfloat16)

    I_T = np.eye(T, dtype=np.float32)
    Pc = [_time_select(T, Tout, 2, dt) for dt in range(2)]        # cnn: k=2, pad 0
    Pt = [_time_select(T, Tout, 2, dt - 1) for dt in range(3)]    # tcn: k=3, pad 1
    eyeB = np.eye(B, dtype=np.float32)

    def tile_lanes(m):    # (R, V) -> (R, LVp)
        m = jnp.tile(m, (1, B))
        if LVp != LV:
            m = jnp.pad(m, ((0, 0), (0, LVp - LV)))
        return m

    def bcast_lanes(col):  # (R,) -> (R, LVp)  (pre-broadcast bias shifts)
        return jnp.broadcast_to(col[:, None], (col.shape[0], LVp))

    # ---- cnn branch operator (conv + BN scale folded; bias + BN shift folded) ----
    s_c, b_c_bn = _fold_bn(P['cnn_bn'])
    Wc = P['cnn_w'][:, :, :, 0]                                   # (Cout, Cin, 2)
    Qc = sum(jnp.kron(Wc[:, :, dt], Pc[dt]) for dt in range(2))   # (Ro, CT)
    Qc_s = jnp.repeat(s_c, Tout)[:, None] * Qc
    sh_c = bcast_lanes(jnp.repeat(P['cnn_b'] * s_c + b_c_bn, Tout))

    # ---- res sgcn operator (K kernels stacked vertically) ----
    s_sg, b_sg_bn = _fold_bn(P['sg_res_bn'])
    Wsg = P['sg_res_w'][:, :, 0, 0].reshape(K, Cin, Cin)
    Msg = jnp.concatenate([jnp.kron(Wsg[k], I_T) for k in range(K)], axis=0)
    Msg_s = jnp.tile(jnp.repeat(s_sg, T), K)[:, None] * Msg        # (K*CT, CT)
    colsumA = jnp.sum(A, axis=1)                                   # (K, V)
    cb = jnp.einsum('kc,kw->cw', P['sg_res_b'].reshape(K, Cin), colsumA)
    sh_sg = tile_lanes(jnp.repeat(cb * s_sg[:, None] + b_sg_bn[:, None], T, axis=0))

    # ---- res tcn operator ----
    s_t, b_t_bn = _fold_bn(P['t_res_bn'])
    Wt = P['t_res_w'][:, :, :, 0]                                  # (Cout, Cin, 3)
    Qt = sum(jnp.kron(Wt[:, :, dt], Pt[dt]) for dt in range(3))    # (Ro, CT)
    Qt_s = (jnp.repeat(s_t, Tout)[:, None] * Qt).astype(jnp.bfloat16)
    sh_t = bcast_lanes(jnp.repeat(P['t_res_b'] * s_t + b_t_bn, Tout))

    # ---- part sgcn operator (original joint order; permutation applied to gp) ----
    s_sgp, b_sgp_bn = _fold_bn(P['sg_part_bn'])
    Wp = P['sg_part_w'][:, :, 0, 0].reshape(K, Cout, Cin)
    Mp = jnp.concatenate([jnp.kron(Wp[k], I_T) for k in range(K)], axis=0)
    Mp_s = jnp.tile(jnp.repeat(s_sgp, T), K)[:, None] * Mp         # (K*CoT, CT)
    rowsumA = jnp.sum(A, axis=2)                                   # (K, V)
    rs = jnp.tile(rowsumA, (1, B))                                 # (K, B*V)
    if LVp != LV:
        rs = jnp.pad(rs, ((0, 0), (0, LVp - LV)))
    rs = rs[:, None, :]                                            # (K, 1, LVp)
    cbp = jnp.einsum('kc,kv->cv', P['sg_part_b'].reshape(K, Cout), rowsumA)
    sh_sgp = tile_lanes(jnp.repeat(cbp * s_sgp[:, None] + b_sgp_bn[:, None], T, axis=0))

    # ---- part tcn operator ----
    s_tp, b_tp_bn = _fold_bn(P['t_part_bn'])
    Wtp = P['t_part_w'][:, :, :, 0]                                # (Cout, Cout, 3)
    Qtp = sum(jnp.kron(Wtp[:, :, dt], Pt[dt]) for dt in range(3))  # (Ro, CoT)
    Qtp_s = (jnp.repeat(s_tp, Tout)[:, None] * Qtp).astype(jnp.bfloat16)
    sh_tp = bcast_lanes(jnp.repeat(P['t_part_b'] * s_tp + b_tp_bn, Tout))

    # ---- stacked left operator for everything that multiplies x ----
    XOP = jnp.concatenate([Qc_s, Msg_s, Mp_s], axis=0).astype(jnp.bfloat16)
    NR = Ro + K * CT + K * CoT

    # ---- lane-space operators: per-sample block-diag A_k and joint permutation ----
    Ablk = jnp.stack([jnp.kron(jnp.asarray(eyeB), A[k]) for k in range(K)])
    Pm = np.zeros((V, V), np.float32)
    Pm[PERM, np.arange(V)] = 1.0           # (gp @ Pm)[:, j] = gp[:, PERM[j]]
    Pblk = jnp.kron(jnp.asarray(eyeB), jnp.asarray(Pm))
    if LVp != LV:
        Ablk = jnp.pad(Ablk, ((0, 0), (0, LVp - LV), (0, LVp - LV)))
        Pblk = jnp.pad(Pblk, ((0, LVp - LV), (0, LVp - LV)))
    Ablk = Ablk.astype(jnp.bfloat16)
    Pblk = Pblk.astype(jnp.bfloat16)

    # ---- BlockSpecs: constants fetched once, optionally single-buffered ----
    pm = pl.Buffered(buffer_count=1) if single_buffer_consts else None

    def cspec(shape):
        imap = (lambda n: (0, 0)) if len(shape) == 2 else (lambda n: (0, 0, 0))
        if pm is None:
            return pl.BlockSpec(shape, imap)
        return pl.BlockSpec(shape, imap, pipeline_mode=pm)

    out_flat = pl.pallas_call(
        _fused_kernel,
        grid=(G,),
        in_specs=[
            pl.BlockSpec((1, CT, LVp), lambda n: (n, 0, 0)),   # x (lane-packed)
            cspec((NR, CT)),                                   # XOP
            cspec((K, LVp, LVp)),                              # Ablk
            cspec((K, 1, LVp)),                                # rs
            cspec((Ro, CT)),                                   # Qt_s
            cspec((Ro, CoT)),                                  # Qtp_s
            cspec((LVp, LVp)),                                 # Pblk
            cspec((Ro, LVp)),                                  # sh_c
            cspec((CT, LVp)),                                  # sh_sg
            cspec((Ro, LVp)),                                  # sh_t
            cspec((CoT, LVp)),                                 # sh_sgp
            cspec((Ro, LVp)),                                  # sh_tp
        ],
        out_specs=pl.BlockSpec((1, Ro, LVp), lambda n: (n, 0, 0)),
        out_shape=jax.ShapeDtypeStruct((G, Ro, LVp), jnp.float32),
        compiler_params=pltpu.CompilerParams(
            dimension_semantics=("parallel",),
            vmem_limit_bytes=64 * 1024 * 1024),
    )(x2d, XOP, Ablk, rs, Qt_s, Qtp_s, Pblk,
      sh_c, sh_sg, sh_t, sh_sgp, sh_tp)

    # unpack lanes -> (N, Cout, Tout, V)
    out = out_flat[:, :, :LV].reshape(G, Cout, Tout, B, V)
    out = out.transpose(0, 3, 1, 2, 4).reshape(Np, Cout, Tout, V)
    return out[:N]


def basic_block_part_forward(x_nchw, A, P, samples_per_step=5):
    # Try single-buffered constant operands first (halves their VMEM); fall
    # back to default double-buffering if this JAX build rejects Buffered(1).
    try:
        out = _forward_impl(x_nchw, A, P, B=samples_per_step,
                            single_buffer_consts=True)
        return jax.block_until_ready(out)
    except Exception:
        out = _forward_impl(x_nchw, A, P, B=samples_per_step,
                            single_buffer_consts=False)
        return jax.block_until_ready(out)


# ----------------------------------------------------------------------------
# Pure-JAX reference (mirrors the PyTorch module in NCHW, inference mode)
# ----------------------------------------------------------------------------
def _ref_bn(x, p):
    g, b, m, v = p
    return (x - m[None, :, None, None]) * (g / jnp.sqrt(v + EPS))[None, :, None, None] \
        + b[None, :, None, None]


def _ref_conv(x, w, b, stride, padding):
    y = jax.lax.conv_general_dilated(
        x, w, window_strides=stride, padding=padding,
        dimension_numbers=('NCHW', 'OIHW', 'NCHW'))
    return y + b[None, :, None, None]


def reference_forward(x, A, P):
    relu = lambda z: jnp.maximum(z, 0.0)
    K = A.shape[0]

    cnn_y = relu(_ref_bn(_ref_conv(x, P['cnn_w'], P['cnn_b'], (2, 1), [(0, 0), (0, 0)]),
                         P['cnn_bn']))
    h = _ref_conv(x, P['sg_res_w'], P['sg_res_b'], (1, 1), [(0, 0), (0, 0)])
    n, kc, t, v = h.shape
    h = h.reshape(n, K, kc // K, t, v)
    h = jnp.einsum('nkctv,kvw->nctw', h, A)
    h = relu(_ref_bn(h, P['sg_res_bn']))
    g = _ref_conv(h, P['t_res_w'], P['t_res_b'], (2, 1), [(1, 1), (0, 0)])
    g = relu(_ref_bn(g, P['t_res_bn']))
    res = relu(cnn_y + g)

    outs = []
    for idx in PARTS:
        xp = x[:, :, :, idx]
        hp = _ref_conv(xp, P['sg_part_w'], P['sg_part_b'], (1, 1), [(0, 0), (0, 0)])
        n, kc, t, vp = hp.shape
        hp = hp.reshape(n, K, kc // K, t, vp)
        hp = jnp.einsum('nkctv,kvw->nctv', hp, A[:, idx, :])
        hp = relu(_ref_bn(hp, P['sg_part_bn']))
        gp = _ref_conv(hp, P['t_part_w'], P['t_part_b'], (2, 1), [(1, 1), (0, 0)])
        gp = relu(_ref_bn(gp, P['t_part_bn']))
        outs.append(gp)
    part = jnp.concatenate(outs, axis=3)
    return relu(part + res)


# ----------------------------------------------------------------------------
# Deterministic parameters (PyTorch-shaped, converted inside the wrapper)
# ----------------------------------------------------------------------------
def init_params(key, Cin, Cout, K, tws):
    keys = iter(jax.random.split(key, 30))
    conv = lambda shape: 0.2 * jax.random.normal(next(keys), shape, jnp.float32)
    bias = lambda c: 0.1 * jax.random.normal(next(keys), (c,), jnp.float32)

    def bn(c):
        gamma = 1.0 + 0.1 * jax.random.normal(next(keys), (c,), jnp.float32)
        beta = 0.1 * jax.random.normal(next(keys), (c,), jnp.float32)
        mean = 0.1 * jax.random.normal(next(keys), (c,), jnp.float32)
        var = 0.5 + jax.random.uniform(next(keys), (c,), jnp.float32)
        return (gamma, beta, mean, var)

    P = {}
    P['cnn_w'] = conv((Cout, Cin, 2, 1)); P['cnn_b'] = bias(Cout); P['cnn_bn'] = bn(Cout)
    P['sg_res_w'] = conv((Cin * K, Cin, 1, 1)); P['sg_res_b'] = bias(Cin * K); P['sg_res_bn'] = bn(Cin)
    P['t_res_w'] = conv((Cout, Cin, tws, 1)); P['t_res_b'] = bias(Cout); P['t_res_bn'] = bn(Cout)
    P['sg_part_w'] = conv((Cout * K, Cin, 1, 1)); P['sg_part_b'] = bias(Cout * K); P['sg_part_bn'] = bn(Cout)
    P['t_part_w'] = conv((Cout, Cout, tws, 1)); P['t_part_b'] = bias(Cout); P['t_part_bn'] = bn(Cout)
    return P


if __name__ == "__main__":
    key = jax.random.PRNGKey(0)
    kx, ka, kp = jax.random.split(key, 3)

    # V must be 25 (body-part index sets); T even; stride=3 -> internal strides 2.
    # N=10 with 5 samples per grid step -> 125 lanes (padded to 128), grid of 2.
    N, Cin, Cout, T, V = 10, 4, 8, 16, 25
    max_graph_distance = 2
    K = max_graph_distance + 1
    temporal_window_size = 3

    x = jax.random.normal(kx, (N, Cin, T, V), jnp.float32)
    A = jax.random.uniform(ka, (K, V, V), jnp.float32, minval=0.0, maxval=0.2)
    P = init_params(kp, Cin, Cout, K, temporal_window_size)

    out = basic_block_part_forward(x, A, P, samples_per_step=5)
    out = jax.block_until_ready(out)

    ref = reference_forward(x, A, P)
    np.testing.assert_allclose(np.asarray(out), np.asarray(ref), rtol=2e-2, atol=5e-2)

    print("KERNEL_OK")
</pallas_src>

<mosaic_0001>
module attributes {stable_mosaic.version = 11 : i64} {
  func.func @_fused_kernel(%arg0: i32, %arg1: memref<1x64x128xbf16, #tpu.memory_space<vmem>>, %arg2: memref<640x64xbf16, #tpu.memory_space<vmem>>, %arg3: memref<3x128x128xbf16, #tpu.memory_space<vmem>>, %arg4: memref<3x1x128xf32, #tpu.memory_space<vmem>>, %arg5: memref<64x64xbf16, #tpu.memory_space<vmem>>, %arg6: memref<64x128xbf16, #tpu.memory_space<vmem>>, %arg7: memref<128x128xbf16, #tpu.memory_space<vmem>>, %arg8: memref<64x128xf32, #tpu.memory_space<vmem>>, %arg9: memref<64x128xf32, #tpu.memory_space<vmem>>, %arg10: memref<64x128xf32, #tpu.memory_space<vmem>>, %arg11: memref<128x128xf32, #tpu.memory_space<vmem>>, %arg12: memref<64x128xf32, #tpu.memory_space<vmem>>, %arg13: memref<1x64x128xf32, #tpu.memory_space<vmem>>) attributes {dimension_semantics = [#tpu.dimension_semantics<parallel>], iteration_bounds = array<i64: 2>, scalar_prefetch = 0 : i64, scratch_operands = 0 : i64, tpu.core_type = #tpu.core_type<tc>, window_params = [{transform_indices = @transform_0, window_bounds = array<i64: 1, 64, 128>}, {pipeline_mode = #tpu.pipeline_mode<synchronous>, transform_indices = @transform_1, window_bounds = array<i64: 640, 64>}, {pipeline_mode = #tpu.pipeline_mode<synchronous>, transform_indices = @transform_2, window_bounds = array<i64: 3, 128, 128>}, {pipeline_mode = #tpu.pipeline_mode<synchronous>, transform_indices = @transform_3, window_bounds = array<i64: 3, 1, 128>}, {pipeline_mode = #tpu.pipeline_mode<synchronous>, transform_indices = @transform_4, window_bounds = array<i64: 64, 64>}, {pipeline_mode = #tpu.pipeline_mode<synchronous>, transform_indices = @transform_5, window_bounds = array<i64: 64, 128>}, {pipeline_mode = #tpu.pipeline_mode<synchronous>, transform_indices = @transform_6, window_bounds = array<i64: 128, 128>}, {pipeline_mode = #tpu.pipeline_mode<synchronous>, transform_indices = @transform_7, window_bounds = array<i64: 64, 128>}, {pipeline_mode = #tpu.pipeline_mode<synchronous>, transform_indices = @transform_8, window_bounds = array<i64: 64, 128>}, {pipeline_mode = #tpu.pipeline_mode<synchronous>, transform_indices = @transform_9, window_bounds = array<i64: 64, 128>}, {pipeline_mode = #tpu.pipeline_mode<synchronous>, transform_indices = @transform_10, window_bounds = array<i64: 128, 128>}, {pipeline_mode = #tpu.pipeline_mode<synchronous>, transform_indices = @transform_11, window_bounds = array<i64: 64, 128>}, {transform_indices = @transform_12, window_bounds = array<i64: 1, 64, 128>}]} {
    %c0 = arith.constant 0 : index
    %c0_0 = arith.constant 0 : index
    %c0_1 = arith.constant 0 : index
    %0 = vector.load %arg1[%c0, %c0_0, %c0_1] : memref<1x64x128xbf16, #tpu.memory_space<vmem>>, vector<1x64x128xbf16>
    %1 = vector.shape_cast %0 : vector<1x64x128xbf16> to vector<64x128xbf16>
    %c0_2 = arith.constant 0 : index
    %c0_3 = arith.constant 0 : index
    %2 = vector.load %arg2[%c0_2, %c0_3] : memref<640x64xbf16, #tpu.memory_space<vmem>>, vector<640x64xbf16>
    %cst = arith.constant dense<0.000000e+00> : vector<640x128xf32>
    %3 = tpu.matmul %2, %1, %cst {dimension_numbers = #tpu.dot_dimension_numbers<[1], [0], [0], [1], [0, 0, 1, 1], [], []>} : vector<640x64xbf16>, vector<64x128xbf16>, vector<640x128xf32> -> vector<640x128xf32>
    %4 = vector.extract_strided_slice %3 {offsets = [0, 0], sizes = [64, 128], strides = [1, 1]} : vector<640x128xf32> to vector<64x128xf32>
    %c0_4 = arith.constant 0 : index
    %c0_5 = arith.constant 0 : index
    %5 = vector.load %arg8[%c0_4, %c0_5] : memref<64x128xf32, #tpu.memory_space<vmem>>, vector<64x128xf32>
    %6 = arith.addf %4, %5 : vector<64x128xf32>
    %cst_6 = arith.constant 0.000000e+00 : f32
    %7 = vector.broadcast %cst_6 : f32 to vector<64x128xf32>
    %8 = arith.maximumf %6, %7 : vector<64x128xf32>
    %9 = vector.extract_strided_slice %3 {offsets = [64, 0], sizes = [64, 128], strides = [1, 1]} : vector<640x128xf32> to vector<64x128xf32>
    %10 = arith.truncf %9 : vector<64x128xf32> to vector<64x128xbf16>
    %c0_7 = arith.constant 0 : index
    %c0_8 = arith.constant 0 : index
    %c0_9 = arith.constant 0 : index
    %11 = vector.load %arg3[%c0_7, %c0_8, %c0_9] : memref<3x128x128xbf16, #tpu.memory_space<vmem>>, vector<1x128x128xbf16>
    %12 = vector.shape_cast %11 : vector<1x128x128xbf16> to vector<128x128xbf16>
    %cst_10 = arith.constant dense<0.000000e+00> : vector<64x128xf32>
    %13 = tpu.matmul %10, %12, %cst_10 {dimension_numbers = #tpu.dot_dimension_numbers<[1], [0], [0], [1], [0, 0, 1, 1], [], []>} : vector<64x128xbf16>, vector<128x128xbf16>, vector<64x128xf32> -> vector<64x128xf32>
    %14 = vector.extract_strided_slice %3 {offsets = [128, 0], sizes = [64, 128], strides = [1, 1]} : vector<640x128xf32> to vector<64x128xf32>
    %15 = arith.truncf %14 : vector<64x128xf32> to vector<64x128xbf16>
    %c1 = arith.constant 1 : index
    %c0_11 = arith.constant 0 : index
    %c0_12 = arith.constant 0 : index
    %16 = vector.load %arg3[%c1, %c0_11, %c0_12] : memref<3x128x128xbf16, #tpu.memory_space<vmem>>, vector<1x128x128xbf16>
    %17 = vector.shape_cast %16 : vector<1x128x128xbf16> to vector<128x128xbf16>
    %cst_13 = arith.constant dense<0.000000e+00> : vector<64x128xf32>
    %18 = tpu.matmul %15, %17, %cst_13 {dimension_numbers = #tpu.dot_dimension_numbers<[1], [0], [0], [1], [0, 0, 1, 1], [], []>} : vector<64x128xbf16>, vector<128x128xbf16>, vector<64x128xf32> -> vector<64x128xf32>
    %19 = arith.addf %13, %18 : vector<64x128xf32>
    %20 = vector.extract_strided_slice %3 {offsets = [192, 0], sizes = [64, 128], strides = [1, 1]} : vector<640x128xf32> to vector<64x128xf32>
    %21 = arith.truncf %20 : vector<64x128xf32> to vector<64x128xbf16>
    %c2 = arith.constant 2 : index
    %c0_14 = arith.constant 0 : index
    %c0_15 = arith.constant 0 : index
    %22 = vector.load %arg3[%c2, %c0_14, %c0_15] : memref<3x128x128xbf16, #tpu.memory_space<vmem>>, vector<1x128x128xbf16>
    %23 = vector.shape_cast %22 : vector<1x128x128xbf16> to vector<128x128xbf16>
    %cst_16 = arith.constant dense<0.000000e+00> : vector<64x128xf32>
    %24 = tpu.matmul %21, %23, %cst_16 {dimension_numbers = #tpu.dot_dimension_numbers<[1], [0], [0], [1], [0, 0, 1, 1], [], []>} : vector<64x128xbf16>, vector<128x128xbf16>, vector<64x128xf32> -> vector<64x128xf32>
    %25 = arith.addf %19, %24 : vector<64x128xf32>
    %c0_17 = arith.constant 0 : index
    %c0_18 = arith.constant 0 : index
    %26 = vector.load %arg9[%c0_17, %c0_18] : memref<64x128xf32, #tpu.memory_space<vmem>>, vector<64x128xf32>
    %27 = arith.addf %25, %26 : vector<64x128xf32>
    %cst_19 = arith.constant 0.000000e+00 : f32
    %28 = vector.broadcast %cst_19 : f32 to vector<64x128xf32>
    %29 = arith.maximumf %27, %28 : vector<64x128xf32>
    %30 = arith.truncf %29 : vector<64x128xf32> to vector<64x128xbf16>
    %c0_20 = arith.constant 0 : index
    %c0_21 = arith.constant 0 : index
    %31 = vector.load %arg5[%c0_20, %c0_21] : memref<64x64xbf16, #tpu.memory_space<vmem>>, vector<64x64xbf16>
    %cst_22 = arith.constant dense<0.000000e+00> : vector<64x128xf32>
    %32 = tpu.matmul %31, %30, %cst_22 {dimension_numbers = #tpu.dot_dimension_numbers<[1], [0], [0], [1], [0, 0, 1, 1], [], []>} : vector<64x64xbf16>, vector<64x128xbf16>, vector<64x128xf32> -> vector<64x128xf32>
    %c0_23 = arith.constant 0 : index
    %c0_24 = arith.constant 0 : index
    %33 = vector.load %arg10[%c0_23, %c0_24] : memref<64x128xf32, #tpu.memory_space<vmem>>, vector<64x128xf32>
    %34 = arith.addf %32, %33 : vector<64x128xf32>
    %cst_25 = arith.constant 0.000000e+00 : f32
    %35 = vector.broadcast %cst_25 : f32 to vector<64x128xf32>
    %36 = arith.maximumf %34, %35 : vector<64x128xf32>
    %37 = arith.addf %8, %36 : vector<64x128xf32>
    %38 = vector.extract_strided_slice %3 {offsets = [256, 0], sizes = [128, 128], strides = [1, 1]} : vector<640x128xf32> to vector<128x128xf32>
    %c0_26 = arith.constant 0 : index
    %c0_27 = arith.constant 0 : index
    %c0_28 = arith.constant 0 : index
    %39 = vector.load %arg4[%c0_26, %c0_27, %c0_28] : memref<3x1x128xf32, #tpu.memory_space<vmem>>, vector<1x1x128xf32>
    %40 = vector.shape_cast %39 : vector<1x1x128xf32> to vector<1x128xf32>
    %41 = vector.broadcast %40 : vector<1x128xf32> to vector<128x128xf32>
    %42 = arith.mulf %38, %41 : vector<128x128xf32>
    %43 = vector.extract_strided_slice %3 {offsets = [384, 0], sizes = [128, 128], strides = [1, 1]} : vector<640x128xf32> to vector<128x128xf32>
    %c1_29 = arith.constant 1 : index
    %c0_30 = arith.constant 0 : index
    %c0_31 = arith.constant 0 : index
    %44 = vector.load %arg4[%c1_29, %c0_30, %c0_31] : memref<3x1x128xf32, #tpu.memory_space<vmem>>, vector<1x1x128xf32>
    %45 = vector.shape_cast %44 : vector<1x1x128xf32> to vector<1x128xf32>
    %46 = vector.broadcast %45 : vector<1x128xf32> to vector<128x128xf32>
    %47 = arith.mulf %43, %46 : vector<128x128xf32>
    %48 = arith.addf %42, %47 : vector<128x128xf32>
    %49 = vector.extract_strided_slice %3 {offsets = [512, 0], sizes = [128, 128], strides = [1, 1]} : vector<640x128xf32> to vector<128x128xf32>
    %c2_32 = arith.constant 2 : index
    %c0_33 = arith.constant 0 : index
    %c0_34 = arith.constant 0 : index
    %50 = vector.load %arg4[%c2_32, %c0_33, %c0_34] : memref<3x1x128xf32, #tpu.memory_space<vmem>>, vector<1x1x128xf32>
    %51 = vector.shape_cast %50 : vector<1x1x128xf32> to vector<1x128xf32>
    %52 = vector.broadcast %51 : vector<1x128xf32> to vector<128x128xf32>
    %53 = arith.mulf %49, %52 : vector<128x128xf32>
    %54 = arith.addf %48, %53 : vector<128x128xf32>
    %c0_35 = arith.constant 0 : index
    %c0_36 = arith.constant 0 : index
    %55 = vector.load %arg11[%c0_35, %c0_36] : memref<128x128xf32, #tpu.memory_space<vmem>>, vector<128x128xf32>
    %56 = arith.addf %54, %55 : vector<128x128xf32>
    %cst_37 = arith.constant 0.000000e+00 : f32
    %57 = vector.broadcast %cst_37 : f32 to vector<128x128xf32>
    %58 = arith.maximumf %56, %57 : vector<128x128xf32>
    %59 = arith.truncf %58 : vector<128x128xf32> to vector<128x128xbf16>
    %c0_38 = arith.constant 0 : index
    %c0_39 = arith.constant 0 : index
    %60 = vector.load %arg6[%c0_38, %c0_39] : memref<64x128xbf16, #tpu.memory_space<vmem>>, vector<64x128xbf16>
    %cst_40 = arith.constant dense<0.000000e+00> : vector<64x128xf32>
    %61 = tpu.matmul %60, %59, %cst_40 {dimension_numbers = #tpu.dot_dimension_numbers<[1], [0], [0], [1], [0, 0, 1, 1], [], []>} : vector<64x128xbf16>, vector<128x128xbf16>, vector<64x128xf32> -> vector<64x128xf32>
    %c0_41 = arith.constant 0 : index
    %c0_42 = arith.constant 0 : index
    %62 = vector.load %arg12[%c0_41, %c0_42] : memref<64x128xf32, #tpu.memory_space<vmem>>, vector<64x128xf32>
    %63 = arith.addf %61, %62 : vector<64x128xf32>
    %cst_43 = arith.constant 0.000000e+00 : f32
    %64 = vector.broadcast %cst_43 : f32 to vector<64x128xf32>
    %65 = arith.maximumf %63, %64 : vector<64x128xf32>
    %66 = arith.truncf %65 : vector<64x128xf32> to vector<64x128xbf16>
    %c0_44 = arith.constant 0 : index
    %c0_45 = arith.constant 0 : index
    %67 = vector.load %arg7[%c0_44, %c0_45] : memref<128x128xbf16, #tpu.memory_space<vmem>>, vector<128x128xbf16>
    %cst_46 = arith.constant dense<0.000000e+00> : vector<64x128xf32>
    %68 = tpu.matmul %66, %67, %cst_46 {dimension_numbers = #tpu.dot_dimension_numbers<[1], [0], [0], [1], [0, 0, 1, 1], [], []>} : vector<64x128xbf16>, vector<128x128xbf16>, vector<64x128xf32> -> vector<64x128xf32>
    %69 = arith.addf %68, %37 : vector<64x128xf32>
    %c0_47 = arith.constant 0 : index
    %c0_48 = arith.constant 0 : index
    %c0_49 = arith.constant 0 : index
    %70 = vector.load %arg13[%c0_47, %c0_48, %c0_49] : memref<1x64x128xf32, #tpu.memory_space<vmem>>, vector<1x64x128xf32>
    %71 = vector.shape_cast %70 : vector<1x64x128xf32> to vector<64x128xf32>
    %72 = vector.shape_cast %69 : vector<64x128xf32> to vector<1x64x128xf32>
    tpu.vector_store %arg13[%c0_47, %c0_48, %c0_49], %72 {strides = array<i32>} : memref<1x64x128xf32, #tpu.memory_space<vmem>>, vector<1x64x128xf32>,
    return
  }
  func.func @transform_0(%arg0: i32) -> (i32, i32, i32) {
    %c0_i32 = arith.constant 0 : i32
    %c0_i32_0 = arith.constant 0 : i32
    %c0_i32_1 = arith.constant 0 : i32
    return %arg0, %c0_i32, %c0_i32_0 : i32, i32, i32
  }
  func.func @transform_1(%arg0: i32) -> (i32, i32) {
    %c0_i32 = arith.constant 0 : i32
    %c0_i32_0 = arith.constant 0 : i32
    %c0_i32_1 = arith.constant 0 : i32
    return %c0_i32, %c0_i32_0 : i32, i32
  }
  func.func @transform_2(%arg0: i32) -> (i32, i32, i32) {
    %c0_i32 = arith.constant 0 : i32
    %c0_i32_0 = arith.constant 0 : i32
    %c0_i32_1 = arith.constant 0 : i32
    %c0_i32_2 = arith.constant 0 : i32
    return %c0_i32, %c0_i32_0, %c0_i32_1 : i32, i32, i32
  }
  func.func @transform_3(%arg0: i32) -> (i32, i32, i32) {
    %c0_i32 = arith.constant 0 : i32
    %c0_i32_0 = arith.constant 0 : i32
    %c0_i32_1 = arith.constant 0 : i32
    %c0_i32_2 = arith.constant 0 : i32
    return %c0_i32, %c0_i32_0, %c0_i32_1 : i32, i32, i32
  }
  func.func @transform_4(%arg0: i32) -> (i32, i32) {
    %c0_i32 = arith.constant 0 : i32
    %c0_i32_0 = arith.constant 0 : i32
    %c0_i32_1 = arith.constant 0 : i32
    return %c0_i32, %c0_i32_0 : i32, i32
  }
  func.func @transform_5(%arg0: i32) -> (i32, i32) {
    %c0_i32 = arith.constant 0 : i32
    %c0_i32_0 = arith.constant 0 : i32
    %c0_i32_1 = arith.constant 0 : i32
    return %c0_i32, %c0_i32_0 : i32, i32
  }
  func.func @transform_6(%arg0: i32) -> (i32, i32) {
    %c0_i32 = arith.constant 0 : i32
    %c0_i32_0 = arith.constant 0 : i32
    %c0_i32_1 = arith.constant 0 : i32
    return %c0_i32, %c0_i32_0 : i32, i32
  }
  func.func @transform_7(%arg0: i32) -> (i32, i32) {
    %c0_i32 = arith.constant 0 : i32
    %c0_i32_0 = arith.constant 0 : i32
    %c0_i32_1 = arith.constant 0 : i32
    return %c0_i32, %c0_i32_0 : i32, i32
  }
  func.func @transform_8(%arg0: i32) -> (i32, i32) {
    %c0_i32 = arith.constant 0 : i32
    %c0_i32_0 = arith.constant 0 : i32
    %c0_i32_1 = arith.constant 0 : i32
    return %c0_i32, %c0_i32_0 : i32, i32
  }
  func.func @transform_9(%arg0: i32) -> (i32, i32) {
    %c0_i32 = arith.constant 0 : i32
    %c0_i32_0 = arith.constant 0 : i32
    %c0_i32_1 = arith.constant 0 : i32
    return %c0_i32, %c0_i32_0 : i32, i32
  }
  func.func @transform_10(%arg0: i32) -> (i32, i32) {
    %c0_i32 = arith.constant 0 : i32
    %c0_i32_0 = arith.constant 0 : i32
    %c0_i32_1 = arith.constant 0 : i32
    return %c0_i32, %c0_i32_0 : i32, i32
  }
  func.func @transform_11(%arg0: i32) -> (i32, i32) {
    %c0_i32 = arith.constant 0 : i32
    %c0_i32_0 = arith.constant 0 : i32
    %c0_i32_1 = arith.constant 0 : i32
    return %c0_i32, %c0_i32_0 : i32, i32
  }
  func.func @transform_12(%arg0: i32) -> (i32, i32, i32) {
    %c0_i32 = arith.constant 0 : i32
    %c0_i32_0 = arith.constant 0 : i32
    %c0_i32_1 = arith.constant 0 : i32
    return %arg0, %c0_i32, %c0_i32_0 : i32, i32, i32
  }
}

module attributes {stable_mosaic.version = 11 : i64} {
  func.func @_fused_kernel(%arg0: i32, %arg1: memref<1x64x128xbf16, #tpu.memory_space<vmem>>, %arg2: memref<640x64xbf16, #tpu.memory_space<vmem>>, %arg3: memref<3x128x128xbf16, #tpu.memory_space<vmem>>, %arg4: memref<3x1x128xf32, #tpu.memory_space<vmem>>, %arg5: memref<64x64xbf16, #tpu.memory_space<vmem>>, %arg6: memref<64x128xbf16, #tpu.memory_space<vmem>>, %arg7: memref<128x128xbf16, #tpu.memory_space<vmem>>, %arg8: memref<64x128xf32, #tpu.memory_space<vmem>>, %arg9: memref<64x128xf32, #tpu.memory_space<vmem>>, %arg10: memref<64x128xf32, #tpu.memory_space<vmem>>, %arg11: memref<128x128xf32, #tpu.memory_space<vmem>>, %arg12: memref<64x128xf32, #tpu.memory_space<vmem>>, %arg13: memref<1x64x128xf32, #tpu.memory_space<vmem>>) attributes {dimension_semantics = [#tpu.dimension_semantics<parallel>], iteration_bounds = array<i64: 2>, scalar_prefetch = 0 : i64, scratch_operands = 0 : i64, tpu.core_type = #tpu.core_type<tc>, window_params = [{transform_indices = @transform_0, window_bounds = array<i64: 1, 64, 128>}, {pipeline_mode = #tpu.pipeline_mode<synchronous>, transform_indices = @transform_1, window_bounds = array<i64: 640, 64>}, {pipeline_mode = #tpu.pipeline_mode<synchronous>, transform_indices = @transform_2, window_bounds = array<i64: 3, 128, 128>}, {pipeline_mode = #tpu.pipeline_mode<synchronous>, transform_indices = @transform_3, window_bounds = array<i64: 3, 1, 128>}, {pipeline_mode = #tpu.pipeline_mode<synchronous>, transform_indices = @transform_4, window_bounds = array<i64: 64, 64>}, {pipeline_mode = #tpu.pipeline_mode<synchronous>, transform_indices = @transform_5, window_bounds = array<i64: 64, 128>}, {pipeline_mode = #tpu.pipeline_mode<synchronous>, transform_indices = @transform_6, window_bounds = array<i64: 128, 128>}, {pipeline_mode = #tpu.pipeline_mode<synchronous>, transform_indices = @transform_7, window_bounds = array<i64: 64, 128>}, {pipeline_mode = #tpu.pipeline_mode<synchronous>, transform_indices = @transform_8, window_bounds = array<i64: 64, 128>}, {pipeline_mode = #tpu.pipeline_mode<synchronous>, transform_indices = @transform_9, window_bounds = array<i64: 64, 128>}, {pipeline_mode = #tpu.pipeline_mode<synchronous>, transform_indices = @transform_10, window_bounds = array<i64: 128, 128>}, {pipeline_mode = #tpu.pipeline_mode<synchronous>, transform_indices = @transform_11, window_bounds = array<i64: 64, 128>}, {transform_indices = @transform_12, window_bounds = array<i64: 1, 64, 128>}]} {
    %c0 = arith.constant 0 : index
    %c0_0 = arith.constant 0 : index
    %c0_1 = arith.constant 0 : index
    %0 = vector.load %arg1[%c0, %c0_0, %c0_1] : memref<1x64x128xbf16, #tpu.memory_space<vmem>>, vector<1x64x128xbf16>
    %1 = vector.shape_cast %0 : vector<1x64x128xbf16> to vector<64x128xbf16>
    %c0_2 = arith.constant 0 : index
    %c0_3 = arith.constant 0 : index
    %2 = vector.load %arg2[%c0_2, %c0_3] : memref<640x64xbf16, #tpu.memory_space<vmem>>, vector<640x64xbf16>
    %cst = arith.constant dense<0.000000e+00> : vector<640x128xf32>
    %3 = tpu.matmul %2, %1, %cst {dimension_numbers = #tpu.dot_dimension_numbers<[1], [0], [0], [1], [0, 0, 1, 1], [], []>} : vector<640x64xbf16>, vector<64x128xbf16>, vector<640x128xf32> -> vector<640x128xf32>
    %4 = vector.extract_strided_slice %3 {offsets = [0, 0], sizes = [64, 128], strides = [1, 1]} : vector<640x128xf32> to vector<64x128xf32>
    %c0_4 = arith.constant 0 : index
    %c0_5 = arith.constant 0 : index
    %5 = vector.load %arg8[%c0_4, %c0_5] : memref<64x128xf32, #tpu.memory_space<vmem>>, vector<64x128xf32>
    %6 = arith.addf %4, %5 : vector<64x128xf32>
    %cst_6 = arith.constant 0.000000e+00 : f32
    %7 = vector.broadcast %cst_6 : f32 to vector<64x128xf32>
    %8 = arith.maximumf %6, %7 : vector<64x128xf32>
    %9 = vector.extract_strided_slice %3 {offsets = [64, 0], sizes = [64, 128], strides = [1, 1]} : vector<640x128xf32> to vector<64x128xf32>
    %10 = arith.truncf %9 : vector<64x128xf32> to vector<64x128xbf16>
    %c0_7 = arith.constant 0 : index
    %c0_8 = arith.constant 0 : index
    %c0_9 = arith.constant 0 : index
    %11 = vector.load %arg3[%c0_7, %c0_8, %c0_9] : memref<3x128x128xbf16, #tpu.memory_space<vmem>>, vector<1x128x128xbf16>
    %12 = vector.shape_cast %11 : vector<1x128x128xbf16> to vector<128x128xbf16>
    %cst_10 = arith.constant dense<0.000000e+00> : vector<64x128xf32>
    %13 = tpu.matmul %10, %12, %cst_10 {dimension_numbers = #tpu.dot_dimension_numbers<[1], [0], [0], [1], [0, 0, 1, 1], [], []>} : vector<64x128xbf16>, vector<128x128xbf16>, vector<64x128xf32> -> vector<64x128xf32>
    %14 = vector.extract_strided_slice %3 {offsets = [128, 0], sizes = [64, 128], strides = [1, 1]} : vector<640x128xf32> to vector<64x128xf32>
    %15 = arith.truncf %14 : vector<64x128xf32> to vector<64x128xbf16>
    %c1 = arith.constant 1 : index
    %c0_11 = arith.constant 0 : index
    %c0_12 = arith.constant 0 : index
    %16 = vector.load %arg3[%c1, %c0_11, %c0_12] : memref<3x128x128xbf16, #tpu.memory_space<vmem>>, vector<1x128x128xbf16>
    %17 = vector.shape_cast %16 : vector<1x128x128xbf16> to vector<128x128xbf16>
    %cst_13 = arith.constant dense<0.000000e+00> : vector<64x128xf32>
    %18 = tpu.matmul %15, %17, %cst_13 {dimension_numbers = #tpu.dot_dimension_numbers<[1], [0], [0], [1], [0, 0, 1, 1], [], []>} : vector<64x128xbf16>, vector<128x128xbf16>, vector<64x128xf32> -> vector<64x128xf32>
    %19 = arith.addf %13, %18 : vector<64x128xf32>
    %20 = vector.extract_strided_slice %3 {offsets = [192, 0], sizes = [64, 128], strides = [1, 1]} : vector<640x128xf32> to vector<64x128xf32>
    %21 = arith.truncf %20 : vector<64x128xf32> to vector<64x128xbf16>
    %c2 = arith.constant 2 : index
    %c0_14 = arith.constant 0 : index
    %c0_15 = arith.constant 0 : index
    %22 = vector.load %arg3[%c2, %c0_14, %c0_15] : memref<3x128x128xbf16, #tpu.memory_space<vmem>>, vector<1x128x128xbf16>
    %23 = vector.shape_cast %22 : vector<1x128x128xbf16> to vector<128x128xbf16>
    %cst_16 = arith.constant dense<0.000000e+00> : vector<64x128xf32>
    %24 = tpu.matmul %21, %23, %cst_16 {dimension_numbers = #tpu.dot_dimension_numbers<[1], [0], [0], [1], [0, 0, 1, 1], [], []>} : vector<64x128xbf16>, vector<128x128xbf16>, vector<64x128xf32> -> vector<64x128xf32>
    %25 = arith.addf %19, %24 : vector<64x128xf32>
    %c0_17 = arith.constant 0 : index
    %c0_18 = arith.constant 0 : index
    %26 = vector.load %arg9[%c0_17, %c0_18] : memref<64x128xf32, #tpu.memory_space<vmem>>, vector<64x128xf32>
    %27 = arith.addf %25, %26 : vector<64x128xf32>
    %cst_19 = arith.constant 0.000000e+00 : f32
    %28 = vector.broadcast %cst_19 : f32 to vector<64x128xf32>
    %29 = arith.maximumf %27, %28 : vector<64x128xf32>
    %30 = arith.truncf %29 : vector<64x128xf32> to vector<64x128xbf16>
    %c0_20 = arith.constant 0 : index
    %c0_21 = arith.constant 0 : index
    %31 = vector.load %arg5[%c0_20, %c0_21] : memref<64x64xbf16, #tpu.memory_space<vmem>>, vector<64x64xbf16>
    %cst_22 = arith.constant dense<0.000000e+00> : vector<64x128xf32>
    %32 = tpu.matmul %31, %30, %cst_22 {dimension_numbers = #tpu.dot_dimension_numbers<[1], [0], [0], [1], [0, 0, 1, 1], [], []>} : vector<64x64xbf16>, vector<64x128xbf16>, vector<64x128xf32> -> vector<64x128xf32>
    %c0_23 = arith.constant 0 : index
    %c0_24 = arith.constant 0 : index
    %33 = vector.load %arg10[%c0_23, %c0_24] : memref<64x128xf32, #tpu.memory_space<vmem>>, vector<64x128xf32>
    %34 = arith.addf %32, %33 : vector<64x128xf32>
    %cst_25 = arith.constant 0.000000e+00 : f32
    %35 = vector.broadcast %cst_25 : f32 to vector<64x128xf32>
    %36 = arith.maximumf %34, %35 : vector<64x128xf32>
    %37 = arith.addf %8, %36 : vector<64x128xf32>
    %38 = vector.extract_strided_slice %3 {offsets = [256, 0], sizes = [128, 128], strides = [1, 1]} : vector<640x128xf32> to vector<128x128xf32>
    %c0_26 = arith.constant 0 : index
    %c0_27 = arith.constant 0 : index
    %c0_28 = arith.constant 0 : index
    %39 = vector.load %arg4[%c0_26, %c0_27, %c0_28] : memref<3x1x128xf32, #tpu.memory_space<vmem>>, vector<1x1x128xf32>
    %40 = vector.shape_cast %39 : vector<1x1x128xf32> to vector<1x128xf32>
    %41 = vector.broadcast %40 : vector<1x128xf32> to vector<128x128xf32>
    %42 = arith.mulf %38, %41 : vector<128x128xf32>
    %43 = vector.extract_strided_slice %3 {offsets = [384, 0], sizes = [128, 128], strides = [1, 1]} : vector<640x128xf32> to vector<128x128xf32>
    %c1_29 = arith.constant 1 : index
    %c0_30 = arith.constant 0 : index
    %c0_31 = arith.constant 0 : index
    %44 = vector.load %arg4[%c1_29, %c0_30, %c0_31] : memref<3x1x128xf32, #tpu.memory_space<vmem>>, vector<1x1x128xf32>
    %45 = vector.shape_cast %44 : vector<1x1x128xf32> to vector<1x128xf32>
    %46 = vector.broadcast %45 : vector<1x128xf32> to vector<128x128xf32>
    %47 = arith.mulf %43, %46 : vector<128x128xf32>
    %48 = arith.addf %42, %47 : vector<128x128xf32>
    %49 = vector.extract_strided_slice %3 {offsets = [512, 0], sizes = [128, 128], strides = [1, 1]} : vector<640x128xf32> to vector<128x128xf32>
    %c2_32 = arith.constant 2 : index
    %c0_33 = arith.constant 0 : index
    %c0_34 = arith.constant 0 : index
    %50 = vector.load %arg4[%c2_32, %c0_33, %c0_34] : memref<3x1x128xf32, #tpu.memory_space<vmem>>, vector<1x1x128xf32>
    %51 = vector.shape_cast %50 : vector<1x1x128xf32> to vector<1x128xf32>
    %52 = vector.broadcast %51 : vector<1x128xf32> to vector<128x128xf32>
    %53 = arith.mulf %49, %52 : vector<128x128xf32>
    %54 = arith.addf %48, %53 : vector<128x128xf32>
    %c0_35 = arith.constant 0 : index
    %c0_36 = arith.constant 0 : index
    %55 = vector.load %arg11[%c0_35, %c0_36] : memref<128x128xf32, #tpu.memory_space<vmem>>, vector<128x128xf32>
    %56 = arith.addf %54, %55 : vector<128x128xf32>
    %cst_37 = arith.constant 0.000000e+00 : f32
    %57 = vector.broadcast %cst_37 : f32 to vector<128x128xf32>
    %58 = arith.maximumf %56, %57 : vector<128x128xf32>
    %59 = arith.truncf %58 : vector<128x128xf32> to vector<128x128xbf16>
    %c0_38 = arith.constant 0 : index
    %c0_39 = arith.constant 0 : index
    %60 = vector.load %arg6[%c0_38, %c0_39] : memref<64x128xbf16, #tpu.memory_space<vmem>>, vector<64x128xbf16>
    %cst_40 = arith.constant dense<0.000000e+00> : vector<64x128xf32>
    %61 = tpu.matmul %60, %59, %cst_40 {dimension_numbers = #tpu.dot_dimension_numbers<[1], [0], [0], [1], [0, 0, 1, 1], [], []>} : vector<64x128xbf16>, vector<128x128xbf16>, vector<64x128xf32> -> vector<64x128xf32>
    %c0_41 = arith.constant 0 : index
    %c0_42 = arith.constant 0 : index
    %62 = vector.load %arg12[%c0_41, %c0_42] : memref<64x128xf32, #tpu.memory_space<vmem>>, vector<64x128xf32>
    %63 = arith.addf %61, %62 : vector<64x128xf32>
    %cst_43 = arith.constant 0.000000e+00 : f32
    %64 = vector.broadcast %cst_43 : f32 to vector<64x128xf32>
    %65 = arith.maximumf %63, %64 : vector<64x128xf32>
    %66 = arith.truncf %65 : vector<64x128xf32> to vector<64x128xbf16>
    %c0_44 = arith.constant 0 : index
    %c0_45 = arith.constant 0 : index
    %67 = vector.load %arg7[%c0_44, %c0_45] : memref<128x128xbf16, #tpu.memory_space<vmem>>, vector<128x128xbf16>
    %cst_46 = arith.constant dense<0.000000e+00> : vector<64x128xf32>
    %68 = tpu.matmul %66, %67, %cst_46 {dimension_numbers = #tpu.dot_dimension_numbers<[1], [0], [0], [1], [0, 0, 1, 1], [], []>} : vector<64x128xbf16>, vector<128x128xbf16>, vector<64x128xf32> -> vector<64x128xf32>
    %69 = arith.addf %68, %37 : vector<64x128xf32>
    %c0_47 = arith.constant 0 : index
    %c0_48 = arith.constant 0 : index
    %c0_49 = arith.constant 0 : index
    %70 = vector.load %arg13[%c0_47, %c0_48, %c0_49] : memref<1x64x128xf32, #tpu.memory_space<vmem>>, vector<1x64x128xf32>
    %71 = vector.shape_cast %70 : vector<1x64x128xf32> to vector<64x128xf32>
    %72 = vector.shape_cast %69 : vector<64x128xf32> to vector<1x64x128xf32>
    tpu.vector_store %arg13[%c0_47, %c0_48, %c0_49], %72 {strides = array<i32>} : memref<1x64x128xf32, #tpu.memory_space<vmem>>, vector<1x64x128xf32>,
    return
  }
  func.func @transform_0(%arg0: i32) -> (i32, i32, i32) {
    %c0_i32 = arith.constant 0 : i32
    %c0_i32_0 = arith.constant 0 : i32
    %c0_i32_1 = arith.constant 0 : i32
    return %arg0, %c0_i32, %c0_i32_0 : i32, i32, i32
  }
  func.func @transform_1(%arg0: i32) -> (i32, i32) {
    %c0_i32 = arith.constant 0 : i32
    %c0_i32_0 = arith.constant 0 : i32
    %c0_i32_1 = arith.constant 0 : i32
    return %c0_i32, %c0_i32_0 : i32, i32
  }
  func.func @transform_2(%arg0: i32) -> (i32, i32, i32) {
    %c0_i32 = arith.constant 0 : i32
    %c0_i32_0 = arith.constant 0 : i32
    %c0_i32_1 = arith.constant 0 : i32
    %c0_i32_2 = arith.constant 0 : i32
    return %c0_i32, %c0_i32_0, %c0_i32_1 : i32, i32, i32
  }
  func.func @transform_3(%arg0: i32) -> (i32, i32, i32) {
    %c0_i32 = arith.constant 0 : i32
    %c0_i32_0 = arith.constant 0 : i32
    %c0_i32_1 = arith.constant 0 : i32
    %c0_i32_2 = arith.constant 0 : i32
    return %c0_i32, %c0_i32_0, %c0_i32_1 : i32, i32, i32
  }
  func.func @transform_4(%arg0: i32) -> (i32, i32) {
    %c0_i32 = arith.constant 0 : i32
    %c0_i32_0 = arith.constant 0 : i32
    %c0_i32_1 = arith.constant 0 : i32
    return %c0_i32, %c0_i32_0 : i32, i32
  }
  func.func @transform_5(%arg0: i32) -> (i32, i32) {
    %c0_i32 = arith.constant 0 : i32
    %c0_i32_0 = arith.constant 0 : i32
    %c0_i32_1 = arith.constant 0 : i32
    return %c0_i32, %c0_i32_0 : i32, i32
  }
  func.func @transform_6(%arg0: i32) -> (i32, i32) {
    %c0_i32 = arith.constant 0 : i32
    %c0_i32_0 = arith.constant 0 : i32
    %c0_i32_1 = arith.constant 0 : i32
    return %c0_i32, %c0_i32_0 : i32, i32
  }
  func.func @transform_7(%arg0: i32) -> (i32, i32) {
    %c0_i32 = arith.constant 0 : i32
    %c0_i32_0 = arith.constant 0 : i32
    %c0_i32_1 = arith.constant 0 : i32
    return %c0_i32, %c0_i32_0 : i32, i32
  }
  func.func @transform_8(%arg0: i32) -> (i32, i32) {
    %c0_i32 = arith.constant 0 : i32
    %c0_i32_0 = arith.constant 0 : i32
    %c0_i32_1 = arith.constant 0 : i32
    return %c0_i32, %c0_i32_0 : i32, i32
  }
  func.func @transform_9(%arg0: i32) -> (i32, i32) {
    %c0_i32 = arith.constant 0 : i32
    %c0_i32_0 = arith.constant 0 : i32
    %c0_i32_1 = arith.constant 0 : i32
    return %c0_i32, %c0_i32_0 : i32, i32
  }
  func.func @transform_10(%arg0: i32) -> (i32, i32) {
    %c0_i32 = arith.constant 0 : i32
    %c0_i32_0 = arith.constant 0 : i32
    %c0_i32_1 = arith.constant 0 : i32
    return %c0_i32, %c0_i32_0 : i32, i32
  }
  func.func @transform_11(%arg0: i32) -> (i32, i32) {
    %c0_i32 = arith.constant 0 : i32
    %c0_i32_0 = arith.constant 0 : i32
    %c0_i32_1 = arith.constant 0 : i32
    return %c0_i32, %c0_i32_0 : i32, i32
  }
  func.func @transform_12(%arg0: i32) -> (i32, i32, i32) {
    %c0_i32 = arith.constant 0 : i32
    %c0_i32_0 = arith.constant 0 : i32
    %c0_i32_1 = arith.constant 0 : i32
    return %arg0, %c0_i32, %c0_i32_0 : i32, i32, i32
  }
}

</mosaic_0001>

<llo_original>
// kernel: squeeze.33
$region0: #{squeeze.33}
  %s0 = inlined_call_operand.vmem [shape: f32[24,4], index: 0, kind: input, shape index: {}]
  %s1 = inlined_call_operand.vmem [shape: f32[3,8,4], index: 1, kind: output, shape index: {}]
  $region1: #{squeeze.33} parent=0
    #allocation0 [shape = 'u8[16384]{0}', space=vmem, size = 0x4000, scoped, tag = 'scoped mem for output reshape']
    #allocation1 [shape = 'u8[4096]{0}', space=vmem, size = 0x1000, scoped, tag = 'scoped mem for input reshape']
    %s3 = sshllo.u32 0, 4
    %v4 = vld [vmem:[%s0] sm:%s3]
    %5 = vst [vmem:[#allocation1] sm:%s3] %v4
    %v6 = vld [vmem:[#allocation1] sm:$0xf]
    %vm7 = vcmask 64512
    %8 = vst.msk [vmem:[#allocation0] ss:$8 sm:$0xf] %vm7, %v6
    %v9 = vld [vmem:[#allocation1] sm:$0xf]
    %10 = vrot.lane.b32.xlu0 %v9, 120
    %v11 = vpop.permute.xlu0 %10
    %vm12 = vcmask 64512
    %s13 = scalar_lea.vmem [#allocation0], 1
    %14 = vst.msk [vmem:[%s13] ss:$8 sm:$0xf] %vm12, %v11
    %v15 = vld [vmem:[#allocation1] sm:$0xf]
    %16 = vrot.lane.b32.xlu0 %v15, 112
    %v17 = vpop.permute.xlu0 %16
    %vm18 = vcmask 64512
    %s19 = scalar_lea.vmem [#allocation0], 2
    %20 = vst.msk [vmem:[%s19] ss:$8 sm:$0xf] %vm18, %v17
    %s22 = sshllo.u32 0, 4
    %v24 = vld [vmem:[#allocation0] sm:%s22]
    %s25 = sshllo.u32 0, 4
    %26 = vst [vmem:[%s1] sm:%s25] %v24
    %s27 = scalar_lea.vmem [#allocation0], 8
    %v28 = vld [vmem:[%s27] sm:%s22]
    %s29 = sshllo.u32 0, 4
    %s30 = scalar_lea.vmem %s1, 4
    %31 = vst [vmem:[%s30] sm:%s29] %v28
    %s32 = scalar_lea.vmem [#allocation0], 16
    %v33 = vld [vmem:[%s32] sm:%s22]
    %s34 = sshllo.u32 0, 4
    %s35 = smul.addr 4, 2
    %s36 = scalar_lea.vmem %s1, %s35
    %37 = vst [vmem:[%s36] sm:%s34] %v33
    %s38 = scalar_lea.vmem [#allocation0], 24
    %v39 = vld [vmem:[%s38] sm:%s22]
    %s40 = sshllo.u32 0, 4
    %s41 = smul.addr 4, 3
    %s42 = scalar_lea.vmem %s1, %s41
    %43 = vst [vmem:[%s42] sm:%s40] %v39

// kernel: tile.30
$region0: #{tile.30}
  %s0 = inlined_call_operand.vmem [shape: f32[8,16], index: 0, kind: input, shape index: {}]
  %s1 = inlined_call_operand.vmem [shape: f32[128], index: 1, kind: output, shape index: {}]
  $region1: #{tile.30} parent=0
    #allocation0 [shape = 'u8[4096]{0}', space=vmem, size = 0x1000, scoped, tag = 'scoped mem for output reshape']
    %v2 = vld [vmem:[%s0] sm:$0x1]
    %vm3 = vcmask 130048
    %4 = vst.msk [vmem:[#allocation0] sm:$0x1] %vm3, %v2
    %s5 = scalar_lea.vmem %s0, 7
    %v6 = vld [vmem:[%s5] sm:$0x1]
    %7 = vrot.lane.b32.xlu0 %v6, 112
    %v8 = vpop.permute.xlu0 %7
    %vm9 = vcmask 1048448
    %10 = vst.msk [vmem:[#allocation0] sm:$0x1] %vm9, %v8
    %s11 = scalar_lea.vmem %s0, 6
    %v12 = vld [vmem:[%s11] sm:$0x1]
    %13 = vrot.lane.b32.xlu0 %v12, 96
    %v14 = vpop.permute.xlu0 %13
    %vm15 = vcmask 917248
    %16 = vst.msk [vmem:[#allocation0] sm:$0x1] %vm15, %v14
    %s17 = scalar_lea.vmem %s0, 5
    %v18 = vld [vmem:[%s17] sm:$0x1]
    %19 = vrot.lane.b32.xlu0 %v18, 80
    %v20 = vpop.permute.xlu0 %19
    %vm21 = vcmask 786048
    %22 = vst.msk [vmem:[#allocation0] sm:$0x1] %vm21, %v20
    %s23 = scalar_lea.vmem %s0, 4
    %v24 = vld [vmem:[%s23] sm:$0x1]
    %25 = vrot.lane.b32.xlu0 %v24, 64
    %v26 = vpop.permute.xlu0 %25
    %vm27 = vcmask 654848
    %28 = vst.msk [vmem:[#allocation0] sm:$0x1] %vm27, %v26
    %s29 = scalar_lea.vmem %s0, 3
    %v30 = vld [vmem:[%s29] sm:$0x1]
    %31 = vrot.lane.b32.xlu0 %v30, 48
    %v32 = vpop.permute.xlu0 %31
    %vm33 = vcmask 523648
    %34 = vst.msk [vmem:[#allocation0] sm:$0x1] %vm33, %v32
    %s35 = scalar_lea.vmem %s0, 2
    %v36 = vld [vmem:[%s35] sm:$0x1]
    %37 = vrot.lane.b32.xlu0 %v36, 32
    %v38 = vpop.permute.xlu0 %37
    %vm39 = vcmask 392448
    %40 = vst.msk [vmem:[#allocation0] sm:$0x1] %vm39, %v38
    %s41 = scalar_lea.vmem %s0, 1
    %v42 = vld [vmem:[%s41] sm:$0x1]
    %43 = vrot.lane.b32.xlu0 %v42, 16
    %v44 = vpop.permute.xlu0 %43
    %vm45 = vcmask 261248
    %46 = vst.msk [vmem:[#allocation0] sm:$0x1] %vm45, %v44
    %s48 = sshllo.u32 0, 1
    %v50 = vld [vmem:[#allocation0] sm:%s48]
    %s51 = sshllo.u32 0, 1
    %52 = vst [vmem:[%s1] sm:%s51] %v50

// kernel: squeeze.25
$region0: #{squeeze.25}
  %s0 = inlined_call_operand.vmem [shape: f32[12,4], index: 0, kind: input, shape index: {}]
  %s1 = inlined_call_operand.vmem [shape: f32[3,4,4], index: 1, kind: output, shape index: {}]
  $region1: #{squeeze.25} parent=0
    #allocation0 [shape = 'u8[16384]{0}', space=vmem, size = 0x4000, scoped, tag = 'scoped mem for output reshape']
    #allocation1 [shape = 'u8[4096]{0}', space=vmem, size = 0x1000, scoped, tag = 'scoped mem for input reshape']
    %s3 = sshllo.u32 0, 4
    %v4 = vld [vmem:[%s0] sm:%s3]
    %5 = vst [vmem:[#allocation1] sm:%s3] %v4
    %v6 = vld [vmem:[#allocation1] sm:$0xf]
    %vm7 = vcmask 31744
    %8 = vst.msk [vmem:[#allocation0] ss:$8 sm:$0xf] %vm7, %v6
    %v9 = vld [vmem:[#allocation1] sm:$0xf]
    %10 = vrot.lane.b32.xlu0 %v9, 124
    %v11 = vpop.permute.xlu0 %10
    %vm12 = vcmask 31744
    %s13 = scalar_lea.vmem [#allocation0], 1
    %14 = vst.msk [vmem:[%s13] ss:$8 sm:$0xf] %vm12, %v11
    %v15 = vld [vmem:[#allocation1] sm:$0xf]
    %16 = vrot.lane.b32.xlu0 %v15, 120
    %v17 = vpop.permute.xlu0 %16
    %vm18 = vcmask 31744
    %s19 = scalar_lea.vmem [#allocation0], 2
    %20 = vst.msk [vmem:[%s19] ss:$8 sm:$0xf] %vm18, %v17
    %s22 = sshllo.u32 0, 4
    %v24 = vld [vmem:[#allocation0] sm:%s22]
    %s25 = sshllo.u32 0, 4
    %26 = vst [vmem:[%s1] sm:%s25] %v24
    %s27 = scalar_lea.vmem [#allocation0], 8
    %v28 = vld [vmem:[%s27] sm:%s22]
    %s29 = sshllo.u32 0, 4
    %s30 = scalar_lea.vmem %s1, 4
    %31 = vst [vmem:[%s30] sm:%s29] %v28
    %s32 = scalar_lea.vmem [#allocation0], 16
    %v33 = vld [vmem:[%s32] sm:%s22]
    %s34 = sshllo.u32 0, 4
    %s35 = smul.addr 4, 2
    %s36 = scalar_lea.vmem %s1, %s35
    %37 = vst [vmem:[%s36] sm:%s34] %v33
    %s38 = scalar_lea.vmem [#allocation0], 24
    %v39 = vld [vmem:[%s38] sm:%s22]
    %s40 = sshllo.u32 0, 4
    %s41 = smul.addr 4, 3
    %s42 = scalar_lea.vmem %s1, %s41
    %43 = vst [vmem:[%s42] sm:%s40] %v39

// kernel: tile.22
$region0: #{tile.22}
  %s0 = inlined_call_operand.vmem [shape: f32[4,16], index: 0, kind: input, shape index: {}]
  %s1 = inlined_call_operand.vmem [shape: f32[64], index: 1, kind: output, shape index: {}]
  $region1: #{tile.22} parent=0
    #allocation0 [shape = 'u8[4096]{0}', space=vmem, size = 0x1000, scoped, tag = 'scoped mem for output reshape']
    #allocation1 [shape = 'u8[4096]{0}', space=vmem, size = 0x1000, scoped, tag = 'scoped mem for input reshape']
    %s3 = sshllo.u32 0, 4
    %v4 = vld [vmem:[%s0] sm:%s3]
    %5 = vst [vmem:[#allocation1] sm:%s3] %v4
    %v6 = vld [vmem:[#allocation1] sm:$0x1]
    %vm7 = vcmask 130048
    %8 = vst.msk [vmem:[#allocation0] sm:$0x1] %vm7, %v6
    %s9 = scalar_lea.vmem [#allocation1], 3
    %v10 = vld [vmem:[%s9] sm:$0x1]
    %11 = vrot.lane.b32.xlu0 %v10, 48
    %v12 = vpop.permute.xlu0 %11
    %vm13 = vcmask 523648
    %14 = vst.msk [vmem:[#allocation0] sm:$0x1] %vm13, %v12
    %s15 = scalar_lea.vmem [#allocation1], 2
    %v16 = vld [vmem:[%s15] sm:$0x1]
    %17 = vrot.lane.b32.xlu0 %v16, 32
    %v18 = vpop.permute.xlu0 %17
    %vm19 = vcmask 392448
    %20 = vst.msk [vmem:[#allocation0] sm:$0x1] %vm19, %v18
    %s21 = scalar_lea.vmem [#allocation1], 1
    %v22 = vld [vmem:[%s21] sm:$0x1]
    %23 = vrot.lane.b32.xlu0 %v22, 16
    %v24 = vpop.permute.xlu0 %23
    %vm25 = vcmask 261248
    %26 = vst.msk [vmem:[#allocation0] sm:$0x1] %vm25, %v24
    %s28 = sshllo.u32 0, 1
    %v30 = vld [vmem:[#allocation0] sm:%s28]
    %s31 = sshllo.u32 0, 1
    %32 = vst [vmem:[%s1] sm:%s31] %v30

// kernel: tile.23
$region0: #{tile.23}
  #allocation0 [shape = 's32[1]{0}', space=sflag, size = 0x4, scoped, tag = 'scoped memory for tile.23']
  %s0 = inlined_call_operand.vmem [shape: f32[64], index: 0, kind: input, shape index: {}]
  %s1 = inlined_call_operand.vmem [shape: f32[3,64], index: 1, kind: output, shape index: {}]
  // Predicated region
  $region2: #{tile.23} parent=0 // pred_check
    _
  $region3: #{tile.23} parent=0 // pred_check_branch
    %3 = sbr.rel (0) target = $region5
  $region4: #{tile.23} parent=0 // pred_region
    _
  $region5: #{tile.23} parent=0 // pred_fallthru
    _
  %v4 = vld [vmem:[%s0] ss:$0 sm:$0xff]
  %5 = vst [vmem:[%s1] sm:$0xf] %v4

// kernel: mul.114
$region0: #{mul.114}
  %s0 = inlined_call_operand.vmem [shape: f32[3,64], index: 0, kind: input, shape index: {}]
  %s1 = inlined_call_operand.vmem [shape: f32[192], index: 1, kind: output, shape index: {}]
  $region1: #{mul.114} parent=0
    #allocation0 [shape = 'u8[4096]{0}', space=vmem, size = 0x1000, scoped, tag = 'scoped mem for output reshape']
    #allocation1 [shape = 'u8[4096]{0}', space=vmem, size = 0x1000, scoped, tag = 'scoped mem for input reshape']
    %s3 = sshllo.u32 0, 4
    %v4 = vld [vmem:[%s0] sm:%s3]
    %5 = vst [vmem:[#allocation1] sm:%s3] %v4
    %s6 = smov 3
    %v7 = vld [vmem:[#allocation1] ss:$2 sm:%s6]
    %vm8 = vcmask 523264
    %9 = vst.msk [vmem:[#allocation0] sm:$0x3] %vm8, %v7
    %s10 = scalar_lea.vmem [#allocation1], 1
    %v11 = vld [vmem:[%s10] sm:$0x1]
    %12 = vrot.lane.b32.xlu0 %v11, 64
    %v13 = vpop.permute.xlu0 %12
    %vm14 = vcmask 1048064
    %15 = vst.msk [vmem:[#allocation0] sm:$0x1] %vm14, %v13
    %s17 = sshllo.u32 0, 2
    %v19 = vld [vmem:[#allocation0] sm:%s17]
    %s20 = sshllo.u32 0, 2
    %21 = vst [vmem:[%s1] sm:%s20] %v19

// kernel: mul.108
$region0: #{mul.108}
  %s0 = inlined_call_operand.vmem [shape: f32[8,8], index: 0, kind: input, shape index: {}]
  %s1 = inlined_call_operand.vmem [shape: f32[64], index: 1, kind: output, shape index: {}]
  $region1: #{mul.108} parent=0
    #allocation0 [shape = 'u8[4096]{0}', space=vmem, size = 0x1000, scoped, tag = 'scoped mem for output reshape']
    %v2 = vld [vmem:[%s0] sm:$0x1]
    %vm3 = vcmask 64512
    %4 = vst.msk [vmem:[#allocation0] sm:$0x1] %vm3, %v2
    %s5 = scalar_lea.vmem %s0, 7
    %v6 = vld [vmem:[%s5] sm:$0x1]
    %7 = vrot.lane.b32.xlu0 %v6, 56
    %v8 = vpop.permute.xlu0 %7
    %vm9 = vcmask 523712
    %10 = vst.msk [vmem:[#allocation0] sm:$0x1] %vm9, %v8
    %s11 = scalar_lea.vmem %s0, 6
    %v12 = vld [vmem:[%s11] sm:$0x1]
    %13 = vrot.lane.b32.xlu0 %v12, 48
    %v14 = vpop.permute.xlu0 %13
    %vm15 = vcmask 458112
    %16 = vst.msk [vmem:[#allocation0] sm:$0x1] %vm15, %v14
    %s17 = scalar_lea.vmem %s0, 5
    %v18 = vld [vmem:[%s17] sm:$0x1]
    %19 = vrot.lane.b32.xlu0 %v18, 40
    %v20 = vpop.permute.xlu0 %19
    %vm21 = vcmask 392512
    %22 = vst.msk [vmem:[#allocation0] sm:$0x1] %vm21, %v20
    %s23 = scalar_lea.vmem %s0, 4
    %v24 = vld [vmem:[%s23] sm:$0x1]
    %25 = vrot.lane.b32.xlu0 %v24, 32
    %v26 = vpop.permute.xlu0 %25
    %vm27 = vcmask 326912
    %28 = vst.msk [vmem:[#allocation0] sm:$0x1] %vm27, %v26
    %s29 = scalar_lea.vmem %s0, 3
    %v30 = vld [vmem:[%s29] sm:$0x1]
    %31 = vrot.lane.b32.xlu0 %v30, 24
    %v32 = vpop.permute.xlu0 %31
    %vm33 = vcmask 261312
    %34 = vst.msk [vmem:[#allocation0] sm:$0x1] %vm33, %v32
    %s35 = scalar_lea.vmem %s0, 2
    %v36 = vld [vmem:[%s35] sm:$0x1]
    %37 = vrot.lane.b32.xlu0 %v36, 16
    %v38 = vpop.permute.xlu0 %37
    %vm39 = vcmask 195712
    %40 = vst.msk [vmem:[#allocation0] sm:$0x1] %vm39, %v38
    %s41 = scalar_lea.vmem %s0, 1
    %v42 = vld [vmem:[%s41] sm:$0x1]
    %43 = vrot.lane.b32.xlu0 %v42, 8
    %v44 = vpop.permute.xlu0 %43
    %vm45 = vcmask 130112
    %46 = vst.msk [vmem:[#allocation0] sm:$0x1] %vm45, %v44
    %s48 = sshllo.u32 0, 1
    %v50 = vld [vmem:[#allocation0] sm:%s48]
    %s51 = sshllo.u32 0, 1
    %52 = vst [vmem:[%s1] sm:%s51] %v50

// kernel: tile.41
$region0: #{tile.41}
  %s0 = inlined_call_operand.vmem [shape: f32[128,5,25], index: 0, kind: input, shape index: {}]
  %s1 = inlined_call_operand.vmem [shape: f32[128,125], index: 1, kind: output, shape index: {}]
  %v2 = vld [vmem:[%s0] sm:$0xff]
  %3 = vst [vmem:[%s1] sm:$0xff] %v2
  %s4 = scalar_lea.vmem %s0, 8
  %v5 = vld [vmem:[%s4] sm:$0xff]
  %s6 = scalar_lea.vmem %s1, 8
  %7 = vst [vmem:[%s6] sm:$0xff] %v5
  %s8 = scalar_lea.vmem %s0, 16
  %v9 = vld [vmem:[%s8] sm:$0xff]
  %s10 = scalar_lea.vmem %s1, 16
  %11 = vst [vmem:[%s10] sm:$0xff] %v9
  %s12 = scalar_lea.vmem %s0, 24
  %s13 = smov 3
  %v14 = vld [vmem:[%s12] ss:$8 sm:%s13]
  %s15 = scalar_lea.vmem %s1, 24
  %16 = vst [vmem:[%s15] sm:$0x3] %v14
  %s17 = scalar_lea.vmem %s0, 33
  %v18 = vld [vmem:[%s17] sm:$0xff]
  %s19 = scalar_lea.vmem %s1, 26
  %20 = vst [vmem:[%s19] sm:$0xff] %v18
  %s21 = scalar_lea.vmem %s0, 41
  %v22 = vld [vmem:[%s21] sm:$0xff]
  %s23 = scalar_lea.vmem %s1, 34
  %24 = vst [vmem:[%s23] sm:$0xff] %v22
  %s25 = scalar_lea.vmem %s0, 49
  %v26 = vld [vmem:[%s25] sm:$0xff]
  %s27 = scalar_lea.vmem %s1, 42
  %28 = vst [vmem:[%s27] sm:$0xff] %v26
  %s29 = scalar_lea.vmem %s0, 64
  %v30 = vld [vmem:[%s29] sm:$0xff]
  %s31 = scalar_lea.vmem %s1, 50
  %32 = vst [vmem:[%s31] sm:$0xff] %v30
  %s33 = scalar_lea.vmem %s0, 72
  %v34 = vld [vmem:[%s33] sm:$0xff]
  %s35 = scalar_lea.vmem %s1, 58
  %36 = vst [vmem:[%s35] sm:$0xff] %v34
  %s37 = scalar_lea.vmem %s0, 80
  %v38 = vld [vmem:[%s37] sm:$0xff]
  %s39 = scalar_lea.vmem %s1, 66
  %40 = vst [vmem:[%s39] sm:$0xff] %v38
  %s41 = scalar_lea.vmem %s0, 88
  %s42 = smov 3
  %v43 = vld [vmem:[%s41] ss:$8 sm:%s42]
  %s44 = scalar_lea.vmem %s1, 74
  %45 = vst [vmem:[%s44] sm:$0x3] %v43
  %s46 = scalar_lea.vmem %s0, 97
  %v47 = vld [vmem:[%s46] sm:$0xff]
  %s48 = scalar_lea.vmem %s1, 76
  %49 = vst [vmem:[%s48] sm:$0xff] %v47
  %s50 = scalar_lea.vmem %s0, 105
  %v51 = vld [vmem:[%s50] sm:$0xff]
  %s52 = scalar_lea.vmem %s1, 84
  %53 = vst [vmem:[%s52] sm:$0xff] %v51
  %s54 = scalar_lea.vmem %s0, 113
  %v55 = vld [vmem:[%s54] sm:$0xff]
  %s56 = scalar_lea.vmem %s1, 92
  %57 = vst [vmem:[%s56] sm:$0xff] %v55
  %s58 = scalar_lea.vmem %s0, 128
  %v59 = vld [vmem:[%s58] sm:$0xff]
  %s60 = scalar_lea.vmem %s1, 100
  %61 = vst [vmem:[%s60] sm:$0xff] %v59
  %s62 = scalar_lea.vmem %s0, 136
  %v63 = vld [vmem:[%s62] sm:$0xff]
  %s64 = scalar_lea.vmem %s1, 108
  %65 = vst [vmem:[%s64] sm:$0xff] %v63
  %s66 = scalar_lea.vmem %s0, 144
  %v67 = vld [vmem:[%s66] sm:$0xff]
  %s68 = scalar_lea.vmem %s1, 116
  %69 = vst [vmem:[%s68] sm:$0xff] %v67
  %s70 = scalar_lea.vmem %s0, 152
  %v71 = vld [vmem:[%s70] sm:$0x1]
  %s72 = scalar_lea.vmem %s1, 124
  %73 = vst [vmem:[%s72] sm:$0x1] %v71

// kernel: tile.28
$region0: #{tile.28}
  %s0 = inlined_call_operand.vmem [shape: f32[64,5,25], index: 0, kind: input, shape index: {}]
  %s1 = inlined_call_operand.vmem [shape: f32[64,125], index: 1, kind: output, shape index: {}]
  %v2 = vld [vmem:[%s0] sm:$0xff]
  %vm3 = vcmask 523264
  %4 = vst.msk [vmem:[%s1] sm:$0xff] %vm3, %v2
  %s5 = scalar_lea.vmem %s0, 8
  %v6 = vld [vmem:[%s5] sm:$0xff]
  %vm7 = vcmask 523264
  %s8 = scalar_lea.vmem %s1, 8
  %9 = vst.msk [vmem:[%s8] sm:$0xff] %vm7, %v6
  %s10 = scalar_lea.vmem %s0, 16
  %v11 = vld [vmem:[%s10] sm:$0xff]
  %vm12 = vcmask 523264
  %s13 = scalar_lea.vmem %s1, 16
  %14 = vst.msk [vmem:[%s13] sm:$0xff] %vm12, %v11
  %s15 = scalar_lea.vmem %s0, 24
  %s16 = smov 3
  %v17 = vld [vmem:[%s15] ss:$8 sm:%s16]
  %vm18 = vcmask 523264
  %s19 = scalar_lea.vmem %s1, 24
  %20 = vst.msk [vmem:[%s19] sm:$0x3] %vm18, %v17
  %s21 = scalar_lea.vmem %s0, 33
  %v22 = vld [vmem:[%s21] sm:$0xff]
  %vm23 = vcmask 523264
  %s24 = scalar_lea.vmem %s1, 26
  %25 = vst.msk [vmem:[%s24] sm:$0xff] %vm23, %v22
  %s26 = scalar_lea.vmem %s0, 41
  %v27 = vld [vmem:[%s26] sm:$0xff]
  %vm28 = vcmask 523264
  %s29 = scalar_lea.vmem %s1, 34
  %30 = vst.msk [vmem:[%s29] sm:$0xff] %vm28, %v27
  %s31 = scalar_lea.vmem %s0, 49
  %v32 = vld [vmem:[%s31] sm:$0xff]
  %vm33 = vcmask 523264
  %s34 = scalar_lea.vmem %s1, 42
  %35 = vst.msk [vmem:[%s34] sm:$0xff] %vm33, %v32
  %s36 = scalar_lea.vmem %s0, 64
  %v37 = vld [vmem:[%s36] sm:$0xff]
  %vm38 = vcmask 523264
  %s39 = scalar_lea.vmem %s1, 50
  %40 = vst.msk [vmem:[%s39] sm:$0xff] %vm38, %v37
  %s41 = scalar_lea.vmem %s0, 72
  %v42 = vld [vmem:[%s41] sm:$0xff]
  %vm43 = vcmask 523264
  %s44 = scalar_lea.vmem %s1, 58
  %45 = vst.msk [vmem:[%s44] sm:$0xff] %vm43, %v42
  %s46 = scalar_lea.vmem %s0, 80
  %v47 = vld [vmem:[%s46] sm:$0xff]
  %vm48 = vcmask 523264
  %s49 = scalar_lea.vmem %s1, 66
  %50 = vst.msk [vmem:[%s49] sm:$0xff] %vm48, %v47
  %s51 = scalar_lea.vmem %s0, 88
  %s52 = smov 3
  %v53 = vld [vmem:[%s51] ss:$8 sm:%s52]
  %vm54 = vcmask 523264
  %s55 = scalar_lea.vmem %s1, 74
  %56 = vst.msk [vmem:[%s55] sm:$0x3] %vm54, %v53
  %s57 = scalar_lea.vmem %s0, 97
  %v58 = vld [vmem:[%s57] sm:$0xff]
  %vm59 = vcmask 523264
  %s60 = scalar_lea.vmem %s1, 76
  %61 = vst.msk [vmem:[%s60] sm:$0xff] %vm59, %v58
  %s62 = scalar_lea.vmem %s0, 105
  %v63 = vld [vmem:[%s62] sm:$0xff]
  %vm64 = vcmask 523264
  %s65 = scalar_lea.vmem %s1, 84
  %66 = vst.msk [vmem:[%s65] sm:$0xff] %vm64, %v63
  %s67 = scalar_lea.vmem %s0, 113
  %v68 = vld [vmem:[%s67] sm:$0xff]
  %vm69 = vcmask 523264
  %s70 = scalar_lea.vmem %s1, 92
  %71 = vst.msk [vmem:[%s70] sm:$0xff] %vm69, %v68
  %s72 = scalar_lea.vmem %s0, 128
  %v73 = vld [vmem:[%s72] sm:$0xff]
  %vm74 = vcmask 523264
  %s75 = scalar_lea.vmem %s1, 100
  %76 = vst.msk [vmem:[%s75] sm:$0xff] %vm74, %v73
  %s77 = scalar_lea.vmem %s0, 136
  %v78 = vld [vmem:[%s77] sm:$0xff]
  %vm79 = vcmask 523264
  %s80 = scalar_lea.vmem %s1, 108
  %81 = vst.msk [vmem:[%s80] sm:$0xff] %vm79, %v78
  %s82 = scalar_lea.vmem %s0, 144
  %v83 = vld [vmem:[%s82] sm:$0xff]
  %vm84 = vcmask 523264
  %s85 = scalar_lea.vmem %s1, 116
  %86 = vst.msk [vmem:[%s85] sm:$0xff] %vm84, %v83
  %s87 = scalar_lea.vmem %s0, 152
  %v88 = vld [vmem:[%s87] sm:$0x1]
  %vm89 = vcmask 523264
  %s90 = scalar_lea.vmem %s1, 124
  %91 = vst.msk [vmem:[%s90] sm:$0x1] %vm89, %v88

// kernel: tile.37
$region0: #{tile.37}
  %s0 = inlined_call_operand.vmem [shape: f32[3,5,25], index: 0, kind: input, shape index: {}]
  %s1 = inlined_call_operand.vmem [shape: f32[3,125], index: 1, kind: output, shape index: {}]
  $region1: #{tile.37} parent=0
    #allocation0 [shape = 'u8[4096]{0}', space=vmem, size = 0x1000, scoped, tag = 'scoped mem for output reshape']
    %v2 = vld [vmem:[%s0] ss:$8 sm:$0x7]
    %vm3 = vcmask 203776
    %4 = vst.msk [vmem:[#allocation0] sm:$0x7] %vm3, %v2
    %s5 = scalar_lea.vmem %s0, 4
    %v6 = vld [vmem:[%s5] ss:$8 sm:$0x7]
    %7 = vrot.lane.b32.xlu0 %v6, 100
    %v8 = vpop.permute.xlu0 %7
    %vm9 = vcmask 1023776
    %10 = vst.msk [vmem:[#allocation0] sm:$0x7] %vm9, %v8
    %s11 = scalar_lea.vmem %s0, 3
    %v12 = vld [vmem:[%s11] ss:$8 sm:$0x7]
    %13 = vrot.lane.b32.xlu0 %v12, 75
    %v14 = vpop.permute.xlu0 %13
    %vm15 = vcmask 818776
    %16 = vst.msk [vmem:[#allocation0] sm:$0x7] %vm15, %v14
    %s17 = scalar_lea.vmem %s0, 2
    %v18 = vld [vmem:[%s17] ss:$8 sm:$0x7]
    %19 = vrot.lane.b32.xlu0 %v18, 50
    %v20 = vpop.permute.xlu0 %19
    %vm21 = vcmask 613776
    %22 = vst.msk [vmem:[#allocation0] sm:$0x7] %vm21, %v20
    %s23 = scalar_lea.vmem %s0, 1
    %v24 = vld [vmem:[%s23] ss:$8 sm:$0x7]
    %25 = vrot.lane.b32.xlu0 %v24, 25
    %v26 = vpop.permute.xlu0 %25
    %vm27 = vcmask 408776
    %28 = vst.msk [vmem:[#allocation0] sm:$0x7] %vm27, %v26
    %s30 = sshllo.u32 0, 4
    %v32 = vld [vmem:[#allocation0] sm:%s30]
    %s33 = sshllo.u32 0, 4
    %34 = vst [vmem:[%s1] sm:%s33] %v32

// kernel: _forward_impl.1
$region0: #{_forward_impl.1}
  #allocation0 [shape = 'u32[]', space=smem, size = 0x4, offset = 0x4, fixed_abs, tag = 'smem constant byte address 0x4 - core index']
  #allocation1 [shape = 'u32[144,128]{1,0:T(1,128)}', space=vmem, size = 0x12000, scoped, tag = 'internal scratch']
  %s0 = inlined_call_operand.hbm [shape: bf16[2,64,128], index: 0, kind: input, shape index: {}]
  %s1 = inlined_call_operand.hbm [shape: bf16[640,64], index: 1, kind: input, shape index: {}]
  %s2 = inlined_call_operand.hbm [shape: bf16[3,128,128], index: 2, kind: input, shape index: {}]
  %s3 = inlined_call_operand.hbm [shape: f32[3,1,128], index: 3, kind: input, shape index: {}]
  %s4 = inlined_call_operand.hbm [shape: bf16[64,64], index: 4, kind: input, shape index: {}]
  %s5 = inlined_call_operand.hbm [shape: bf16[64,128], index: 5, kind: input, shape index: {}]
  %s6 = inlined_call_operand.hbm [shape: bf16[128,128], index: 6, kind: input, shape index: {}]
  %s7 = inlined_call_operand.hbm [shape: f32[64,128], index: 7, kind: input, shape index: {}]
  %s8 = inlined_call_operand.hbm [shape: f32[64,128], index: 8, kind: input, shape index: {}]
  %s9 = inlined_call_operand.hbm [shape: f32[64,128], index: 9, kind: input, shape index: {}]
  %s10 = inlined_call_operand.hbm [shape: f32[128,128], index: 10, kind: input, shape index: {}]
  %s11 = inlined_call_operand.hbm [shape: f32[64,128], index: 11, kind: input, shape index: {}]
  %s12 = inlined_call_operand.hbm [shape: f32[2,64,128], index: 12, kind: output, shape index: {}]
  %s13 = sld [smem:[#allocation0]]
  $region129: #{_forward_impl.1} parent=0
    _
  %s15 = ssub.s32 1, %s13
  %s16 = scalar_select 0, %s15, %s13
  $region1: #{_forward_impl.1} parent=0
    #allocation2 [shape = 'u8[32768]{0}', space=vmem, size = 0x8000, scoped, tag = 'input window, operand 0']
    #allocation3 [shape = 's32[2]{0}', space=sflag, size = 0x8, scoped, tag = 'scoped memory for _forward_impl.1']
    #allocation4 [shape = 's32[2]{0}', space=sflag, size = 0x8, scoped, tag = 'scoped memory for _forward_impl.1']
    #allocation5 [shape = 'u8[163840]{0}', space=vmem, size = 0x28000, scoped, tag = 'input window, operand 1, single buffered']
    #allocation6 [shape = 's32[1]{0}', space=sflag, size = 0x4, scoped, tag = 'scoped memory for _forward_impl.1']
    #allocation7 [shape = 'u8[98304]{0}', space=vmem, size = 0x18000, scoped, tag = 'input window, operand 2, single buffered']
    #allocation8 [shape = 'u8[1536]{0}', space=vmem, size = 0x800, scoped, tag = 'input window, operand 3, single buffered']
    #allocation9 [shape = 's32[1]{0}', space=sflag, size = 0x4, scoped, tag = 'scoped memory for _forward_impl.1']
    #allocation10 [shape = 'u8[16384]{0}', space=vmem, size = 0x4000, scoped, tag = 'input window, operand 4, single buffered']
    #allocation11 [shape = 'u8[16384]{0}', space=vmem, size = 0x4000, scoped, tag = 'input window, operand 5, single buffered']
    #allocation12 [shape = 's32[1]{0}', space=sflag, size = 0x4, scoped, tag = 'scoped memory for _forward_impl.1']
    #allocation13 [shape = 'u8[32768]{0}', space=vmem, size = 0x8000, scoped, tag = 'input window, operand 6, single buffered']
    #allocation14 [shape = 'u8[32768]{0}', space=vmem, size = 0x8000, scoped, tag = 'input window, operand 7, single buffered']
    #allocation15 [shape = 's32[1]{0}', space=sflag, size = 0x4, scoped, tag = 'scoped memory for _forward_impl.1']
    #allocation16 [shape = 'u8[32768]{0}', space=vmem, size = 0x8000, scoped, tag = 'input window, operand 8, single buffered']
    #allocation17 [shape = 'u8[32768]{0}', space=vmem, size = 0x8000, scoped, tag = 'input window, operand 9, single buffered']
    #allocation18 [shape = 's32[1]{0}', space=sflag, size = 0x4, scoped, tag = 'scoped memory for _forward_impl.1']
    #allocation19 [shape = 'u8[65536]{0}', space=vmem, size = 0x10000, scoped, tag = 'input window, operand 10, single buffered']
    #allocation20 [shape = 'u8[32768]{0}', space=vmem, size = 0x8000, scoped, tag = 'input window, operand 11, single buffered']
    #allocation21 [shape = 's32[1]{0}', space=sflag, size = 0x4, scoped, tag = 'scoped memory for _forward_impl.1']
    #allocation22 [shape = 'u8[65536]{0}', space=vmem, size = 0x10000, scoped, tag = 'output window, operand 0']
    %17 = vsyncpa [#allocation3], 0
    %s18 = scalar_lea.sflag [#allocation3], 1
    %19 = vsyncpa %s18, 0
    %20 = vsyncpa [#allocation6], 0
    %21 = vsyncpa [#allocation9], 0
    %22 = vsyncpa [#allocation12], 0
    %23 = vsyncpa [#allocation15], 0
    %24 = vsyncpa [#allocation18], 0
    %25 = vsyncpa [#allocation21], 0
    %26 = vsyncpa [#allocation4], 0
    %s27 = scalar_lea.sflag [#allocation4], 1
    %28 = vsyncpa %s27, 0
    loop: start=0, step=1, limit=4
    $region2: #{_forward_impl.1} parent=1 // loop_pre_header
      _
    $region3: #{_forward_impl.1} parent=1 // loop_header
      %s30 = sphi 0, %s34
      %p31 = scmp.ge.s32.totalorder %s30, 4
      %s40 = sphi 0, %s42
      %s43 = sphi 0, %s40
      %s44 = sphi 0, %s43
      %s60 = sphi 0, %s44
      %s64 = sphi 0, %s64
      %s66 = sphi 0, %s64
      %s67 = sphi 0, %s66
      %s81 = sphi 0, %s67
      %s85 = sphi 0, %s85
      %s87 = sphi 0, %s85
      %s88 = sphi 0, %s87
      %s102 = sphi 0, %s88
      %s106 = sphi 0, %s106
      %s108 = sphi 0, %s106
      %s109 = sphi 0, %s108
      %s123 = sphi 0, %s109
      %s127 = sphi 0, %s127
      %s129 = sphi 0, %s127
      %s130 = sphi 0, %s129
      %s144 = sphi 0, %s130
      %s148 = sphi 0, %s148
      %s150 = sphi 0, %s148
      %s151 = sphi 0, %s150
      %s165 = sphi 0, %s151
      %s169 = sphi 0, %s169
      %s171 = sphi 0, %s169
      %s172 = sphi 0, %s171
      %s186 = sphi 0, %s172
      %s190 = sphi 0, %s190
      %s192 = sphi 0, %s190
      %s193 = sphi 0, %s192
      %s207 = sphi 0, %s193
      %s211 = sphi 0, %s211
      %s213 = sphi 0, %s211
      %s214 = sphi 0, %s213
      %s228 = sphi 0, %s214
      %s232 = sphi 0, %s232
      %s234 = sphi 0, %s232
      %s235 = sphi 0, %s234
      %s249 = sphi 0, %s235
      %s253 = sphi 0, %s253
      %s255 = sphi 0, %s253
      %s256 = sphi 0, %s255
      %s270 = sphi 0, %s256
      %s274 = sphi 0, %s274
      %s276 = sphi 0, %s274
      %s277 = sphi 0, %s276
      %s291 = sphi 0, %s277
      %s297 = sphi 0, %s299
      %s300 = sphi 0, %s297
      %s301 = sphi 0, %s300
      %s317 = sphi 0, %s301
    $region4: #{_forward_impl.1} parent=1 // loop_header_branch
      %33 = sbr.rel (%p31) target = $region8
    $region5: #{_forward_impl.1} parent=1 // loop_body
      %s35 = ssub.s32 %s30, 1
      %s36 = ssub.s32 %s30, 2
      %s37 = sadd.s32 %s30, 1
      %s38 = ssub.s32 %s30, %s37
      %p39 = scmp.eq.s32.totalorder %s38, 0
      %s41 = sadd.s32 %s40, 1
      %s42 = scalar_select %p39, %s40, %s41
      %p45 = pneg %p39
      %p46 = scmp.eq.s32.totalorder %s30, 1
      %p47 = por %p45, %p46
      %p48 = scmp.ne.s32.totalorder %s40, %s43
      %p49 = scmp.eq.s32.totalorder %s30, 0
      %p50 = por %p48, %p49
      %p51 = scmp.ne.s32.totalorder %s40, %s43
      %p52 = scmp.eq.s32.totalorder %s35, 1
      %p53 = por %p51, %p52
      %p54 = scmp.ne.s32.totalorder %s43, %s44
      %p55 = scmp.eq.s32.totalorder %s35, 0
      %p56 = por %p54, %p55
      %p57 = scmp.ne.s32.totalorder %s43, %s44
      %p58 = scmp.eq.s32.totalorder %s36, 1
      %p59 = por %p57, %p58
      %p61 = scmp.ne.s32.totalorder %s44, %s60
      %p62 = scmp.eq.s32.totalorder %s36, 0
      %p63 = por %p61, %p62
      %s65 = sadd.s32 %s64, 1
      %p68 = scmp.eq.s32.totalorder %s30, 1
      %p69 = scmp.ne.s32.totalorder %s64, %s66
      %p70 = scmp.eq.s32.totalorder %s30, 0
      %p71 = por %p69, %p70
      %p72 = scmp.ne.s32.totalorder %s64, %s66
      %p73 = scmp.eq.s32.totalorder %s35, 1
      %p74 = por %p72, %p73
      %p75 = scmp.ne.s32.totalorder %s66, %s67
      %p76 = scmp.eq.s32.totalorder %s35, 0
      %p77 = por %p75, %p76
      %p78 = scmp.ne.s32.totalorder %s66, %s67
      %p79 = scmp.eq.s32.totalorder %s36, 1
      %p80 = por %p78, %p79
      %p82 = scmp.ne.s32.totalorder %s67, %s81
      %p83 = scmp.eq.s32.totalorder %s36, 0
      %p84 = por %p82, %p83
      %s86 = sadd.s32 %s85, 1
      %p89 = scmp.eq.s32.totalorder %s30, 1
      %p90 = scmp.ne.s32.totalorder %s85, %s87
      %p91 = scmp.eq.s32.totalorder %s30, 0
      %p92 = por %p90, %p91
      %p93 = scmp.ne.s32.totalorder %s85, %s87
      %p94 = scmp.eq.s32.totalorder %s35, 1
      %p95 = por %p93, %p94
      %p96 = scmp.ne.s32.totalorder %s87, %s88
      %p97 = scmp.eq.s32.totalorder %s35, 0
      %p98 = por %p96, %p97
      %p99 = scmp.ne.s32.totalorder %s87, %s88
      %p100 = scmp.eq.s32.totalorder %s36, 1
      %p101 = por %p99, %p100
      %p103 = scmp.ne.s32.totalorder %s88, %s102
      %p104 = scmp.eq.s32.totalorder %s36, 0
      %p105 = por %p103, %p104
      %s107 = sadd.s32 %s106, 1
      %p110 = scmp.eq.s32.totalorder %s30, 1
      %p111 = scmp.ne.s32.totalorder %s106, %s108
      %p112 = scmp.eq.s32.totalorder %s30, 0
      %p113 = por %p111, %p112
      %p114 = scmp.ne.s32.totalorder %s106, %s108
      %p115 = scmp.eq.s32.totalorder %s35, 1
      %p116 = por %p114, %p115
      %p117 = scmp.ne.s32.totalorder %s108, %s109
      %p118 = scmp.eq.s32.totalorder %s35, 0
      %p119 = por %p117, %p118
      %p120 = scmp.ne.s32.totalorder %s108, %s109
      %p121 = scmp.eq.s32.totalorder %s36, 1
      %p122 = por %p120, %p121
      %p124 = scmp.ne.s32.totalorder %s109, %s123
      %p125 = scmp.eq.s32.totalorder %s36, 0
      %p126 = por %p124, %p125
      %s128 = sadd.s32 %s127, 1
      %p131 = scmp.eq.s32.totalorder %s30, 1
      %p132 = scmp.ne.s32.totalorder %s127, %s129
      %p133 = scmp.eq.s32.totalorder %s30, 0
      %p134 = por %p132, %p133
      %p135 = scmp.ne.s32.totalorder %s127, %s129
      %p136 = scmp.eq.s32.totalorder %s35, 1
      %p137 = por %p135, %p136
      %p138 = scmp.ne.s32.totalorder %s129, %s130
      %p139 = scmp.eq.s32.totalorder %s35, 0
      %p140 = por %p138, %p139
      %p141 = scmp.ne.s32.totalorder %s129, %s130
      %p142 = scmp.eq.s32.totalorder %s36, 1
      %p143 = por %p141, %p142
      %p145 = scmp.ne.s32.totalorder %s130, %s144
      %p146 = scmp.eq.s32.totalorder %s36, 0
      %p147 = por %p145, %p146
      %s149 = sadd.s32 %s148, 1
      %p152 = scmp.eq.s32.totalorder %s30, 1
      %p153 = scmp.ne.s32.totalorder %s148, %s150
      %p154 = scmp.eq.s32.totalorder %s30, 0
      %p155 = por %p153, %p154
      %p156 = scmp.ne.s32.totalorder %s148, %s150
      %p157 = scmp.eq.s32.totalorder %s35, 1
      %p158 = por %p156, %p157
      %p159 = scmp.ne.s32.totalorder %s150, %s151
      %p160 = scmp.eq.s32.totalorder %s35, 0
      %p161 = por %p159, %p160
      %p162 = scmp.ne.s32.totalorder %s150, %s151
      %p163 = scmp.eq.s32.totalorder %s36, 1
      %p164 = por %p162, %p163
      %p166 = scmp.ne.s32.totalorder %s151, %s165
      %p167 = scmp.eq.s32.totalorder %s36, 0
      %p168 = por %p166, %p167
      %s170 = sadd.s32 %s169, 1
      %p173 = scmp.eq.s32.totalorder %s30, 1
      %p174 = scmp.ne.s32.totalorder %s169, %s171
      %p175 = scmp.eq.s32.totalorder %s30, 0
      %p176 = por %p174, %p175
      %p177 = scmp.ne.s32.totalorder %s169, %s171
      %p178 = scmp.eq.s32.totalorder %s35, 1
      %p179 = por %p177, %p178
      %p180 = scmp.ne.s32.totalorder %s171, %s172
      %p181 = scmp.eq.s32.totalorder %s35, 0
      %p182 = por %p180, %p181
      %p183 = scmp.ne.s32.totalorder %s171, %s172
      %p184 = scmp.eq.s32.totalorder %s36, 1
      %p185 = por %p183, %p184
      %p187 = scmp.ne.s32.totalorder %s172, %s186
      %p188 = scmp.eq.s32.totalorder %s36, 0
      %p189 = por %p187, %p188
      %s191 = sadd.s32 %s190, 1
      %p194 = scmp.eq.s32.totalorder %s30, 1
      %p195 = scmp.ne.s32.totalorder %s190, %s192
      %p196 = scmp.eq.s32.totalorder %s30, 0
      %p197 = por %p195, %p196
      %p198 = scmp.ne.s32.totalorder %s190, %s192
      %p199 = scmp.eq.s32.totalorder %s35, 1
      %p200 = por %p198, %p199
      %p201 = scmp.ne.s32.totalorder %s192, %s193
      %p202 = scmp.eq.s32.totalorder %s35, 0
      %p203 = por %p201, %p202
      %p204 = scmp.ne.s32.totalorder %s192, %s193
      %p205 = scmp.eq.s32.totalorder %s36, 1
      %p206 = por %p204, %p205
      %p208 = scmp.ne.s32.totalorder %s193, %s207
      %p209 = scmp.eq.s32.totalorder %s36, 0
      %p210 = por %p208, %p209
      %s212 = sadd.s32 %s211, 1
      %p215 = scmp.eq.s32.totalorder %s30, 1
      %p216 = scmp.ne.s32.totalorder %s211, %s213
      %p217 = scmp.eq.s32.totalorder %s30, 0
      %p218 = por %p216, %p217
      %p219 = scmp.ne.s32.totalorder %s211, %s213
      %p220 = scmp.eq.s32.totalorder %s35, 1
      %p221 = por %p219, %p220
      %p222 = scmp.ne.s32.totalorder %s213, %s214
      %p223 = scmp.eq.s32.totalorder %s35, 0
      %p224 = por %p222, %p223
      %p225 = scmp.ne.s32.totalorder %s213, %s214
      %p226 = scmp.eq.s32.totalorder %s36, 1
      %p227 = por %p225, %p226
      %p229 = scmp.ne.s32.totalorder %s214, %s228
      %p230 = scmp.eq.s32.totalorder %s36, 0
      %p231 = por %p229, %p230
      %s233 = sadd.s32 %s232, 1
      %p236 = scmp.eq.s32.totalorder %s30, 1
      %p237 = scmp.ne.s32.totalorder %s232, %s234
      %p238 = scmp.eq.s32.totalorder %s30, 0
      %p239 = por %p237, %p238
      %p240 = scmp.ne.s32.totalorder %s232, %s234
      %p241 = scmp.eq.s32.totalorder %s35, 1
      %p242 = por %p240, %p241
      %p243 = scmp.ne.s32.totalorder %s234, %s235
      %p244 = scmp.eq.s32.totalorder %s35, 0
      %p245 = por %p243, %p244
      %p246 = scmp.ne.s32.totalorder %s234, %s235
      %p247 = scmp.eq.s32.totalorder %s36, 1
      %p248 = por %p246, %p247
      %p250 = scmp.ne.s32.totalorder %s235, %s249
      %p251 = scmp.eq.s32.totalorder %s36, 0
      %p252 = por %p250, %p251
      %s254 = sadd.s32 %s253, 1
      %p257 = scmp.eq.s32.totalorder %s30, 1
      %p258 = scmp.ne.s32.totalorder %s253, %s255
      %p259 = scmp.eq.s32.totalorder %s30, 0
      %p260 = por %p258, %p259
      %p261 = scmp.ne.s32.totalorder %s253, %s255
      %p262 = scmp.eq.s32.totalorder %s35, 1
      %p263 = por %p261, %p262
      %p264 = scmp.ne.s32.totalorder %s255, %s256
      %p265 = scmp.eq.s32.totalorder %s35, 0
      %p266 = por %p264, %p265
      %p267 = scmp.ne.s32.totalorder %s255, %s256
      %p268 = scmp.eq.s32.totalorder %s36, 1
      %p269 = por %p267, %p268
      %p271 = scmp.ne.s32.totalorder %s256, %s270
      %p272 = scmp.eq.s32.totalorder %s36, 0
      %p273 = por %p271, %p272
      %s275 = sadd.s32 %s274, 1
      %p278 = scmp.eq.s32.totalorder %s30, 1
      %p279 = scmp.ne.s32.totalorder %s274, %s276
      %p280 = scmp.eq.s32.totalorder %s30, 0
      %p281 = por %p279, %p280
      %p282 = scmp.ne.s32.totalorder %s274, %s276
      %p283 = scmp.eq.s32.totalorder %s35, 1
      %p284 = por %p282, %p283
      %p285 = scmp.ne.s32.totalorder %s276, %s277
      %p286 = scmp.eq.s32.totalorder %s35, 0
      %p287 = por %p285, %p286
      %p288 = scmp.ne.s32.totalorder %s276, %s277
      %p289 = scmp.eq.s32.totalorder %s36, 1
      %p290 = por %p288, %p289
      %p292 = scmp.ne.s32.totalorder %s277, %s291
      %p293 = scmp.eq.s32.totalorder %s36, 0
      %p294 = por %p292, %p293
      %s295 = ssub.s32 %s30, %s37
      %p296 = scmp.eq.s32.totalorder %s295, 0
      %s298 = sadd.s32 %s297, 1
      %s299 = scalar_select %p296, %s297, %s298
      %p302 = pneg %p296
      %p303 = scmp.eq.s32.totalorder %s30, 1
      %p304 = por %p302, %p303
      %p305 = scmp.ne.s32.totalorder %s297, %s300
      %p306 = scmp.eq.s32.totalorder %s30, 0
      %p307 = por %p305, %p306
      %p308 = scmp.ne.s32.totalorder %s297, %s300
      %p309 = scmp.eq.s32.totalorder %s35, 1
      %p310 = por %p308, %p309
      %p311 = scmp.ne.s32.totalorder %s300, %s301
      %p312 = scmp.eq.s32.totalorder %s35, 0
      %p313 = por %p311, %p312
      %p314 = scmp.ne.s32.totalorder %s300, %s301
      %p315 = scmp.eq.s32.totalorder %s36, 1
      %p316 = por %p314, %p315
      %p318 = scmp.ne.s32.totalorder %s301, %s317
      %p319 = scmp.eq.s32.totalorder %s36, 0
      %p320 = por %p318, %p319
      %p321 = scmp.le.s32.totalorder 1, %s30
      %p322 = scmp.lt.s32.totalorder %s30, 3
      %p323 = pnand %p321, %p322
      %p324 = pneg %p323
      // Predicated region
      $region9: #{_forward_impl.1} parent=5 // pred_check
        _
      $region10: #{_forward_impl.1} parent=5 // pred_check_branch
        %326 = sbr.rel (%p323) target = $region12
      $region11: #{_forward_impl.1} parent=5 // pred_region
        %s327 = ssub.s32 %s30, 1
        // Predicated region
        $region13: #{_forward_impl.1} parent=11 // pred_check
          %p328 = pneg %p77
        $region14: #{_forward_impl.1} parent=11 // pred_check_branch
          %330 = sbr.rel (%p328) target = $region16
        $region15: #{_forward_impl.1} parent=11 // pred_region
          %s332 = ssub.s32 5120, 5120
          %333 = vsyncadd [#allocation6], %s332
          %s334 = sshll.u32 [#allocation5], 4
          %s335 = int_to_ptr.vmem [resolvable:$true] %s334
          %340 = dma.hbm_to_vmem [thread:$0]  %s1, 5120, %s335, [#allocation6], 64, 64, 4
        $region16: #{_forward_impl.1} parent=11 // pred_fallthru
          _
        // Predicated region
        $region17: #{_forward_impl.1} parent=11 // pred_check
          %p341 = pneg %p98
        $region18: #{_forward_impl.1} parent=11 // pred_check_branch
          %343 = sbr.rel (%p341) target = $region20
        $region19: #{_forward_impl.1} parent=11 // pred_region
          %s345 = ssub.s32 3072, 3072
          %346 = vsyncadd [#allocation6], %s345
          %s347 = sshll.u32 [#allocation7], 4
          %s348 = int_to_ptr.vmem [resolvable:$true] %s347
          %353 = dma.hbm_to_vmem [thread:$0]  %s2, 3072, %s348, [#allocation6], 64, 64, 4
        $region20: #{_forward_impl.1} parent=11 // pred_fallthru
          _
        // Predicated region
        $region21: #{_forward_impl.1} parent=11 // pred_check
          %p354 = pneg %p119
        $region22: #{_forward_impl.1} parent=11 // pred_check_branch
          %356 = sbr.rel (%p354) target = $region24
        $region23: #{_forward_impl.1} parent=11 // pred_region
          %s358 = ssub.s32 48, 48
          %359 = vsyncadd [#allocation9], %s358
          %s360 = sshll.u32 [#allocation8], 4
          %s361 = int_to_ptr.vmem [resolvable:$true] %s360
          %366 = dma.hbm_to_vmem [thread:$0]  %s3, 48, %s361, [#allocation9], 16, 16, 1
        $region24: #{_forward_impl.1} parent=11 // pred_fallthru
          _
        // Predicated region
        $region25: #{_forward_impl.1} parent=11 // pred_check
          %p367 = pneg %p140
        $region26: #{_forward_impl.1} parent=11 // pred_check_branch
          %369 = sbr.rel (%p367) target = $region28
        $region27: #{_forward_impl.1} parent=11 // pred_region
          %s371 = ssub.s32 512, 512
          %372 = vsyncadd [#allocation9], %s371
          %s373 = sshll.u32 [#allocation10], 4
          %s374 = int_to_ptr.vmem [resolvable:$true] %s373
          %379 = dma.hbm_to_vmem [thread:$0]  %s4, 512, %s374, [#allocation9], 64, 64, 4
        $region28: #{_forward_impl.1} parent=11 // pred_fallthru
          _
        // Predicated region
        $region29: #{_forward_impl.1} parent=11 // pred_check
          %p380 = pneg %p161
        $region30: #{_forward_impl.1} parent=11 // pred_check_branch
          %382 = sbr.rel (%p380) target = $region32
        $region31: #{_forward_impl.1} parent=11 // pred_region
          %s384 = ssub.s32 512, 512
          %385 = vsyncadd [#allocation12], %s384
          %s386 = sshll.u32 [#allocation11], 4
          %s387 = int_to_ptr.vmem [resolvable:$true] %s386
          %392 = dma.hbm_to_vmem [thread:$0]  %s5, 512, %s387, [#allocation12], 64, 64, 4
        $region32: #{_forward_impl.1} parent=11 // pred_fallthru
          _
        // Predicated region
        $region33: #{_forward_impl.1} parent=11 // pred_check
          %p393 = pneg %p182
        $region34: #{_forward_impl.1} parent=11 // pred_check_branch
          %395 = sbr.rel (%p393) target = $region36
        $region35: #{_forward_impl.1} parent=11 // pred_region
          %s397 = ssub.s32 1024, 1024
          %398 = vsyncadd [#allocation12], %s397
          %s399 = sshll.u32 [#allocation13], 4
          %s400 = int_to_ptr.vmem [resolvable:$true] %s399
          %405 = dma.hbm_to_vmem [thread:$0]  %s6, 1024, %s400, [#allocation12], 64, 64, 4
        $region36: #{_forward_impl.1} parent=11 // pred_fallthru
          _
        // Predicated region
        $region37: #{_forward_impl.1} parent=11 // pred_check
          %p406 = pneg %p203
        $region38: #{_forward_impl.1} parent=11 // pred_check_branch
          %408 = sbr.rel (%p406) target = $region40
        $region39: #{_forward_impl.1} parent=11 // pred_region
          %s410 = ssub.s32 1024, 1024
          %411 = vsyncadd [#allocation15], %s410
          %s412 = sshll.u32 [#allocation14], 4
          %s413 = int_to_ptr.vmem [resolvable:$true] %s412
          %418 = dma.hbm_to_vmem [thread:$0]  %s7, 1024, %s413, [#allocation15], 128, 128, 8
        $region40: #{_forward_impl.1} parent=11 // pred_fallthru
          _
        // Predicated region
        $region41: #{_forward_impl.1} parent=11 // pred_check
          %p419 = pneg %p224
        $region42: #{_forward_impl.1} parent=11 // pred_check_branch
          %421 = sbr.rel (%p419) target = $region44
        $region43: #{_forward_impl.1} parent=11 // pred_region
          %s423 = ssub.s32 1024, 1024
          %424 = vsyncadd [#allocation15], %s423
          %s425 = sshll.u32 [#allocation16], 4
          %s426 = int_to_ptr.vmem [resolvable:$true] %s425
          %431 = dma.hbm_to_vmem [thread:$0]  %s8, 1024, %s426, [#allocation15], 128, 128, 8
        $region44: #{_forward_impl.1} parent=11 // pred_fallthru
          _
        // Predicated region
        $region45: #{_forward_impl.1} parent=11 // pred_check
          %p432 = pneg %p245
        $region46: #{_forward_impl.1} parent=11 // pred_check_branch
          %434 = sbr.rel (%p432) target = $region48
        $region47: #{_forward_impl.1} parent=11 // pred_region
          %s436 = ssub.s32 1024, 1024
          %437 = vsyncadd [#allocation18], %s436
          %s438 = sshll.u32 [#allocation17], 4
          %s439 = int_to_ptr.vmem [resolvable:$true] %s438
          %444 = dma.hbm_to_vmem [thread:$0]  %s9, 1024, %s439, [#allocation18], 128, 128, 8
        $region48: #{_forward_impl.1} parent=11 // pred_fallthru
          _
        // Predicated region
        $region49: #{_forward_impl.1} parent=11 // pred_check
          %p445 = pneg %p266
        $region50: #{_forward_impl.1} parent=11 // pred_check_branch
          %447 = sbr.rel (%p445) target = $region52
        $region51: #{_forward_impl.1} parent=11 // pred_region
          %s449 = ssub.s32 2048, 2048
          %450 = vsyncadd [#allocation18], %s449
          %s451 = sshll.u32 [#allocation19], 4
          %s452 = int_to_ptr.vmem [resolvable:$true] %s451
          %457 = dma.hbm_to_vmem [thread:$0]  %s10, 2048, %s452, [#allocation18], 128, 128, 8
        $region52: #{_forward_impl.1} parent=11 // pred_fallthru
          _
        // Predicated region
        $region53: #{_forward_impl.1} parent=11 // pred_check
          %p458 = pneg %p287
        $region54: #{_forward_impl.1} parent=11 // pred_check_branch
          %460 = sbr.rel (%p458) target = $region56
        $region55: #{_forward_impl.1} parent=11 // pred_region
          %s462 = ssub.s32 1024, 1024
          %463 = vsyncadd [#allocation21], %s462
          %s464 = sshll.u32 [#allocation20], 4
          %s465 = int_to_ptr.vmem [resolvable:$true] %s464
          %470 = dma.hbm_to_vmem [thread:$0]  %s11, 1024, %s465, [#allocation21], 128, 128, 8
        $region56: #{_forward_impl.1} parent=11 // pred_fallthru
          _
      $region12: #{_forward_impl.1} parent=5 // pred_fallthru
        _
      %p471 = scmp.lt.s32.totalorder %s30, 2
      // Predicated region
      $region57: #{_forward_impl.1} parent=5 // pred_check
        %p472 = pneg %p471
      $region58: #{_forward_impl.1} parent=5 // pred_check_branch
        %474 = sbr.rel (%p472) target = $region60
      $region59: #{_forward_impl.1} parent=5 // pred_region
        // Predicated region
        $region61: #{_forward_impl.1} parent=59 // pred_check
          %p475 = pneg %p50
        $region62: #{_forward_impl.1} parent=59 // pred_check_branch
          %477 = sbr.rel (%p475) target = $region64
        $region63: #{_forward_impl.1} parent=59 // pred_region
          %s478 = sand.u32 %s40, 1
          %s479 = scalar_lea.sflag [#allocation3], %s478
          %s480 = sand.u32 %s40, 1
          %s481 = smul.addr %s480, 32
          %s482 = scalar_lea.vmem [#allocation2], %s481
          %s484 = ssub.s32 512, 512
          %485 = vsyncadd %s479, %s484
          %s486 = smul.addr %s30, 8
          %s487 = smul.addr %s486, 64
          %s488 = scalar_lea.hbm %s0, %s487
          %s489 = sshll.u32 %s482, 4
          %s490 = int_to_ptr.vmem [resolvable:$true] %s489
          %495 = dma.hbm_to_vmem [thread:$0]  %s488, 512, %s490, %s479, 64, 64, 4
        $region64: #{_forward_impl.1} parent=59 // pred_fallthru
          _
      $region60: #{_forward_impl.1} parent=5 // pred_fallthru
        _
      %p496 = scmp.le.s32.totalorder 1, %s30
      %p497 = scmp.lt.s32.totalorder %s30, 3
      %p498 = pnand %p496, %p497
      %p499 = pneg %p498
      // Predicated region
      $region65: #{_forward_impl.1} parent=5 // pred_check
        _
      $region66: #{_forward_impl.1} parent=5 // pred_check_branch
        %501 = sbr.rel (%p498) target = $region68
      $region67: #{_forward_impl.1} parent=5 // pred_region
        %s502 = ssub.s32 %s30, 1
        %s503 = sand.u32 %s43, 1
        %s504 = scalar_lea.sflag [#allocation3], %s503
        %s505 = sand.u32 %s43, 1
        %s506 = smul.addr %s505, 32
        %s507 = scalar_lea.vmem [#allocation2], %s506
        // Predicated region
        $region69: #{_forward_impl.1} parent=67 // pred_check
          %p508 = pneg %p56
        $region70: #{_forward_impl.1} parent=67 // pred_check_branch
          %510 = sbr.rel (%p508) target = $region72
        $region71: #{_forward_impl.1} parent=67 // pred_region
          %511 = dma.done %s504, 512
        $region72: #{_forward_impl.1} parent=67 // pred_fallthru
          _
        // Predicated region
        $region73: #{_forward_impl.1} parent=67 // pred_check
          %p512 = pneg %p77
        $region74: #{_forward_impl.1} parent=67 // pred_check_branch
          %514 = sbr.rel (%p512) target = $region76
        $region75: #{_forward_impl.1} parent=67 // pred_region
          %515 = dma.done [#allocation6], 5120
        $region76: #{_forward_impl.1} parent=67 // pred_fallthru
          _
        // Predicated region
        $region77: #{_forward_impl.1} parent=67 // pred_check
          %p516 = pneg %p98
        $region78: #{_forward_impl.1} parent=67 // pred_check_branch
          %518 = sbr.rel (%p516) target = $region80
        $region79: #{_forward_impl.1} parent=67 // pred_region
          %519 = dma.done [#allocation6], 3072
        $region80: #{_forward_impl.1} parent=67 // pred_fallthru
          _
        // Predicated region
        $region81: #{_forward_impl.1} parent=67 // pred_check
          %p520 = pneg %p119
        $region82: #{_forward_impl.1} parent=67 // pred_check_branch
          %522 = sbr.rel (%p520) target = $region84
        $region83: #{_forward_impl.1} parent=67 // pred_region
          %523 = dma.done [#allocation9], 48
        $region84: #{_forward_impl.1} parent=67 // pred_fallthru
          _
        // Predicated region
        $region85: #{_forward_impl.1} parent=67 // pred_check
          %p524 = pneg %p140
        $region86: #{_forward_impl.1} parent=67 // pred_check_branch
          %526 = sbr.rel (%p524) target = $region88
        $region87: #{_forward_impl.1} parent=67 // pred_region
          %527 = dma.done [#allocation9], 512
        $region88: #{_forward_impl.1} parent=67 // pred_fallthru
          _
        // Predicated region
        $region89: #{_forward_impl.1} parent=67 // pred_check
          %p528 = pneg %p161
        $region90: #{_forward_impl.1} parent=67 // pred_check_branch
          %530 = sbr.rel (%p528) target = $region92
        $region91: #{_forward_impl.1} parent=67 // pred_region
          %531 = dma.done [#allocation12], 512
        $region92: #{_forward_impl.1} parent=67 // pred_fallthru
          _
        // Predicated region
        $region93: #{_forward_impl.1} parent=67 // pred_check
          %p532 = pneg %p182
        $region94: #{_forward_impl.1} parent=67 // pred_check_branch
          %534 = sbr.rel (%p532) target = $region96
        $region95: #{_forward_impl.1} parent=67 // pred_region
          %535 = dma.done [#allocation12], 1024
        $region96: #{_forward_impl.1} parent=67 // pred_fallthru
          _
        // Predicated region
        $region97: #{_forward_impl.1} parent=67 // pred_check
          %p536 = pneg %p203
        $region98: #{_forward_impl.1} parent=67 // pred_check_branch
          %538 = sbr.rel (%p536) target = $region100
        $region99: #{_forward_impl.1} parent=67 // pred_region
          %539 = dma.done [#allocation15], 1024
        $region100: #{_forward_impl.1} parent=67 // pred_fallthru
          _
        // Predicated region
        $region101: #{_forward_impl.1} parent=67 // pred_check
          %p540 = pneg %p224
        $region102: #{_forward_impl.1} parent=67 // pred_check_branch
          %542 = sbr.rel (%p540) target = $region104
        $region103: #{_forward_impl.1} parent=67 // pred_region
          %543 = dma.done [#allocation15], 1024
        $region104: #{_forward_impl.1} parent=67 // pred_fallthru
          _
        // Predicated region
        $region105: #{_forward_impl.1} parent=67 // pred_check
          %p544 = pneg %p245
        $region106: #{_forward_impl.1} parent=67 // pred_check_branch
          %546 = sbr.rel (%p544) target = $region108
        $region107: #{_forward_impl.1} parent=67 // pred_region
          %547 = dma.done [#allocation18], 1024
        $region108: #{_forward_impl.1} parent=67 // pred_fallthru
          _
        // Predicated region
        $region109: #{_forward_impl.1} parent=67 // pred_check
          %p548 = pneg %p266
        $region110: #{_forward_impl.1} parent=67 // pred_check_branch
          %550 = sbr.rel (%p548) target = $region112
        $region111: #{_forward_impl.1} parent=67 // pred_region
          %551 = dma.done [#allocation18], 2048
        $region112: #{_forward_impl.1} parent=67 // pred_fallthru
          _
        // Predicated region
        $region113: #{_forward_impl.1} parent=67 // pred_check
          %p552 = pneg %p287
        $region114: #{_forward_impl.1} parent=67 // pred_check_branch
          %554 = sbr.rel (%p552) target = $region116
        $region115: #{_forward_impl.1} parent=67 // pred_region
          %555 = dma.done [#allocation21], 1024
        $region116: #{_forward_impl.1} parent=67 // pred_fallthru
          _
        %s556 = sand.u32 %s43, 1
        %s557 = scalar_lea.sflag [#allocation3], %s556
        %s558 = sand.u32 %s43, 1
        %s559 = smul.addr %s558, 32
        %s560 = scalar_lea.vmem [#allocation2], %s559
        %p561 = pneg %p56
        %p562 = pneg %p53
        %p563 = pneg %p77
        %p564 = pneg %p74
        %p565 = pneg %p98
        %p566 = pneg %p95
        %p567 = pneg %p119
        %p568 = pneg %p116
        %p569 = pneg %p140
        %p570 = pneg %p137
        %p571 = pneg %p161
        %p572 = pneg %p158
        %p573 = pneg %p182
        %p574 = pneg %p179
        %p575 = pneg %p203
        %p576 = pneg %p200
        %p577 = pneg %p224
        %p578 = pneg %p221
        %p579 = pneg %p245
        %p580 = pneg %p242
        %p581 = pneg %p266
        %p582 = pneg %p263
        %p583 = pneg %p287
        %p584 = pneg %p284
        %p585 = pneg %p313
        %p586 = pneg %p310
        %s587 = sand.u32 %s300, 1
        %s588 = scalar_lea.sflag [#allocation4], %s587
        %s589 = sand.u32 %s300, 1
        %s590 = smul.addr %s589, 64
        %s591 = scalar_lea.vmem [#allocation22], %s590
        %v593 = vld [vmem:[%s507] sm:$0xf]
        %v594 = vld [vmem:[%s507 + $0x4] sm:$0xf]
        %v595 = vld [vmem:[%s507 + $0x8] sm:$0xf]
        %v596 = vld [vmem:[%s507 + $0xc] sm:$0xf]
        %v597 = vld [vmem:[%s507 + $0x10] sm:$0xf]
        %v598 = vld [vmem:[%s507 + $0x14] sm:$0xf]
        %v599 = vld [vmem:[%s507 + $0x18] sm:$0xf]
        %v600 = vld [vmem:[%s507 + $0x1c] sm:$0xf]
        %v601 = vld [vmem:[#allocation5] sm:$0xf]
        %v602 = vld [vmem:[#allocation5 + $0x4] sm:$0xf]
        %v603 = vld [vmem:[#allocation5 + $0x8] sm:$0xf]
        %v604 = vld [vmem:[#allocation5 + $0xc] sm:$0xf]
        %v605 = vld [vmem:[#allocation5 + $0x10] sm:$0xf]
        %v606 = vld [vmem:[#allocation5 + $0x14] sm:$0xf]
        %v607 = vld [vmem:[#allocation5 + $0x18] sm:$0xf]
        %v608 = vld [vmem:[#allocation5 + $0x1c] sm:$0xf]
        %v609 = vld [vmem:[#allocation5 + $0x20] sm:$0xf]
        %v610 = vld [vmem:[#allocation5 + $0x24] sm:$0xf]
        %v611 = vld [vmem:[#allocation5 + $0x28] sm:$0xf]
        %v612 = vld [vmem:[#allocation5 + $0x2c] sm:$0xf]
        %v613 = vld [vmem:[#allocation5 + $0x30] sm:$0xf]
        %v614 = vld [vmem:[#allocation5 + $0x34] sm:$0xf]
        %v615 = vld [vmem:[#allocation5 + $0x38] sm:$0xf]
        %v616 = vld [vmem:[#allocation5 + $0x3c] sm:$0xf]
        %v617 = vld [vmem:[#allocation5 + $0x40] sm:$0xf]
        %v618 = vld [vmem:[#allocation5 + $0x44] sm:$0xf]
        %v619 = vld [vmem:[#allocation5 + $0x48] sm:$0xf]
        %v620 = vld [vmem:[#allocation5 + $0x4c] sm:$0xf]
        %v621 = vld [vmem:[#allocation5 + $0x50] sm:$0xf]
        %v622 = vld [vmem:[#allocation5 + $0x54] sm:$0xf]
        %v623 = vld [vmem:[#allocation5 + $0x58] sm:$0xf]
        %v624 = vld [vmem:[#allocation5 + $0x5c] sm:$0xf]
        %v625 = vld [vmem:[#allocation5 + $0x60] sm:$0xf]
        %v626 = vld [vmem:[#allocation5 + $0x64] sm:$0xf]
        %v627 = vld [vmem:[#allocation5 + $0x68] sm:$0xf]
        %v628 = vld [vmem:[#allocation5 + $0x6c] sm:$0xf]
        %v629 = vld [vmem:[#allocation5 + $0x70] sm:$0xf]
        %v630 = vld [vmem:[#allocation5 + $0x74] sm:$0xf]
        %v631 = vld [vmem:[#allocation5 + $0x78] sm:$0xf]
        %v632 = vld [vmem:[#allocation5 + $0x7c] sm:$0xf]
        %v633 = vld [vmem:[#allocation5 + $0x80] sm:$0xf]
        %v634 = vld [vmem:[#allocation5 + $0x84] sm:$0xf]
        %v635 = vld [vmem:[#allocation5 + $0x88] sm:$0xf]
        %v636 = vld [vmem:[#allocation5 + $0x8c] sm:$0xf]
        %v637 = vld [vmem:[#allocation5 + $0x90] sm:$0xf]
        %v638 = vld [vmem:[#allocation5 + $0x94] sm:$0xf]
        %v639 = vld [vmem:[#allocation5 + $0x98] sm:$0xf]
        %v640 = vld [vmem:[#allocation5 + $0x9c] sm:$0xf]
        %v641 = vld [vmem:[#allocation5 + $0xa0] sm:$0xf]
        %v642 = vld [vmem:[#allocation5 + $0xa4] sm:$0xf]
        %v643 = vld [vmem:[#allocation5 + $0xa8] sm:$0xf]
        %v644 = vld [vmem:[#allocation5 + $0xac] sm:$0xf]
        %v645 = vld [vmem:[#allocation5 + $0xb0] sm:$0xf]
        %v646 = vld [vmem:[#allocation5 + $0xb4] sm:$0xf]
        %v647 = vld [vmem:[#allocation5 + $0xb8] sm:$0xf]
        %v648 = vld [vmem:[#allocation5 + $0xbc] sm:$0xf]
        %v649 = vld [vmem:[#allocation5 + $0xc0] sm:$0xf]
        %v650 = vld [vmem:[#allocation5 + $0xc4] sm:$0xf]
        %v651 = vld [vmem:[#allocation5 + $0xc8] sm:$0xf]
        %v652 = vld [vmem:[#allocation5 + $0xcc] sm:$0xf]
        %v653 = vld [vmem:[#allocation5 + $0xd0] sm:$0xf]
        %v654 = vld [vmem:[#allocation5 + $0xd4] sm:$0xf]
        %v655 = vld [vmem:[#allocation5 + $0xd8] sm:$0xf]
        %v656 = vld [vmem:[#allocation5 + $0xdc] sm:$0xf]
        %v657 = vld [vmem:[#allocation5 + $0xe0] sm:$0xf]
        %v658 = vld [vmem:[#allocation5 + $0xe4] sm:$0xf]
        %v659 = vld [vmem:[#allocation5 + $0xe8] sm:$0xf]
        %v660 = vld [vmem:[#allocation5 + $0xec] sm:$0xf]
        %v661 = vld [vmem:[#allocation5 + $0xf0] sm:$0xf]
        %v662 = vld [vmem:[#allocation5 + $0xf4] sm:$0xf]
        %v663 = vld [vmem:[#allocation5 + $0xf8] sm:$0xf]
        %v664 = vld [vmem:[#allocation5 + $0xfc] sm:$0xf]
        %v665 = vld [vmem:[#allocation5 + $0x100] sm:$0xf]
        %v666 = vld [vmem:[#allocation5 + $0x104] sm:$0xf]
        %v667 = vld [vmem:[#allocation5 + $0x108] sm:$0xf]
        %v668 = vld [vmem:[#allocation5 + $0x10c] sm:$0xf]
        %v669 = vld [vmem:[#allocation5 + $0x110] sm:$0xf]
        %v670 = vld [vmem:[#allocation5 + $0x114] sm:$0xf]
        %v671 = vld [vmem:[#allocation5 + $0x118] sm:$0xf]
        %v672 = vld [vmem:[#allocation5 + $0x11c] sm:$0xf]
        %v673 = vld [vmem:[#allocation5 + $0x120] sm:$0xf]
        %v674 = vld [vmem:[#allocation5 + $0x124] sm:$0xf]
        %v675 = vld [vmem:[#allocation5 + $0x128] sm:$0xf]
        %v676 = vld [vmem:[#allocation5 + $0x12c] sm:$0xf]
        %v677 = vld [vmem:[#allocation5 + $0x130] sm:$0xf]
        %v678 = vld [vmem:[#allocation5 + $0x134] sm:$0xf]
        %v679 = vld [vmem:[#allocation5 + $0x138] sm:$0xf]
        %v680 = vld [vmem:[#allocation5 + $0x13c] sm:$0xf]
        %v761 = vunpack.c.l.b16 %v601
        %v762 = vunpack.c.l.b16 %v602
        %v763 = vunpack.c.l.b16 %v603
        %v764 = vunpack.c.l.b16 %v604
        %v765 = vunpack.c.l.b16 %v605
        %v766 = vunpack.c.l.b16 %v606
        %v767 = vunpack.c.l.b16 %v607
        %v768 = vunpack.c.l.b16 %v608
        %v769 = vunpack.c.l.b16 %v609
        %v770 = vunpack.c.l.b16 %v610
        %v771 = vunpack.c.l.b16 %v611
        %v772 = vunpack.c.l.b16 %v612
        %v773 = vunpack.c.l.b16 %v613
        %v774 = vunpack.c.l.b16 %v614
        %v775 = vunpack.c.l.b16 %v615
        %v776 = vunpack.c.l.b16 %v616
        %v777 = vunpack.c.l.b16 %v617
        %v778 = vunpack.c.l.b16 %v618
        %v779 = vunpack.c.l.b16 %v619
        %v780 = vunpack.c.l.b16 %v620
        %v781 = vunpack.c.l.b16 %v621
        %v782 = vunpack.c.l.b16 %v622
        %v783 = vunpack.c.l.b16 %v623
        %v784 = vunpack.c.l.b16 %v624
        %v785 = vunpack.c.l.b16 %v625
        %v786 = vunpack.c.l.b16 %v626
        %v787 = vunpack.c.l.b16 %v627
        %v788 = vunpack.c.l.b16 %v628
        %v789 = vunpack.c.l.b16 %v629
        %v790 = vunpack.c.l.b16 %v630
        %v791 = vunpack.c.l.b16 %v631
        %v792 = vunpack.c.l.b16 %v632
        %v793 = vunpack.c.l.b16 %v633
        %v794 = vunpack.c.l.b16 %v634
        %v795 = vunpack.c.l.b16 %v635
        %v796 = vunpack.c.l.b16 %v636
        %v797 = vunpack.c.l.b16 %v637
        %v798 = vunpack.c.l.b16 %v638
        %v799 = vunpack.c.l.b16 %v639
        %v800 = vunpack.c.l.b16 %v640
        %v801 = vunpack.c.l.b16 %v641
        %v802 = vunpack.c.l.b16 %v642
        %v803 = vunpack.c.l.b16 %v643
        %v804 = vunpack.c.l.b16 %v644
        %v805 = vunpack.c.l.b16 %v645
        %v806 = vunpack.c.l.b16 %v646
        %v807 = vunpack.c.l.b16 %v647
        %v808 = vunpack.c.l.b16 %v648
        %v809 = vunpack.c.l.b16 %v649
        %v810 = vunpack.c.l.b16 %v650
        %v811 = vunpack.c.l.b16 %v651
        %v812 = vunpack.c.l.b16 %v652
        %v813 = vunpack.c.l.b16 %v653
        %v814 = vunpack.c.l.b16 %v654
        %v815 = vunpack.c.l.b16 %v655
        %v816 = vunpack.c.l.b16 %v656
        %v817 = vunpack.c.l.b16 %v657
        %v818 = vunpack.c.l.b16 %v658
        %v819 = vunpack.c.l.b16 %v659
        %v820 = vunpack.c.l.b16 %v660
        %v821 = vunpack.c.l.b16 %v661
        %v822 = vunpack.c.l.b16 %v662
        %v823 = vunpack.c.l.b16 %v663
        %v824 = vunpack.c.l.b16 %v664
        %v825 = vunpack.c.l.b16 %v665
        %v826 = vunpack.c.l.b16 %v666
        %v827 = vunpack.c.l.b16 %v667
        %v828 = vunpack.c.l.b16 %v668
        %v829 = vunpack.c.l.b16 %v669
        %v830 = vunpack.c.l.b16 %v670
        %v831 = vunpack.c.l.b16 %v671
        %v832 = vunpack.c.l.b16 %v672
        %v833 = vunpack.c.l.b16 %v673
        %v834 = vunpack.c.l.b16 %v674
        %v835 = vunpack.c.l.b16 %v675
        %v836 = vunpack.c.l.b16 %v676
        %v837 = vunpack.c.l.b16 %v677
        %v838 = vunpack.c.l.b16 %v678
        %v839 = vunpack.c.l.b16 %v679
        %v840 = vunpack.c.l.b16 %v680
        %v841 = vpack.c.b16 %v762, %v761
        %v842 = vpack.c.b16 %v764, %v763
        %v843 = vpack.c.b16 %v766, %v765
        %v844 = vpack.c.b16 %v768, %v767
        %v845 = vpack.c.b16 %v770, %v769
        %v846 = vpack.c.b16 %v772, %v771
        %v847 = vpack.c.b16 %v774, %v773
        %v848 = vpack.c.b16 %v776, %v775
        %v849 = vpack.c.b16 %v778, %v777
        %v850 = vpack.c.b16 %v780, %v779
        %v851 = vpack.c.b16 %v782, %v781
        %v852 = vpack.c.b16 %v784, %v783
        %v853 = vpack.c.b16 %v786, %v785
        %v854 = vpack.c.b16 %v788, %v787
        %v855 = vpack.c.b16 %v790, %v789
        %v856 = vpack.c.b16 %v792, %v791
        %v857 = vpack.c.b16 %v794, %v793
        %v858 = vpack.c.b16 %v796, %v795
        %v859 = vpack.c.b16 %v798, %v797
        %v860 = vpack.c.b16 %v800, %v799
        %v861 = vpack.c.b16 %v802, %v801
        %v862 = vpack.c.b16 %v804, %v803
        %v863 = vpack.c.b16 %v806, %v805
        %v864 = vpack.c.b16 %v808, %v807
        %v865 = vpack.c.b16 %v810, %v809
        %v866 = vpack.c.b16 %v812, %v811
        %v867 = vpack.c.b16 %v814, %v813
        %v868 = vpack.c.b16 %v816, %v815
        %v869 = vpack.c.b16 %v818, %v817
        %v870 = vpack.c.b16 %v820, %v819
        %v871 = vpack.c.b16 %v822, %v821
        %v872 = vpack.c.b16 %v824, %v823
        %v873 = vpack.c.b16 %v826, %v825
        %v874 = vpack.c.b16 %v828, %v827
        %v875 = vpack.c.b16 %v830, %v829
        %v876 = vpack.c.b16 %v832, %v831
        %v877 = vpack.c.b16 %v834, %v833
        %v878 = vpack.c.b16 %v836, %v835
        %v879 = vpack.c.b16 %v838, %v837
        %v880 = vpack.c.b16 %v840, %v839
        %v889 = vunpack.c.l.b16 %v593
        %v890 = vunpack.c.l.b16 %v594
        %v891 = vunpack.c.l.b16 %v595
        %v892 = vunpack.c.l.b16 %v596
        %v893 = vunpack.c.l.b16 %v597
        %v894 = vunpack.c.l.b16 %v598
        %v895 = vunpack.c.l.b16 %v599
        %v896 = vunpack.c.l.b16 %v600
        %v897 = vpack.c.b16 %v890, %v889
        %v898 = vpack.c.b16 %v892, %v891
        %v899 = vpack.c.b16 %v894, %v893
        %v900 = vpack.c.b16 %v896, %v895
        %vm905 = vcmask 523264
        %v907 = vsel %vm905, %v841, 0
        %v910 = vsel %vm905, %v842, 0
        %v913 = vsel %vm905, %v843, 0
        %v916 = vsel %vm905, %v844, 0
        %v919 = vsel %vm905, %v845, 0
        %v922 = vsel %vm905, %v846, 0
        %v925 = vsel %vm905, %v847, 0
        %v928 = vsel %vm905, %v848, 0
        %v931 = vsel %vm905, %v849, 0
        %v934 = vsel %vm905, %v850, 0
        %v937 = vsel %vm905, %v851, 0
        %v940 = vsel %vm905, %v852, 0
        %v943 = vsel %vm905, %v853, 0
        %v946 = vsel %vm905, %v854, 0
        %v949 = vsel %vm905, %v855, 0
        %v952 = vsel %vm905, %v856, 0
        %v955 = vsel %vm905, %v857, 0
        %v958 = vsel %vm905, %v858, 0
        %v961 = vsel %vm905, %v859, 0
        %v964 = vsel %vm905, %v860, 0
        %v967 = vsel %vm905, %v861, 0
        %v970 = vsel %vm905, %v862, 0
        %v973 = vsel %vm905, %v863, 0
        %v976 = vsel %vm905, %v864, 0
        %v979 = vsel %vm905, %v865, 0
        %v982 = vsel %vm905, %v866, 0
        %v985 = vsel %vm905, %v867, 0
        %v988 = vsel %vm905, %v868, 0
        %v991 = vsel %vm905, %v869, 0
        %v994 = vsel %vm905, %v870, 0
        %v997 = vsel %vm905, %v871, 0
        %v1000 = vsel %vm905, %v872, 0
        %v1003 = vsel %vm905, %v873, 0
        %v1006 = vsel %vm905, %v874, 0
        %v1009 = vsel %vm905, %v875, 0
        %v1012 = vsel %vm905, %v876, 0
        %v1015 = vsel %vm905, %v877, 0
        %v1018 = vsel %vm905, %v878, 0
        %v1021 = vsel %vm905, %v879, 0
        %v1024 = vsel %vm905, %v880, 0
        %1026 = vmatprep.subr.bf16.mxu0 0
        %1027 = vmatpush1.bf16.msra.mxu0 %v897
        %1028 = vmatprep.subr.bf16.mxu0 0
        %1029 = vmatpush1.bf16.msra.mxu0 %v898
        %1030 = vmatprep.subr.bf16.mxu0 0
        %1031 = vmatpush1.bf16.msra.mxu0 %v899
        %1032 = vmatprep.subr.bf16.mxu0 0
        %1033 = vmatpush1.bf16.msra.mxu0 %v900
        %1034 = vmatprep.subr.bf16.mxu0 0
        %1035 = vmatpush1.bf16.msra.mxu0 0
        %1036 = vmatprep.subr.bf16.mxu0 0
        %1037 = vmatpush1.bf16.msra.mxu0 0
        %1038 = vmatprep.subr.bf16.mxu0 0
        %1039 = vmatpush1.bf16.msra.mxu0 0
        %1040 = vmatprep.subr.bf16.mxu0 0
        %1041 = vmatpush1.bf16.msra.mxu0 0
        %1042 = vmatprep.subr.bf16.mxu0 0
        %1043 = vmatpush1.bf16.msra.mxu0 0
        %1044 = vmatprep.subr.bf16.mxu0 0
        %1045 = vmatpush1.bf16.msra.mxu0 0
        %1046 = vmatprep.subr.bf16.mxu0 0
        %1047 = vmatpush1.bf16.msra.mxu0 0
        %1048 = vmatprep.subr.bf16.mxu0 0
        %1049 = vmatpush1.bf16.msra.mxu0 0
        %1050 = vmatprep.subr.bf16.mxu0 0
        %1051 = vmatpush1.bf16.msra.mxu0 0
        %1052 = vmatprep.subr.bf16.mxu0 0
        %1053 = vmatpush1.bf16.msra.mxu0 0
        %1054 = vmatprep.subr.bf16.mxu0 0
        %1055 = vmatpush1.bf16.msra.mxu0 0
        %1056 = vmatprep.subr.bf16.mxu0 0
        %1057 = vmatpush1.bf16.msra.mxu0 0
        %1058 = vmatprep.mubr.bf16.mxu0 0
        %1059 = vmatmul.mubr.bf16.gmra.mrb[0].mxu0 %v907
        %v1060 = vpop.f32.mrb[0].mxu0
        %v1061 = vadd.f32 0.0, %v1060
        %v1062 = vpop.f32.mrb[0].mxu0
        %v1063 = vpop.f32.mrb[0].mxu0
        %v1064 = vadd.f32 0.0, %v1063
        %v1065 = vpop.f32.mrb[0].mxu0
        %1066 = vmatprep.mubr.bf16.mxu0 0
        %1067 = vmatmul.mubr.bf16.gmra.mrb[0].mxu0 %v910
        %v1068 = vpop.f32.mrb[0].mxu0
        %v1069 = vadd.f32 0.0, %v1068
        %v1070 = vpop.f32.mrb[0].mxu0
        %v1071 = vpop.f32.mrb[0].mxu0
        %v1072 = vadd.f32 0.0, %v1071
        %v1073 = vpop.f32.mrb[0].mxu0
        %1074 = vmatprep.mubr.bf16.mxu0 0
        %1075 = vmatmul.mubr.bf16.gmra.mrb[0].mxu0 %v913
        %v1076 = vpop.f32.mrb[0].mxu0
        %v1077 = vadd.f32 0.0, %v1076
        %v1078 = vpop.f32.mrb[0].mxu0
        %v1079 = vpop.f32.mrb[0].mxu0
        %v1080 = vadd.f32 0.0, %v1079
        %v1081 = vpop.f32.mrb[0].mxu0
        %1082 = vmatprep.mubr.bf16.mxu0 0
        %1083 = vmatmul.mubr.bf16.gmra.mrb[0].mxu0 %v916
        %v1084 = vpop.f32.mrb[0].mxu0
        %v1085 = vadd.f32 0.0, %v1084
        %v1086 = vpop.f32.mrb[0].mxu0
        %v1087 = vpop.f32.mrb[0].mxu0
        %v1088 = vadd.f32 0.0, %v1087
        %v1089 = vpop.f32.mrb[0].mxu0
        %1090 = vmatprep.mubr.bf16.mxu0 0
        %1091 = vmatmul.mubr.bf16.gmra.mrb[0].mxu0 %v919
        %v1092 = vpop.f32.mrb[0].mxu0
        %v1093 = vadd.f32 0.0, %v1092
        %v1094 = vpop.f32.mrb[0].mxu0
        %v1095 = vpop.f32.mrb[0].mxu0
        %v1096 = vadd.f32 0.0, %v1095
        %v1097 = vpop.f32.mrb[0].mxu0
        %1098 = vmatprep.mubr.bf16.mxu0 0
        %1099 = vmatmul.mubr.bf16.gmra.mrb[0].mxu0 %v922
        %v1100 = vpop.f32.mrb[0].mxu0
        %v1101 = vadd.f32 0.0, %v1100
        %v1102 = vpop.f32.mrb[0].mxu0
        %v1103 = vpop.f32.mrb[0].mxu0
        %v1104 = vadd.f32 0.0, %v1103
        %v1105 = vpop.f32.mrb[0].mxu0
        %1106 = vmatprep.mubr.bf16.mxu0 0
        %1107 = vmatmul.mubr.bf16.gmra.mrb[0].mxu0 %v925
        %v1108 = vpop.f32.mrb[0].mxu0
        %v1109 = vadd.f32 0.0, %v1108
        %v1110 = vpop.f32.mrb[0].mxu0
        %v1111 = vpop.f32.mrb[0].mxu0
        %v1112 = vadd.f32 0.0, %v1111
        %v1113 = vpop.f32.mrb[0].mxu0
        %1114 = vmatprep.mubr.bf16.mxu0 0
        %1115 = vmatmul.mubr.bf16.gmra.mrb[0].mxu0 %v928
        %v1116 = vpop.f32.mrb[0].mxu0
        %v1117 = vadd.f32 0.0, %v1116
        %v1118 = vpop.f32.mrb[0].mxu0
        %v1119 = vpop.f32.mrb[0].mxu0
        %v1120 = vadd.f32 0.0, %v1119
        %v1121 = vpop.f32.mrb[0].mxu0
        %1122 = vmatprep.mubr.bf16.mxu0 0
        %1123 = vmatmul.mubr.bf16.gmra.mrb[0].mxu0 %v931
        %v1124 = vpop.f32.mrb[0].mxu0
        %v1125 = vadd.f32 0.0, %v1124
        %v1126 = vpop.f32.mrb[0].mxu0
        %v1127 = vpop.f32.mrb[0].mxu0
        %v1128 = vadd.f32 0.0, %v1127
        %v1129 = vpop.f32.mrb[0].mxu0
        %1130 = vmatprep.mubr.bf16.mxu0 0
        %1131 = vmatmul.mubr.bf16.gmra.mrb[0].mxu0 %v934
        %v1132 = vpop.f32.mrb[0].mxu0
        %v1133 = vadd.f32 0.0, %v1132
        %v1134 = vpop.f32.mrb[0].mxu0
        %v1135 = vpop.f32.mrb[0].mxu0
        %v1136 = vadd.f32 0.0, %v1135
        %v1137 = vpop.f32.mrb[0].mxu0
        %1138 = vmatprep.mubr.bf16.mxu0 0
        %1139 = vmatmul.mubr.bf16.gmra.mrb[0].mxu0 %v937
        %v1140 = vpop.f32.mrb[0].mxu0
        %v1141 = vadd.f32 0.0, %v1140
        %v1142 = vpop.f32.mrb[0].mxu0
        %v1143 = vpop.f32.mrb[0].mxu0
        %v1144 = vadd.f32 0.0, %v1143
        %v1145 = vpop.f32.mrb[0].mxu0
        %1146 = vmatprep.mubr.bf16.mxu0 0
        %1147 = vmatmul.mubr.bf16.gmra.mrb[0].mxu0 %v940
        %v1148 = vpop.f32.mrb[0].mxu0
        %v1149 = vadd.f32 0.0, %v1148
        %v1150 = vpop.f32.mrb[0].mxu0
        %v1151 = vpop.f32.mrb[0].mxu0
        %v1152 = vadd.f32 0.0, %v1151
        %v1153 = vpop.f32.mrb[0].mxu0
        %1154 = vmatprep.mubr.bf16.mxu0 0
        %1155 = vmatmul.mubr.bf16.gmra.mrb[0].mxu0 %v943
        %v1156 = vpop.f32.mrb[0].mxu0
        %v1157 = vadd.f32 0.0, %v1156
        %v1158 = vpop.f32.mrb[0].mxu0
        %v1159 = vpop.f32.mrb[0].mxu0
        %v1160 = vadd.f32 0.0, %v1159
        %v1161 = vpop.f32.mrb[0].mxu0
        %1162 = vmatprep.mubr.bf16.mxu0 0
        %1163 = vmatmul.mubr.bf16.gmra.mrb[0].mxu0 %v946
        %v1164 = vpop.f32.mrb[0].mxu0
        %v1165 = vadd.f32 0.0, %v1164
        %v1166 = vpop.f32.mrb[0].mxu0
        %v1167 = vpop.f32.mrb[0].mxu0
        %v1168 = vadd.f32 0.0, %v1167
        %v1169 = vpop.f32.mrb[0].mxu0
        %1170 = vmatprep.mubr.bf16.mxu0 0
        %1171 = vmatmul.mubr.bf16.gmra.mrb[0].mxu0 %v949
        %v1172 = vpop.f32.mrb[0].mxu0
        %v1173 = vadd.f32 0.0, %v1172
        %v1174 = vpop.f32.mrb[0].mxu0
        %v1175 = vpop.f32.mrb[0].mxu0
        %v1176 = vadd.f32 0.0, %v1175
        %v1177 = vpop.f32.mrb[0].mxu0
        %1178 = vmatprep.mubr.bf16.mxu0 0
        %1179 = vmatmul.mubr.bf16.gmra.mrb[0].mxu0 %v952
        %v1180 = vpop.f32.mrb[0].mxu0
        %v1181 = vadd.f32 0.0, %v1180
        %v1182 = vpop.f32.mrb[0].mxu0
        %v1183 = vpop.f32.mrb[0].mxu0
        %v1184 = vadd.f32 0.0, %v1183
        %v1185 = vpop.f32.mrb[0].mxu0
        %1186 = vmatprep.mubr.bf16.mxu0 0
        %1187 = vmatmul.mubr.bf16.gmra.mrb[0].mxu0 %v955
        %v1188 = vpop.f32.mrb[0].mxu0
        %v1189 = vadd.f32 0.0, %v1188
        %v1190 = vpop.f32.mrb[0].mxu0
        %v1191 = vpop.f32.mrb[0].mxu0
        %v1192 = vadd.f32 0.0, %v1191
        %v1193 = vpop.f32.mrb[0].mxu0
        %1194 = vmatprep.mubr.bf16.mxu0 0
        %1195 = vmatmul.mubr.bf16.gmra.mrb[0].mxu0 %v958
        %v1196 = vpop.f32.mrb[0].mxu0
        %v1197 = vadd.f32 0.0, %v1196
        %v1198 = vpop.f32.mrb[0].mxu0
        %v1199 = vpop.f32.mrb[0].mxu0
        %v1200 = vadd.f32 0.0, %v1199
        %v1201 = vpop.f32.mrb[0].mxu0
        %1202 = vmatprep.mubr.bf16.mxu0 0
        %1203 = vmatmul.mubr.bf16.gmra.mrb[0].mxu0 %v961
        %v1204 = vpop.f32.mrb[0].mxu0
        %v1205 = vadd.f32 0.0, %v1204
        %v1206 = vpop.f32.mrb[0].mxu0
        %v1207 = vpop.f32.mrb[0].mxu0
        %v1208 = vadd.f32 0.0, %v1207
        %v1209 = vpop.f32.mrb[0].mxu0
        %1210 = vmatprep.mubr.bf16.mxu0 0
        %1211 = vmatmul.mubr.bf16.gmra.mrb[0].mxu0 %v964
        %v1212 = vpop.f32.mrb[0].mxu0
        %v1213 = vadd.f32 0.0, %v1212
        %v1214 = vpop.f32.mrb[0].mxu0
        %v1215 = vpop.f32.mrb[0].mxu0
        %v1216 = vadd.f32 0.0, %v1215
        %v1217 = vpop.f32.mrb[0].mxu0
        %1218 = vmatprep.mubr.bf16.mxu0 0
        %1219 = vmatmul.mubr.bf16.gmra.mrb[0].mxu0 %v967
        %v1220 = vpop.f32.mrb[0].mxu0
        %v1221 = vadd.f32 0.0, %v1220
        %v1222 = vpop.f32.mrb[0].mxu0
        %v1223 = vpop.f32.mrb[0].mxu0
        %v1224 = vadd.f32 0.0, %v1223
        %v1225 = vpop.f32.mrb[0].mxu0
        %1226 = vmatprep.mubr.bf16.mxu0 0
        %1227 = vmatmul.mubr.bf16.gmra.mrb[0].mxu0 %v970
        %v1228 = vpop.f32.mrb[0].mxu0
        %v1229 = vadd.f32 0.0, %v1228
        %v1230 = vpop.f32.mrb[0].mxu0
        %v1231 = vpop.f32.mrb[0].mxu0
        %v1232 = vadd.f32 0.0, %v1231
        %v1233 = vpop.f32.mrb[0].mxu0
        %1234 = vmatprep.mubr.bf16.mxu0 0
        %1235 = vmatmul.mubr.bf16.gmra.mrb[0].mxu0 %v973
        %v1236 = vpop.f32.mrb[0].mxu0
        %v1237 = vadd.f32 0.0, %v1236
        %v1238 = vpop.f32.mrb[0].mxu0
        %v1239 = vpop.f32.mrb[0].mxu0
        %v1240 = vadd.f32 0.0, %v1239
        %v1241 = vpop.f32.mrb[0].mxu0
        %1242 = vmatprep.mubr.bf16.mxu0 0
        %1243 = vmatmul.mubr.bf16.gmra.mrb[0].mxu0 %v976
        %v1244 = vpop.f32.mrb[0].mxu0
        %v1245 = vadd.f32 0.0, %v1244
        %v1246 = vpop.f32.mrb[0].mxu0
        %v1247 = vpop.f32.mrb[0].mxu0
        %v1248 = vadd.f32 0.0, %v1247
        %v1249 = vpop.f32.mrb[0].mxu0
        %1250 = vmatprep.mubr.bf16.mxu0 0
        %1251 = vmatmul.mubr.bf16.gmra.mrb[0].mxu0 %v979
        %v1252 = vpop.f32.mrb[0].mxu0
        %v1253 = vadd.f32 0.0, %v1252
        %v1254 = vpop.f32.mrb[0].mxu0
        %v1255 = vpop.f32.mrb[0].mxu0
        %v1256 = vadd.f32 0.0, %v1255
        %v1257 = vpop.f32.mrb[0].mxu0
        %1258 = vmatprep.mubr.bf16.mxu0 0
        %1259 = vmatmul.mubr.bf16.gmra.mrb[0].mxu0 %v982
        %v1260 = vpop.f32.mrb[0].mxu0
        %v1261 = vadd.f32 0.0, %v1260
        %v1262 = vpop.f32.mrb[0].mxu0
        %v1263 = vpop.f32.mrb[0].mxu0
        %v1264 = vadd.f32 0.0, %v1263
        %v1265 = vpop.f32.mrb[0].mxu0
        %1266 = vmatprep.mubr.bf16.mxu0 0
        %1267 = vmatmul.mubr.bf16.gmra.mrb[0].mxu0 %v985
        %v1268 = vpop.f32.mrb[0].mxu0
        %v1269 = vadd.f32 0.0, %v1268
        %v1270 = vpop.f32.mrb[0].mxu0
        %v1271 = vpop.f32.mrb[0].mxu0
        %v1272 = vadd.f32 0.0, %v1271
        %v1273 = vpop.f32.mrb[0].mxu0
        %1274 = vmatprep.mubr.bf16.mxu0 0
        %1275 = vmatmul.mubr.bf16.gmra.mrb[0].mxu0 %v988
        %v1276 = vpop.f32.mrb[0].mxu0
        %v1277 = vadd.f32 0.0, %v1276
        %v1278 = vpop.f32.mrb[0].mxu0
        %v1279 = vpop.f32.mrb[0].mxu0
        %v1280 = vadd.f32 0.0, %v1279
        %v1281 = vpop.f32.mrb[0].mxu0
        %1282 = vmatprep.mubr.bf16.mxu0 0
        %1283 = vmatmul.mubr.bf16.gmra.mrb[0].mxu0 %v991
        %v1284 = vpop.f32.mrb[0].mxu0
        %v1285 = vadd.f32 0.0, %v1284
        %v1286 = vpop.f32.mrb[0].mxu0
        %v1287 = vpop.f32.mrb[0].mxu0
        %v1288 = vadd.f32 0.0, %v1287
        %v1289 = vpop.f32.mrb[0].mxu0
        %1290 = vmatprep.mubr.bf16.mxu0 0
        %1291 = vmatmul.mubr.bf16.gmra.mrb[0].mxu0 %v994
        %v1292 = vpop.f32.mrb[0].mxu0
        %v1293 = vadd.f32 0.0, %v1292
        %v1294 = vpop.f32.mrb[0].mxu0
        %v1295 = vpop.f32.mrb[0].mxu0
        %v1296 = vadd.f32 0.0, %v1295
        %v1297 = vpop.f32.mrb[0].mxu0
        %1298 = vmatprep.mubr.bf16.mxu0 0
        %1299 = vmatmul.mubr.bf16.gmra.mrb[0].mxu0 %v997
        %v1300 = vpop.f32.mrb[0].mxu0
        %v1301 = vadd.f32 0.0, %v1300
        %v1302 = vpop.f32.mrb[0].mxu0
        %v1303 = vpop.f32.mrb[0].mxu0
        %v1304 = vadd.f32 0.0, %v1303
        %v1305 = vpop.f32.mrb[0].mxu0
        %1306 = vmatprep.mubr.bf16.mxu0 0
        %1307 = vmatmul.mubr.bf16.gmra.mrb[0].mxu0 %v1000
        %v1308 = vpop.f32.mrb[0].mxu0
        %v1309 = vadd.f32 0.0, %v1308
        %v1310 = vpop.f32.mrb[0].mxu0
        %v1311 = vpop.f32.mrb[0].mxu0
        %v1312 = vadd.f32 0.0, %v1311
        %v1313 = vpop.f32.mrb[0].mxu0
        %1314 = vmatprep.mubr.bf16.mxu0 0
        %1315 = vmatmul.mubr.bf16.gmra.mrb[0].mxu0 %v1003
        %v1316 = vpop.f32.mrb[0].mxu0
        %v1317 = vadd.f32 0.0, %v1316
        %v1318 = vpop.f32.mrb[0].mxu0
        %v1319 = vpop.f32.mrb[0].mxu0
        %v1320 = vadd.f32 0.0, %v1319
        %v1321 = vpop.f32.mrb[0].mxu0
        %1322 = vmatprep.mubr.bf16.mxu0 0
        %1323 = vmatmul.mubr.bf16.gmra.mrb[0].mxu0 %v1006
        %v1324 = vpop.f32.mrb[0].mxu0
        %v1325 = vadd.f32 0.0, %v1324
        %v1326 = vpop.f32.mrb[0].mxu0
        %v1327 = vpop.f32.mrb[0].mxu0
        %v1328 = vadd.f32 0.0, %v1327
        %v1329 = vpop.f32.mrb[0].mxu0
        %1330 = vmatprep.mubr.bf16.mxu0 0
        %1331 = vmatmul.mubr.bf16.gmra.mrb[0].mxu0 %v1009
        %v1332 = vpop.f32.mrb[0].mxu0
        %v1333 = vadd.f32 0.0, %v1332
        %v1334 = vpop.f32.mrb[0].mxu0
        %v1335 = vpop.f32.mrb[0].mxu0
        %v1336 = vadd.f32 0.0, %v1335
        %v1337 = vpop.f32.mrb[0].mxu0
        %1338 = vmatprep.mubr.bf16.mxu0 0
        %1339 = vmatmul.mubr.bf16.gmra.mrb[0].mxu0 %v1012
        %v1340 = vpop.f32.mrb[0].mxu0
        %v1341 = vadd.f32 0.0, %v1340
        %v1342 = vpop.f32.mrb[0].mxu0
        %v1343 = vpop.f32.mrb[0].mxu0
        %v1344 = vadd.f32 0.0, %v1343
        %v1345 = vpop.f32.mrb[0].mxu0
        %1346 = vmatprep.mubr.bf16.mxu0 0
        %1347 = vmatmul.mubr.bf16.gmra.mrb[0].mxu0 %v1015
        %v1348 = vpop.f32.mrb[0].mxu0
        %v1349 = vadd.f32 0.0, %v1348
        %v1350 = vpop.f32.mrb[0].mxu0
        %v1351 = vpop.f32.mrb[0].mxu0
        %v1352 = vadd.f32 0.0, %v1351
        %v1353 = vpop.f32.mrb[0].mxu0
        %1354 = vmatprep.mubr.bf16.mxu0 0
        %1355 = vmatmul.mubr.bf16.gmra.mrb[0].mxu0 %v1018
        %v1356 = vpop.f32.mrb[0].mxu0
        %v1357 = vadd.f32 0.0, %v1356
        %v1358 = vpop.f32.mrb[0].mxu0
        %v1359 = vpop.f32.mrb[0].mxu0
        %v1360 = vadd.f32 0.0, %v1359
        %v1361 = vpop.f32.mrb[0].mxu0
        %1362 = vmatprep.mubr.bf16.mxu0 0
        %1363 = vmatmul.mubr.bf16.gmra.mrb[0].mxu0 %v1021
        %v1364 = vpop.f32.mrb[0].mxu0
        %v1365 = vadd.f32 0.0, %v1364
        %v1366 = vpop.f32.mrb[0].mxu0
        %v1367 = vpop.f32.mrb[0].mxu0
        %v1368 = vadd.f32 0.0, %v1367
        %v1369 = vpop.f32.mrb[0].mxu0
        %1370 = vmatprep.mubr.bf16.mxu0 0
        %1371 = vmatmul.mubr.bf16.gmra.mrb[0].mxu0 %v1024
        %v1372 = vpop.f32.mrb[0].mxu0
        %v1373 = vadd.f32 0.0, %v1372
        %v1374 = vpop.f32.mrb[0].mxu0
        %v1375 = vpop.f32.mrb[0].mxu0
        %v1376 = vadd.f32 0.0, %v1375
        %v1377 = vpop.f32.mrb[0].mxu0
        %1378 = vdwg.mxu0
        %v1379 = vld [vmem:[#allocation14] sm:$0xff]
        %v1380 = vld [vmem:[#allocation14 + $0x8] sm:$0xff]
        %v1381 = vld [vmem:[#allocation14 + $0x10] sm:$0xff]
        %v1382 = vld [vmem:[#allocation14 + $0x18] sm:$0xff]
        %v1383 = vld [vmem:[#allocation14 + $0x20] sm:$0xff]
        %v1384 = vld [vmem:[#allocation14 + $0x28] sm:$0xff]
        %v1385 = vld [vmem:[#allocation14 + $0x30] sm:$0xff]
        %v1386 = vld [vmem:[#allocation14 + $0x38] sm:$0xff]
        %v1387 = vadd.f32 %v1061, %v1379
        %v1388 = vadd.f32 %v1064, %v1380
        %v1389 = vadd.f32 %v1069, %v1381
        %v1390 = vadd.f32 %v1072, %v1382
        %v1391 = vadd.f32 %v1077, %v1383
        %v1392 = vadd.f32 %v1080, %v1384
        %v1393 = vadd.f32 %v1085, %v1385
        %v1394 = vadd.f32 %v1088, %v1386
        %v1395 = vmax.f32 %v1387, 0.0
        %v1396 = vmax.f32 %v1388, 0.0
        %v1397 = vmax.f32 %v1389, 0.0
        %v1398 = vmax.f32 %v1390, 0.0
        %v1399 = vmax.f32 %v1391, 0.0
        %v1400 = vmax.f32 %v1392, 0.0
        %v1401 = vmax.f32 %v1393, 0.0
        %v1402 = vmax.f32 %v1394, 0.0
        %v1403 = vpack.c.bf16 %v1096, %v1093
        %v1404 = vpack.c.bf16 %v1104, %v1101
        %v1405 = vpack.c.bf16 %v1112, %v1109
        %v1406 = vpack.c.bf16 %v1120, %v1117
        %v1407 = vld [vmem:[#allocation7] sm:$0xf]
        %v1408 = vld [vmem:[#allocation7 + $0x4] sm:$0xf]
        %v1409 = vld [vmem:[#allocation7 + $0x8] sm:$0xf]
        %v1410 = vld [vmem:[#allocation7 + $0xc] sm:$0xf]
        %v1411 = vld [vmem:[#allocation7 + $0x10] sm:$0xf]
        %v1412 = vld [vmem:[#allocation7 + $0x14] sm:$0xf]
        %v1413 = vld [vmem:[#allocation7 + $0x18] sm:$0xf]
        %v1414 = vld [vmem:[#allocation7 + $0x1c] sm:$0xf]
        %v1415 = vld [vmem:[#allocation7 + $0x20] sm:$0xf]
        %v1416 = vld [vmem:[#allocation7 + $0x24] sm:$0xf]
        %v1417 = vld [vmem:[#allocation7 + $0x28] sm:$0xf]
        %v1418 = vld [vmem:[#allocation7 + $0x2c] sm:$0xf]
        %v1419 = vld [vmem:[#allocation7 + $0x30] sm:$0xf]
        %v1420 = vld [vmem:[#allocation7 + $0x34] sm:$0xf]
        %v1421 = vld [vmem:[#allocation7 + $0x38] sm:$0xf]
        %v1422 = vld [vmem:[#allocation7 + $0x3c] sm:$0xf]
        %v1423 = vpack.c.bf16 %v1128, %v1125
        %v1424 = vpack.c.bf16 %v1136, %v1133
        %v1425 = vpack.c.bf16 %v1144, %v1141
        %v1426 = vpack.c.bf16 %v1152, %v1149
        %s1427 = scalar_lea.vmem [#allocation7], 64
        %v1428 = vld [vmem:[%s1427] sm:$0xf]
        %v1429 = vld [vmem:[%s1427 + $0x4] sm:$0xf]
        %v1430 = vld [vmem:[%s1427 + $0x8] sm:$0xf]
        %v1431 = vld [vmem:[%s1427 + $0xc] sm:$0xf]
        %v1432 = vld [vmem:[%s1427 + $0x10] sm:$0xf]
        %v1433 = vld [vmem:[%s1427 + $0x14] sm:$0xf]
        %v1434 = vld [vmem:[%s1427 + $0x18] sm:$0xf]
        %v1435 = vld [vmem:[%s1427 + $0x1c] sm:$0xf]
        %v1436 = vld [vmem:[%s1427 + $0x20] sm:$0xf]
        %v1437 = vld [vmem:[%s1427 + $0x24] sm:$0xf]
        %v1438 = vld [vmem:[%s1427 + $0x28] sm:$0xf]
        %v1439 = vld [vmem:[%s1427 + $0x2c] sm:$0xf]
        %v1440 = vld [vmem:[%s1427 + $0x30] sm:$0xf]
        %v1441 = vld [vmem:[%s1427 + $0x34] sm:$0xf]
        %v1442 = vld [vmem:[%s1427 + $0x38] sm:$0xf]
        %v1443 = vld [vmem:[%s1427 + $0x3c] sm:$0xf]
        %v1460 = vunpack.c.l.b16 %v1428
        %v1461 = vunpack.c.l.b16 %v1429
        %v1462 = vunpack.c.l.b16 %v1430
        %v1463 = vunpack.c.l.b16 %v1431
        %v1464 = vunpack.c.l.b16 %v1432
        %v1465 = vunpack.c.l.b16 %v1433
        %v1466 = vunpack.c.l.b16 %v1434
        %v1467 = vunpack.c.l.b16 %v1435
        %v1468 = vunpack.c.l.b16 %v1436
        %v1469 = vunpack.c.l.b16 %v1437
        %v1470 = vunpack.c.l.b16 %v1438
        %v1471 = vunpack.c.l.b16 %v1439
        %v1472 = vunpack.c.l.b16 %v1440
        %v1473 = vunpack.c.l.b16 %v1441
        %v1474 = vunpack.c.l.b16 %v1442
        %v1475 = vunpack.c.l.b16 %v1443
        %v1476 = vpack.c.b16 %v1461, %v1460
        %v1477 = vpack.c.b16 %v1463, %v1462
        %v1478 = vpack.c.b16 %v1465, %v1464
        %v1479 = vpack.c.b16 %v1467, %v1466
        %v1480 = vpack.c.b16 %v1469, %v1468
        %v1481 = vpack.c.b16 %v1471, %v1470
        %v1482 = vpack.c.b16 %v1473, %v1472
        %v1483 = vpack.c.b16 %v1475, %v1474
        %1492 = vmatprep.subr.bf16.mxu0 0
        %1493 = vmatpush1.bf16.msra.mxu0 %v1476
        %1494 = vmatprep.subr.bf16.mxu0 0
        %1495 = vmatpush1.bf16.msra.mxu0 %v1477
        %1496 = vmatprep.subr.bf16.mxu0 0
        %1497 = vmatpush1.bf16.msra.mxu0 %v1478
        %1498 = vmatprep.subr.bf16.mxu0 0
        %1499 = vmatpush1.bf16.msra.mxu0 %v1479
        %1500 = vmatprep.subr.bf16.mxu0 0
        %1501 = vmatpush1.bf16.msra.mxu0 %v1480
        %1502 = vmatprep.subr.bf16.mxu0 0
        %1503 = vmatpush1.bf16.msra.mxu0 %v1481
        %1504 = vmatprep.subr.bf16.mxu0 0
        %1505 = vmatpush1.bf16.msra.mxu0 %v1482
        %1506 = vmatprep.subr.bf16.mxu0 0
        %1507 = vmatpush1.bf16.msra.mxu0 %v1483
        %1508 = vmatprep.subr.bf16.mxu0 0
        %1509 = vmatpush1.bf16.msra.mxu0 0
        %1510 = vmatprep.subr.bf16.mxu0 0
        %1511 = vmatpush1.bf16.msra.mxu0 0
        %1512 = vmatprep.subr.bf16.mxu0 0
        %1513 = vmatpush1.bf16.msra.mxu0 0
        %1514 = vmatprep.subr.bf16.mxu0 0
        %1515 = vmatpush1.bf16.msra.mxu0 0
        %1516 = vmatprep.subr.bf16.mxu0 0
        %1517 = vmatpush1.bf16.msra.mxu0 0
        %1518 = vmatprep.subr.bf16.mxu0 0
        %1519 = vmatpush1.bf16.msra.mxu0 0
        %1520 = vmatprep.subr.bf16.mxu0 0
        %1521 = vmatpush1.bf16.msra.mxu0 0
        %1522 = vmatprep.subr.bf16.mxu0 0
        %1523 = vmatpush1.bf16.msra.mxu0 0
        %1524 = vmatprep.mubr.bf16.mxu0 0
        %1525 = vmatmul.mubr.bf16.gmra.mrb[0].mxu0 %v1423
        %v1526 = vpop.f32.mrb[0].mxu0
        %v1527 = vadd.f32 0.0, %v1526
        %v1528 = vpop.f32.mrb[0].mxu0
        %v1529 = vpop.f32.mrb[0].mxu0
        %v1530 = vadd.f32 0.0, %v1529
        %v1531 = vpop.f32.mrb[0].mxu0
        %1532 = vmatprep.mubr.bf16.mxu0 0
        %1533 = vmatmul.mubr.bf16.gmra.mrb[0].mxu0 %v1424
        %v1534 = vpop.f32.mrb[0].mxu0
        %v1535 = vadd.f32 0.0, %v1534
        %v1536 = vpop.f32.mrb[0].mxu0
        %v1537 = vpop.f32.mrb[0].mxu0
        %v1538 = vadd.f32 0.0, %v1537
        %v1539 = vpop.f32.mrb[0].mxu0
        %1540 = vmatprep.mubr.bf16.mxu0 0
        %1541 = vmatmul.mubr.bf16.gmra.mrb[0].mxu0 %v1425
        %v1542 = vpop.f32.mrb[0].mxu0
        %v1543 = vadd.f32 0.0, %v1542
        %v1544 = vpop.f32.mrb[0].mxu0
        %v1545 = vpop.f32.mrb[0].mxu0
        %v1546 = vadd.f32 0.0, %v1545
        %v1547 = vpop.f32.mrb[0].mxu0
        %1548 = vmatprep.mubr.bf16.mxu0 0
        %1549 = vmatmul.mubr.bf16.gmra.mrb[0].mxu0 %v1426
        %v1550 = vpop.f32.mrb[0].mxu0
        %v1551 = vadd.f32 0.0, %v1550
        %v1552 = vpop.f32.mrb[0].mxu0
        %v1553 = vpop.f32.mrb[0].mxu0
        %v1554 = vadd.f32 0.0, %v1553
        %v1555 = vpop.f32.mrb[0].mxu0
        %1556 = vdwg.mxu0
        %v1573 = vunpack.c.l.b16 %v1407
        %v1574 = vunpack.c.l.b16 %v1408
        %v1575 = vunpack.c.l.b16 %v1409
        %v1576 = vunpack.c.l.b16 %v1410
        %v1577 = vunpack.c.l.b16 %v1411
        %v1578 = vunpack.c.l.b16 %v1412
        %v1579 = vunpack.c.l.b16 %v1413
        %v1580 = vunpack.c.l.b16 %v1414
        %v1581 = vunpack.c.l.b16 %v1415
        %v1582 = vunpack.c.l.b16 %v1416
        %v1583 = vunpack.c.l.b16 %v1417
        %v1584 = vunpack.c.l.b16 %v1418
        %v1585 = vunpack.c.l.b16 %v1419
        %v1586 = vunpack.c.l.b16 %v1420
        %v1587 = vunpack.c.l.b16 %v1421
        %v1588 = vunpack.c.l.b16 %v1422
        %v1589 = vpack.c.b16 %v1574, %v1573
        %v1590 = vpack.c.b16 %v1576, %v1575
        %v1591 = vpack.c.b16 %v1578, %v1577
        %v1592 = vpack.c.b16 %v1580, %v1579
        %v1593 = vpack.c.b16 %v1582, %v1581
        %v1594 = vpack.c.b16 %v1584, %v1583
        %v1595 = vpack.c.b16 %v1586, %v1585
        %v1596 = vpack.c.b16 %v1588, %v1587
        %1605 = vmatprep.subr.bf16.mxu0 0
        %1606 = vmatpush1.bf16.msra.mxu0 %v1589
        %1607 = vmatprep.subr.bf16.mxu0 0
        %1608 = vmatpush1.bf16.msra.mxu0 %v1590
        %1609 = vmatprep.subr.bf16.mxu0 0
        %1610 = vmatpush1.bf16.msra.mxu0 %v1591
        %1611 = vmatprep.subr.bf16.mxu0 0
        %1612 = vmatpush1.bf16.msra.mxu0 %v1592
        %1613 = vmatprep.subr.bf16.mxu0 0
        %1614 = vmatpush1.bf16.msra.mxu0 %v1593
        %1615 = vmatprep.subr.bf16.mxu0 0
        %1616 = vmatpush1.bf16.msra.mxu0 %v1594
        %1617 = vmatprep.subr.bf16.mxu0 0
        %1618 = vmatpush1.bf16.msra.mxu0 %v1595
        %1619 = vmatprep.subr.bf16.mxu0 0
        %1620 = vmatpush1.bf16.msra.mxu0 %v1596
        %1621 = vmatprep.subr.bf16.mxu0 0
        %1622 = vmatpush1.bf16.msra.mxu0 0
        %1623 = vmatprep.subr.bf16.mxu0 0
        %1624 = vmatpush1.bf16.msra.mxu0 0
        %1625 = vmatprep.subr.bf16.mxu0 0
        %1626 = vmatpush1.bf16.msra.mxu0 0
        %1627 = vmatprep.subr.bf16.mxu0 0
        %1628 = vmatpush1.bf16.msra.mxu0 0
        %1629 = vmatprep.subr.bf16.mxu0 0
        %1630 = vmatpush1.bf16.msra.mxu0 0
        %1631 = vmatprep.subr.bf16.mxu0 0
        %1632 = vmatpush1.bf16.msra.mxu0 0
        %1633 = vmatprep.subr.bf16.mxu0 0
        %1634 = vmatpush1.bf16.msra.mxu0 0
        %1635 = vmatprep.subr.bf16.mxu0 0
        %1636 = vmatpush1.bf16.msra.mxu0 0
        %1637 = vmatprep.mubr.bf16.mxu0 0
        %1638 = vmatmul.mubr.bf16.gmra.mrb[0].mxu0 %v1403
        %v1639 = vpop.f32.mrb[0].mxu0
        %v1640 = vadd.f32 %v1527, %v1639
        %v1641 = vpop.f32.mrb[0].mxu0
        %v1642 = vpop.f32.mrb[0].mxu0
        %v1643 = vadd.f32 %v1530, %v1642
        %v1644 = vpop.f32.mrb[0].mxu0
        %1645 = vmatprep.mubr.bf16.mxu0 0
        %1646 = vmatmul.mubr.bf16.gmra.mrb[0].mxu0 %v1404
        %v1647 = vpop.f32.mrb[0].mxu0
        %v1648 = vadd.f32 %v1535, %v1647
        %v1649 = vpop.f32.mrb[0].mxu0
        %v1650 = vpop.f32.mrb[0].mxu0
        %v1651 = vadd.f32 %v1538, %v1650
        %v1652 = vpop.f32.mrb[0].mxu0
        %1653 = vmatprep.mubr.bf16.mxu0 0
        %1654 = vmatmul.mubr.bf16.gmra.mrb[0].mxu0 %v1405
        %v1655 = vpop.f32.mrb[0].mxu0
        %v1656 = vadd.f32 %v1543, %v1655
        %v1657 = vpop.f32.mrb[0].mxu0
        %v1658 = vpop.f32.mrb[0].mxu0
        %v1659 = vadd.f32 %v1546, %v1658
        %v1660 = vpop.f32.mrb[0].mxu0
        %1661 = vmatprep.mubr.bf16.mxu0 0
        %1662 = vmatmul.mubr.bf16.gmra.mrb[0].mxu0 %v1406
        %v1663 = vpop.f32.mrb[0].mxu0
        %v1664 = vadd.f32 %v1551, %v1663
        %v1665 = vpop.f32.mrb[0].mxu0
        %v1666 = vpop.f32.mrb[0].mxu0
        %v1667 = vadd.f32 %v1554, %v1666
        %v1668 = vpop.f32.mrb[0].mxu0
        %1669 = vdwg.mxu0
        %v1670 = vpack.c.bf16 %v1160, %v1157
        %v1671 = vpack.c.bf16 %v1168, %v1165
        %v1672 = vpack.c.bf16 %v1176, %v1173
        %v1673 = vpack.c.bf16 %v1184, %v1181
        %s1674 = scalar_lea.vmem [#allocation7], 128
        %v1675 = vld [vmem:[%s1674] sm:$0xf]
        %v1676 = vld [vmem:[%s1674 + $0x4] sm:$0xf]
        %v1677 = vld [vmem:[%s1674 + $0x8] sm:$0xf]
        %v1678 = vld [vmem:[%s1674 + $0xc] sm:$0xf]
        %v1679 = vld [vmem:[%s1674 + $0x10] sm:$0xf]
        %v1680 = vld [vmem:[%s1674 + $0x14] sm:$0xf]
        %v1681 = vld [vmem:[%s1674 + $0x18] sm:$0xf]
        %v1682 = vld [vmem:[%s1674 + $0x1c] sm:$0xf]
        %v1683 = vld [vmem:[%s1674 + $0x20] sm:$0xf]
        %v1684 = vld [vmem:[%s1674 + $0x24] sm:$0xf]
        %v1685 = vld [vmem:[%s1674 + $0x28] sm:$0xf]
        %v1686 = vld [vmem:[%s1674 + $0x2c] sm:$0xf]
        %v1687 = vld [vmem:[%s1674 + $0x30] sm:$0xf]
        %v1688 = vld [vmem:[%s1674 + $0x34] sm:$0xf]
        %v1689 = vld [vmem:[%s1674 + $0x38] sm:$0xf]
        %v1690 = vld [vmem:[%s1674 + $0x3c] sm:$0xf]
        %v1707 = vunpack.c.l.b16 %v1675
        %v1708 = vunpack.c.l.b16 %v1676
        %v1709 = vunpack.c.l.b16 %v1677
        %v1710 = vunpack.c.l.b16 %v1678
        %v1711 = vunpack.c.l.b16 %v1679
        %v1712 = vunpack.c.l.b16 %v1680
        %v1713 = vunpack.c.l.b16 %v1681
        %v1714 = vunpack.c.l.b16 %v1682
        %v1715 = vunpack.c.l.b16 %v1683
        %v1716 = vunpack.c.l.b16 %v1684
        %v1717 = vunpack.c.l.b16 %v1685
        %v1718 = vunpack.c.l.b16 %v1686
        %v1719 = vunpack.c.l.b16 %v1687
        %v1720 = vunpack.c.l.b16 %v1688
        %v1721 = vunpack.c.l.b16 %v1689
        %v1722 = vunpack.c.l.b16 %v1690
        %v1723 = vpack.c.b16 %v1708, %v1707
        %v1724 = vpack.c.b16 %v1710, %v1709
        %v1725 = vpack.c.b16 %v1712, %v1711
        %v1726 = vpack.c.b16 %v1714, %v1713
        %v1727 = vpack.c.b16 %v1716, %v1715
        %v1728 = vpack.c.b16 %v1718, %v1717
        %v1729 = vpack.c.b16 %v1720, %v1719
        %v1730 = vpack.c.b16 %v1722, %v1721
        %1739 = vmatprep.subr.bf16.mxu0 0
        %1740 = vmatpush1.bf16.msra.mxu0 %v1723
        %1741 = vmatprep.subr.bf16.mxu0 0
        %1742 = vmatpush1.bf16.msra.mxu0 %v1724
        %1743 = vmatprep.subr.bf16.mxu0 0
        %1744 = vmatpush1.bf16.msra.mxu0 %v1725
        %1745 = vmatprep.subr.bf16.mxu0 0
        %1746 = vmatpush1.bf16.msra.mxu0 %v1726
        %1747 = vmatprep.subr.bf16.mxu0 0
        %1748 = vmatpush1.bf16.msra.mxu0 %v1727
        %1749 = vmatprep.subr.bf16.mxu0 0
        %1750 = vmatpush1.bf16.msra.mxu0 %v1728
        %1751 = vmatprep.subr.bf16.mxu0 0
        %1752 = vmatpush1.bf16.msra.mxu0 %v1729
        %1753 = vmatprep.subr.bf16.mxu0 0
        %1754 = vmatpush1.bf16.msra.mxu0 %v1730
        %1755 = vmatprep.subr.bf16.mxu0 0
        %1756 = vmatpush1.bf16.msra.mxu0 0
        %1757 = vmatprep.subr.bf16.mxu0 0
        %1758 = vmatpush1.bf16.msra.mxu0 0
        %1759 = vmatprep.subr.bf16.mxu0 0
        %1760 = vmatpush1.bf16.msra.mxu0 0
        %1761 = vmatprep.subr.bf16.mxu0 0
        %1762 = vmatpush1.bf16.msra.mxu0 0
        %1763 = vmatprep.subr.bf16.mxu0 0
        %1764 = vmatpush1.bf16.msra.mxu0 0
        %1765 = vmatprep.subr.bf16.mxu0 0
        %1766 = vmatpush1.bf16.msra.mxu0 0
        %1767 = vmatprep.subr.bf16.mxu0 0
        %1768 = vmatpush1.bf16.msra.mxu0 0
        %1769 = vmatprep.subr.bf16.mxu0 0
        %1770 = vmatpush1.bf16.msra.mxu0 0
        %1771 = vmatprep.mubr.bf16.mxu0 0
        %1772 = vmatmul.mubr.bf16.gmra.mrb[0].mxu0 %v1670
        %v1773 = vpop.f32.mrb[0].mxu0
        %v1774 = vadd.f32 0.0, %v1773
        %v1775 = vpop.f32.mrb[0].mxu0
        %v1776 = vpop.f32.mrb[0].mxu0
        %v1777 = vadd.f32 0.0, %v1776
        %v1778 = vpop.f32.mrb[0].mxu0
        %1779 = vmatprep.mubr.bf16.mxu0 0
        %1780 = vmatmul.mubr.bf16.gmra.mrb[0].mxu0 %v1671
        %v1781 = vpop.f32.mrb[0].mxu0
        %v1782 = vadd.f32 0.0, %v1781
        %v1783 = vpop.f32.mrb[0].mxu0
        %v1784 = vpop.f32.mrb[0].mxu0
        %v1785 = vadd.f32 0.0, %v1784
        %v1786 = vpop.f32.mrb[0].mxu0
        %1787 = vmatprep.mubr.bf16.mxu0 0
        %1788 = vmatmul.mubr.bf16.gmra.mrb[0].mxu0 %v1672
        %v1789 = vpop.f32.mrb[0].mxu0
        %v1790 = vadd.f32 0.0, %v1789
        %v1791 = vpop.f32.mrb[0].mxu0
        %v1792 = vpop.f32.mrb[0].mxu0
        %v1793 = vadd.f32 0.0, %v1792
        %v1794 = vpop.f32.mrb[0].mxu0
        %1795 = vmatprep.mubr.bf16.mxu0 0
        %1796 = vmatmul.mubr.bf16.gmra.mrb[0].mxu0 %v1673
        %v1797 = vpop.f32.mrb[0].mxu0
        %v1798 = vadd.f32 0.0, %v1797
        %v1799 = vpop.f32.mrb[0].mxu0
        %v1800 = vpop.f32.mrb[0].mxu0
        %v1801 = vadd.f32 0.0, %v1800
        %v1802 = vpop.f32.mrb[0].mxu0
        %1803 = vdwg.mxu0
        %v1804 = vadd.f32 %v1640, %v1774
        %v1805 = vadd.f32 %v1643, %v1777
        %v1806 = vadd.f32 %v1648, %v1782
        %v1807 = vadd.f32 %v1651, %v1785
        %v1808 = vadd.f32 %v1656, %v1790
        %v1809 = vadd.f32 %v1659, %v1793
        %v1810 = vadd.f32 %v1664, %v1798
        %v1811 = vadd.f32 %v1667, %v1801
        %v1812 = vld [vmem:[#allocation16] sm:$0xff]
        %v1813 = vld [vmem:[#allocation16 + $0x8] sm:$0xff]
        %v1814 = vld [vmem:[#allocation16 + $0x10] sm:$0xff]
        %v1815 = vld [vmem:[#allocation16 + $0x18] sm:$0xff]
        %v1816 = vld [vmem:[#allocation16 + $0x20] sm:$0xff]
        %v1817 = vld [vmem:[#allocation16 + $0x28] sm:$0xff]
        %v1818 = vld [vmem:[#allocation16 + $0x30] sm:$0xff]
        %v1819 = vld [vmem:[#allocation16 + $0x38] sm:$0xff]
        %v1820 = vadd.f32 %v1804, %v1812
        %v1821 = vadd.f32 %v1805, %v1813
        %v1822 = vadd.f32 %v1806, %v1814
        %v1823 = vadd.f32 %v1807, %v1815
        %v1824 = vadd.f32 %v1808, %v1816
        %v1825 = vadd.f32 %v1809, %v1817
        %v1826 = vadd.f32 %v1810, %v1818
        %v1827 = vadd.f32 %v1811, %v1819
        %v1828 = vmax.f32 %v1820, 0.0
        %v1829 = vmax.f32 %v1821, 0.0
        %v1830 = vmax.f32 %v1822, 0.0
        %v1831 = vmax.f32 %v1823, 0.0
        %v1832 = vmax.f32 %v1824, 0.0
        %v1833 = vmax.f32 %v1825, 0.0
        %v1834 = vmax.f32 %v1826, 0.0
        %v1835 = vmax.f32 %v1827, 0.0
        %v1836 = vpack.c.bf16 %v1829, %v1828
        %v1837 = vpack.c.bf16 %v1831, %v1830
        %v1838 = vpack.c.bf16 %v1833, %v1832
        %v1839 = vpack.c.bf16 %v1835, %v1834
        %v1840 = vld [vmem:[#allocation10] sm:$0xf]
        %v1841 = vld [vmem:[#allocation10 + $0x4] sm:$0xf]
        %v1842 = vld [vmem:[#allocation10 + $0x8] sm:$0xf]
        %v1843 = vld [vmem:[#allocation10 + $0xc] sm:$0xf]
        %v1844 = vld [vmem:[#allocation10 + $0x10] sm:$0xf]
        %v1845 = vld [vmem:[#allocation10 + $0x14] sm:$0xf]
        %v1846 = vld [vmem:[#allocation10 + $0x18] sm:$0xf]
        %v1847 = vld [vmem:[#allocation10 + $0x1c] sm:$0xf]
        %v1848 = vld [vmem:[#allocation17] sm:$0xff]
        %v1849 = vld [vmem:[#allocation17 + $0x8] sm:$0xff]
        %v1850 = vld [vmem:[#allocation17 + $0x10] sm:$0xff]
        %v1851 = vld [vmem:[#allocation17 + $0x18] sm:$0xff]
        %v1852 = vld [vmem:[#allocation17 + $0x20] sm:$0xff]
        %v1853 = vld [vmem:[#allocation17 + $0x28] sm:$0xff]
        %v1854 = vld [vmem:[#allocation17 + $0x30] sm:$0xff]
        %v1855 = vld [vmem:[#allocation17 + $0x38] sm:$0xff]
        %v1864 = vunpack.c.l.b16 %v1840
        %v1865 = vunpack.c.l.b16 %v1841
        %v1866 = vunpack.c.l.b16 %v1842
        %v1867 = vunpack.c.l.b16 %v1843
        %v1868 = vunpack.c.l.b16 %v1844
        %v1869 = vunpack.c.l.b16 %v1845
        %v1870 = vunpack.c.l.b16 %v1846
        %v1871 = vunpack.c.l.b16 %v1847
        %v1872 = vpack.c.b16 %v1865, %v1864
        %v1873 = vpack.c.b16 %v1867, %v1866
        %v1874 = vpack.c.b16 %v1869, %v1868
        %v1875 = vpack.c.b16 %v1871, %v1870
        %v1877 = vsel %vm905, %v1872, 0
        %v1880 = vsel %vm905, %v1873, 0
        %v1883 = vsel %vm905, %v1874, 0
        %v1886 = vsel %vm905, %v1875, 0
        %1888 = vmatprep.subr.bf16.mxu0 0
        %1889 = vmatpush1.bf16.msra.mxu0 %v1836
        %1890 = vmatprep.subr.bf16.mxu0 0
        %1891 = vmatpush1.bf16.msra.mxu0 %v1837
        %1892 = vmatprep.subr.bf16.mxu0 0
        %1893 = vmatpush1.bf16.msra.mxu0 %v1838
        %1894 = vmatprep.subr.bf16.mxu0 0
        %1895 = vmatpush1.bf16.msra.mxu0 %v1839
        %1896 = vmatprep.subr.bf16.mxu0 0
        %1897 = vmatpush1.bf16.msra.mxu0 0
        %1898 = vmatprep.subr.bf16.mxu0 0
        %1899 = vmatpush1.bf16.msra.mxu0 0
        %1900 = vmatprep.subr.bf16.mxu0 0
        %1901 = vmatpush1.bf16.msra.mxu0 0
        %1902 = vmatprep.subr.bf16.mxu0 0
        %1903 = vmatpush1.bf16.msra.mxu0 0
        %1904 = vmatprep.subr.bf16.mxu0 0
        %1905 = vmatpush1.bf16.msra.mxu0 0
        %1906 = vmatprep.subr.bf16.mxu0 0
        %1907 = vmatpush1.bf16.msra.mxu0 0
        %1908 = vmatprep.subr.bf16.mxu0 0
        %1909 = vmatpush1.bf16.msra.mxu0 0
        %1910 = vmatprep.subr.bf16.mxu0 0
        %1911 = vmatpush1.bf16.msra.mxu0 0
        %1912 = vmatprep.subr.bf16.mxu0 0
        %1913 = vmatpush1.bf16.msra.mxu0 0
        %1914 = vmatprep.subr.bf16.mxu0 0
        %1915 = vmatpush1.bf16.msra.mxu0 0
        %1916 = vmatprep.subr.bf16.mxu0 0
        %1917 = vmatpush1.bf16.msra.mxu0 0
        %1918 = vmatprep.subr.bf16.mxu0 0
        %1919 = vmatpush1.bf16.msra.mxu0 0
        %1920 = vmatprep.mubr.bf16.mxu0 0
        %1921 = vmatmul.mubr.bf16.gmra.mrb[0].mxu0 %v1877
        %v1922 = vpop.f32.mrb[0].mxu0
        %v1923 = vadd.f32 %v1848, %v1922
        %v1924 = vpop.f32.mrb[0].mxu0
        %v1925 = vpop.f32.mrb[0].mxu0
        %v1926 = vadd.f32 %v1849, %v1925
        %v1927 = vpop.f32.mrb[0].mxu0
        %1928 = vmatprep.mubr.bf16.mxu0 0
        %1929 = vmatmul.mubr.bf16.gmra.mrb[0].mxu0 %v1880
        %v1930 = vpop.f32.mrb[0].mxu0
        %v1931 = vadd.f32 %v1850, %v1930
        %v1932 = vpop.f32.mrb[0].mxu0
        %v1933 = vpop.f32.mrb[0].mxu0
        %v1934 = vadd.f32 %v1851, %v1933
        %v1935 = vpop.f32.mrb[0].mxu0
        %1936 = vmatprep.mubr.bf16.mxu0 0
        %1937 = vmatmul.mubr.bf16.gmra.mrb[0].mxu0 %v1883
        %v1938 = vpop.f32.mrb[0].mxu0
        %v1939 = vadd.f32 %v1852, %v1938
        %v1940 = vpop.f32.mrb[0].mxu0
        %v1941 = vpop.f32.mrb[0].mxu0
        %v1942 = vadd.f32 %v1853, %v1941
        %v1943 = vpop.f32.mrb[0].mxu0
        %1944 = vmatprep.mubr.bf16.mxu0 0
        %1945 = vmatmul.mubr.bf16.gmra.mrb[0].mxu0 %v1886
        %v1946 = vpop.f32.mrb[0].mxu0
        %v1947 = vadd.f32 %v1854, %v1946
        %v1948 = vpop.f32.mrb[0].mxu0
        %v1949 = vpop.f32.mrb[0].mxu0
        %v1950 = vadd.f32 %v1855, %v1949
        %v1951 = vpop.f32.mrb[0].mxu0
        %1952 = vdwg.mxu0
        %v1953 = vmax.f32 %v1923, 0.0
        %v1954 = vmax.f32 %v1926, 0.0
        %v1955 = vmax.f32 %v1931, 0.0
        %v1956 = vmax.f32 %v1934, 0.0
        %v1957 = vmax.f32 %v1939, 0.0
        %v1958 = vmax.f32 %v1942, 0.0
        %v1959 = vmax.f32 %v1947, 0.0
        %v1960 = vmax.f32 %v1950, 0.0
        %v1961 = vadd.f32 %v1395, %v1953
        %v1962 = vadd.f32 %v1396, %v1954
        %v1963 = vadd.f32 %v1397, %v1955
        %v1964 = vadd.f32 %v1398, %v1956
        %v1965 = vadd.f32 %v1399, %v1957
        %v1966 = vadd.f32 %v1400, %v1958
        %v1967 = vadd.f32 %v1401, %v1959
        %v1968 = vadd.f32 %v1402, %v1960
        %v1969 = vld [vmem:[#allocation8] sm:$0x1]
        %v1971 = vlaneseq
        %v1972 = vshrl.u32 %v1971, 7
        %v1973 = vsub.s32 0, %v1972
        %v1974 = vrot.slane %v1969, %v1973
        %v1976 = vmul.f32 %v1189, %v1974
        %v1977 = vmul.f32 %v1192, %v1974
        %v1978 = vmul.f32 %v1197, %v1974
        %v1979 = vmul.f32 %v1200, %v1974
        %v1980 = vmul.f32 %v1205, %v1974
        %v1981 = vmul.f32 %v1208, %v1974
        %v1982 = vmul.f32 %v1213, %v1974
        %v1983 = vmul.f32 %v1216, %v1974
        %v1984 = vmul.f32 %v1221, %v1974
        %v1985 = vmul.f32 %v1224, %v1974
        %v1986 = vmul.f32 %v1229, %v1974
        %v1987 = vmul.f32 %v1232, %v1974
        %v1988 = vmul.f32 %v1237, %v1974
        %v1989 = vmul.f32 %v1240, %v1974
        %v1990 = vmul.f32 %v1245, %v1974
        %v1991 = vmul.f32 %v1248, %v1974
        %s1992 = scalar_lea.vmem [#allocation8], 1
        %v1993 = vld [vmem:[%s1992] sm:$0x1]
        %v1995 = vlaneseq
        %v1996 = vshrl.u32 %v1995, 7
        %v1997 = vsub.s32 0, %v1996
        %v1998 = vrot.slane %v1993, %v1997
        %v2000 = vmul.f32 %v1253, %v1998
        %v2001 = vmul.f32 %v1256, %v1998
        %v2002 = vmul.f32 %v1261, %v1998
        %v2003 = vmul.f32 %v1264, %v1998
        %v2004 = vmul.f32 %v1269, %v1998
        %v2005 = vmul.f32 %v1272, %v1998
        %v2006 = vmul.f32 %v1277, %v1998
        %v2007 = vmul.f32 %v1280, %v1998
        %v2008 = vmul.f32 %v1285, %v1998
        %v2009 = vmul.f32 %v1288, %v1998
        %v2010 = vmul.f32 %v1293, %v1998
        %v2011 = vmul.f32 %v1296, %v1998
        %v2012 = vmul.f32 %v1301, %v1998
        %v2013 = vmul.f32 %v1304, %v1998
        %v2014 = vmul.f32 %v1309, %v1998
        %v2015 = vmul.f32 %v1312, %v1998
        %v2016 = vadd.f32 %v1976, %v2000
        %v2017 = vadd.f32 %v1977, %v2001
        %v2018 = vadd.f32 %v1978, %v2002
        %v2019 = vadd.f32 %v1979, %v2003
        %v2020 = vadd.f32 %v1980, %v2004
        %v2021 = vadd.f32 %v1981, %v2005
        %v2022 = vadd.f32 %v1982, %v2006
        %v2023 = vadd.f32 %v1983, %v2007
        %v2024 = vadd.f32 %v1984, %v2008
        %v2025 = vadd.f32 %v1985, %v2009
        %v2026 = vadd.f32 %v1986, %v2010
        %v2027 = vadd.f32 %v1987, %v2011
        %v2028 = vadd.f32 %v1988, %v2012
        %v2029 = vadd.f32 %v1989, %v2013
        %v2030 = vadd.f32 %v1990, %v2014
        %v2031 = vadd.f32 %v1991, %v2015
        %s2032 = scalar_lea.vmem [#allocation8], 2
        %v2033 = vld [vmem:[%s2032] sm:$0x1]
        %v2035 = vlaneseq
        %v2036 = vshrl.u32 %v2035, 7
        %v2037 = vsub.s32 0, %v2036
        %v2038 = vrot.slane %v2033, %v2037
        %v2040 = vmul.f32 %v1317, %v2038
        %v2041 = vmul.f32 %v1320, %v2038
        %v2042 = vmul.f32 %v1325, %v2038
        %v2043 = vmul.f32 %v1328, %v2038
        %v2044 = vmul.f32 %v1333, %v2038
        %v2045 = vmul.f32 %v1336, %v2038
        %v2046 = vmul.f32 %v1341, %v2038
        %v2047 = vmul.f32 %v1344, %v2038
        %v2048 = vmul.f32 %v1349, %v2038
        %v2049 = vmul.f32 %v1352, %v2038
        %v2050 = vmul.f32 %v1357, %v2038
        %v2051 = vmul.f32 %v1360, %v2038
        %v2052 = vmul.f32 %v1365, %v2038
        %v2053 = vmul.f32 %v1368, %v2038
        %v2054 = vmul.f32 %v1373, %v2038
        %v2055 = vmul.f32 %v1376, %v2038
        %v2056 = vadd.f32 %v2016, %v2040
        %v2057 = vadd.f32 %v2017, %v2041
        %v2058 = vadd.f32 %v2018, %v2042
        %v2059 = vadd.f32 %v2019, %v2043
        %v2060 = vadd.f32 %v2020, %v2044
        %v2061 = vadd.f32 %v2021, %v2045
        %v2062 = vadd.f32 %v2022, %v2046
        %v2063 = vadd.f32 %v2023, %v2047
        %v2064 = vadd.f32 %v2024, %v2048
        %v2065 = vadd.f32 %v2025, %v2049
        %v2066 = vadd.f32 %v2026, %v2050
        %v2067 = vadd.f32 %v2027, %v2051
        %v2068 = vadd.f32 %v2028, %v2052
        %v2069 = vadd.f32 %v2029, %v2053
        %v2070 = vadd.f32 %v2030, %v2054
        %v2071 = vadd.f32 %v2031, %v2055
        %v2072 = vld [vmem:[#allocation19] sm:$0xff]
        %v2073 = vld [vmem:[#allocation19 + $0x8] sm:$0xff]
        %v2074 = vld [vmem:[#allocation19 + $0x10] sm:$0xff]
        %v2075 = vld [vmem:[#allocation19 + $0x18] sm:$0xff]
        %v2076 = vld [vmem:[#allocation19 + $0x20] sm:$0xff]
        %v2077 = vld [vmem:[#allocation19 + $0x28] sm:$0xff]
        %v2078 = vld [vmem:[#allocation19 + $0x30] sm:$0xff]
        %v2079 = vld [vmem:[#allocation19 + $0x38] sm:$0xff]
        %v2080 = vld [vmem:[#allocation19 + $0x40] sm:$0xff]
        %v2081 = vld [vmem:[#allocation19 + $0x48] sm:$0xff]
        %v2082 = vld [vmem:[#allocation19 + $0x50] sm:$0xff]
        %v2083 = vld [vmem:[#allocation19 + $0x58] sm:$0xff]
        %v2084 = vld [vmem:[#allocation19 + $0x60] sm:$0xff]
        %v2085 = vld [vmem:[#allocation19 + $0x68] sm:$0xff]
        %v2086 = vld [vmem:[#allocation19 + $0x70] sm:$0xff]
        %v2087 = vld [vmem:[#allocation19 + $0x78] sm:$0xff]
        %v2088 = vadd.f32 %v2056, %v2072
        %v2089 = vadd.f32 %v2057, %v2073
        %v2090 = vadd.f32 %v2058, %v2074
        %v2091 = vadd.f32 %v2059, %v2075
        %v2092 = vadd.f32 %v2060, %v2076
        %v2093 = vadd.f32 %v2061, %v2077
        %v2094 = vadd.f32 %v2062, %v2078
        %v2095 = vadd.f32 %v2063, %v2079
        %v2096 = vadd.f32 %v2064, %v2080
        %v2097 = vadd.f32 %v2065, %v2081
        %v2098 = vadd.f32 %v2066, %v2082
        %v2099 = vadd.f32 %v2067, %v2083
        %v2100 = vadd.f32 %v2068, %v2084
        %v2101 = vadd.f32 %v2069, %v2085
        %v2102 = vadd.f32 %v2070, %v2086
        %v2103 = vadd.f32 %v2071, %v2087
        %v2104 = vmax.f32 %v2088, 0.0
        %v2105 = vmax.f32 %v2089, 0.0
        %v2106 = vmax.f32 %v2090, 0.0
        %v2107 = vmax.f32 %v2091, 0.0
        %v2108 = vmax.f32 %v2092, 0.0
        %v2109 = vmax.f32 %v2093, 0.0
        %v2110 = vmax.f32 %v2094, 0.0
        %v2111 = vmax.f32 %v2095, 0.0
        %v2112 = vmax.f32 %v2096, 0.0
        %v2113 = vmax.f32 %v2097, 0.0
        %v2114 = vmax.f32 %v2098, 0.0
        %v2115 = vmax.f32 %v2099, 0.0
        %v2116 = vmax.f32 %v2100, 0.0
        %v2117 = vmax.f32 %v2101, 0.0
        %v2118 = vmax.f32 %v2102, 0.0
        %v2119 = vmax.f32 %v2103, 0.0
        %v2120 = vpack.c.bf16 %v2105, %v2104
        %v2121 = vpack.c.bf16 %v2107, %v2106
        %v2122 = vpack.c.bf16 %v2109, %v2108
        %v2123 = vpack.c.bf16 %v2111, %v2110
        %v2124 = vpack.c.bf16 %v2113, %v2112
        %v2125 = vpack.c.bf16 %v2115, %v2114
        %v2126 = vpack.c.bf16 %v2117, %v2116
        %v2127 = vpack.c.bf16 %v2119, %v2118
        %v2128 = vld [vmem:[#allocation11] sm:$0xf]
        %v2129 = vld [vmem:[#allocation11 + $0x4] sm:$0xf]
        %v2130 = vld [vmem:[#allocation11 + $0x8] sm:$0xf]
        %v2131 = vld [vmem:[#allocation11 + $0xc] sm:$0xf]
        %v2132 = vld [vmem:[#allocation11 + $0x10] sm:$0xf]
        %v2133 = vld [vmem:[#allocation11 + $0x14] sm:$0xf]
        %v2134 = vld [vmem:[#allocation11 + $0x18] sm:$0xf]
        %v2135 = vld [vmem:[#allocation11 + $0x1c] sm:$0xf]
        %v2136 = vld [vmem:[#allocation20] sm:$0xff]
        %v2137 = vld [vmem:[#allocation20 + $0x8] sm:$0xff]
        %v2138 = vld [vmem:[#allocation20 + $0x10] sm:$0xff]
        %v2139 = vld [vmem:[#allocation20 + $0x18] sm:$0xff]
        %v2140 = vld [vmem:[#allocation20 + $0x20] sm:$0xff]
        %v2141 = vld [vmem:[#allocation20 + $0x28] sm:$0xff]
        %v2142 = vld [vmem:[#allocation20 + $0x30] sm:$0xff]
        %v2143 = vld [vmem:[#allocation20 + $0x38] sm:$0xff]
        %v2152 = vunpack.c.l.b16 %v2128
        %v2153 = vunpack.c.l.b16 %v2129
        %v2154 = vunpack.c.l.b16 %v2130
        %v2155 = vunpack.c.l.b16 %v2131
        %v2156 = vunpack.c.l.b16 %v2132
        %v2157 = vunpack.c.l.b16 %v2133
        %v2158 = vunpack.c.l.b16 %v2134
        %v2159 = vunpack.c.l.b16 %v2135
        %v2160 = vpack.c.b16 %v2153, %v2152
        %v2161 = vpack.c.b16 %v2155, %v2154
        %v2162 = vpack.c.b16 %v2157, %v2156
        %v2163 = vpack.c.b16 %v2159, %v2158
        %2168 = vmatprep.subr.bf16.mxu0 0
        %2169 = vmatpush1.bf16.msra.mxu0 %v2120
        %2170 = vmatprep.subr.bf16.mxu0 0
        %2171 = vmatpush1.bf16.msra.mxu0 %v2121
        %2172 = vmatprep.subr.bf16.mxu0 0
        %2173 = vmatpush1.bf16.msra.mxu0 %v2122
        %2174 = vmatprep.subr.bf16.mxu0 0
        %2175 = vmatpush1.bf16.msra.mxu0 %v2123
        %2176 = vmatprep.subr.bf16.mxu0 0
        %2177 = vmatpush1.bf16.msra.mxu0 %v2124
        %2178 = vmatprep.subr.bf16.mxu0 0
        %2179 = vmatpush1.bf16.msra.mxu0 %v2125
        %2180 = vmatprep.subr.bf16.mxu0 0
        %2181 = vmatpush1.bf16.msra.mxu0 %v2126
        %2182 = vmatprep.subr.bf16.mxu0 0
        %2183 = vmatpush1.bf16.msra.mxu0 %v2127
        %2184 = vmatprep.subr.bf16.mxu0 0
        %2185 = vmatpush1.bf16.msra.mxu0 0
        %2186 = vmatprep.subr.bf16.mxu0 0
        %2187 = vmatpush1.bf16.msra.mxu0 0
        %2188 = vmatprep.subr.bf16.mxu0 0
        %2189 = vmatpush1.bf16.msra.mxu0 0
        %2190 = vmatprep.subr.bf16.mxu0 0
        %2191 = vmatpush1.bf16.msra.mxu0 0
        %2192 = vmatprep.subr.bf16.mxu0 0
        %2193 = vmatpush1.bf16.msra.mxu0 0
        %2194 = vmatprep.subr.bf16.mxu0 0
        %2195 = vmatpush1.bf16.msra.mxu0 0
        %2196 = vmatprep.subr.bf16.mxu0 0
        %2197 = vmatpush1.bf16.msra.mxu0 0
        %2198 = vmatprep.subr.bf16.mxu0 0
        %2199 = vmatpush1.bf16.msra.mxu0 0
        %2200 = vmatprep.mubr.bf16.mxu0 0
        %2201 = vmatmul.mubr.bf16.gmra.mrb[0].mxu0 %v2160
        %v2202 = vpop.f32.mrb[0].mxu0
        %v2203 = vadd.f32 %v2136, %v2202
        %v2204 = vpop.f32.mrb[0].mxu0
        %v2205 = vpop.f32.mrb[0].mxu0
        %v2206 = vadd.f32 %v2137, %v2205
        %v2207 = vpop.f32.mrb[0].mxu0
        %2208 = vmatprep.mubr.bf16.mxu0 0
        %2209 = vmatmul.mubr.bf16.gmra.mrb[0].mxu0 %v2161
        %v2210 = vpop.f32.mrb[0].mxu0
        %v2211 = vadd.f32 %v2138, %v2210
        %v2212 = vpop.f32.mrb[0].mxu0
        %v2213 = vpop.f32.mrb[0].mxu0
        %v2214 = vadd.f32 %v2139, %v2213
        %v2215 = vpop.f32.mrb[0].mxu0
        %2216 = vmatprep.mubr.bf16.mxu0 0
        %2217 = vmatmul.mubr.bf16.gmra.mrb[0].mxu0 %v2162
        %v2218 = vpop.f32.mrb[0].mxu0
        %v2219 = vadd.f32 %v2140, %v2218
        %v2220 = vpop.f32.mrb[0].mxu0
        %v2221 = vpop.f32.mrb[0].mxu0
        %v2222 = vadd.f32 %v2141, %v2221
        %v2223 = vpop.f32.mrb[0].mxu0
        %2224 = vmatprep.mubr.bf16.mxu0 0
        %2225 = vmatmul.mubr.bf16.gmra.mrb[0].mxu0 %v2163
        %v2226 = vpop.f32.mrb[0].mxu0
        %v2227 = vadd.f32 %v2142, %v2226
        %v2228 = vpop.f32.mrb[0].mxu0
        %v2229 = vpop.f32.mrb[0].mxu0
        %v2230 = vadd.f32 %v2143, %v2229
        %v2231 = vpop.f32.mrb[0].mxu0
        %2232 = vdwg.mxu0
        %v2233 = vmax.f32 %v2203, 0.0
        %v2234 = vmax.f32 %v2206, 0.0
        %v2235 = vmax.f32 %v2211, 0.0
        %v2236 = vmax.f32 %v2214, 0.0
        %v2237 = vmax.f32 %v2219, 0.0
        %v2238 = vmax.f32 %v2222, 0.0
        %v2239 = vmax.f32 %v2227, 0.0
        %v2240 = vmax.f32 %v2230, 0.0
        %v2241 = vpack.c.bf16 %v2234, %v2233
        %v2242 = vpack.c.bf16 %v2236, %v2235
        %v2243 = vpack.c.bf16 %v2238, %v2237
        %v2244 = vpack.c.bf16 %v2240, %v2239
        %v2245 = vld [vmem:[#allocation13] sm:$0xf]
        %v2246 = vld [vmem:[#allocation13 + $0x4] sm:$0xf]
        %v2247 = vld [vmem:[#allocation13 + $0x8] sm:$0xf]
        %v2248 = vld [vmem:[#allocation13 + $0xc] sm:$0xf]
        %v2249 = vld [vmem:[#allocation13 + $0x10] sm:$0xf]
        %v2250 = vld [vmem:[#allocation13 + $0x14] sm:$0xf]
        %v2251 = vld [vmem:[#allocation13 + $0x18] sm:$0xf]
        %v2252 = vld [vmem:[#allocation13 + $0x1c] sm:$0xf]
        %v2253 = vld [vmem:[#allocation13 + $0x20] sm:$0xf]
        %v2254 = vld [vmem:[#allocation13 + $0x24] sm:$0xf]
        %v2255 = vld [vmem:[#allocation13 + $0x28] sm:$0xf]
        %v2256 = vld [vmem:[#allocation13 + $0x2c] sm:$0xf]
        %v2257 = vld [vmem:[#allocation13 + $0x30] sm:$0xf]
        %v2258 = vld [vmem:[#allocation13 + $0x34] sm:$0xf]
        %v2259 = vld [vmem:[#allocation13 + $0x38] sm:$0xf]
        %v2260 = vld [vmem:[#allocation13 + $0x3c] sm:$0xf]
        %v2277 = vunpack.c.l.b16 %v2245
        %v2278 = vunpack.c.l.b16 %v2246
        %v2279 = vunpack.c.l.b16 %v2247
        %v2280 = vunpack.c.l.b16 %v2248
        %v2281 = vunpack.c.l.b16 %v2249
        %v2282 = vunpack.c.l.b16 %v2250
        %v2283 = vunpack.c.l.b16 %v2251
        %v2284 = vunpack.c.l.b16 %v2252
        %v2285 = vunpack.c.l.b16 %v2253
        %v2286 = vunpack.c.l.b16 %v2254
        %v2287 = vunpack.c.l.b16 %v2255
        %v2288 = vunpack.c.l.b16 %v2256
        %v2289 = vunpack.c.l.b16 %v2257
        %v2290 = vunpack.c.l.b16 %v2258
        %v2291 = vunpack.c.l.b16 %v2259
        %v2292 = vunpack.c.l.b16 %v2260
        %v2293 = vpack.c.b16 %v2278, %v2277
        %v2294 = vpack.c.b16 %v2280, %v2279
        %v2295 = vpack.c.b16 %v2282, %v2281
        %v2296 = vpack.c.b16 %v2284, %v2283
        %v2297 = vpack.c.b16 %v2286, %v2285
        %v2298 = vpack.c.b16 %v2288, %v2287
        %v2299 = vpack.c.b16 %v2290, %v2289
        %v2300 = vpack.c.b16 %v2292, %v2291
        %2309 = vmatprep.subr.bf16.mxu0 0
        %2310 = vmatpush1.bf16.msra.mxu0 %v2293
        %2311 = vmatprep.subr.bf16.mxu0 0
        %2312 = vmatpush1.bf16.msra.mxu0 %v2294
        %2313 = vmatprep.subr.bf16.mxu0 0
        %2314 = vmatpush1.bf16.msra.mxu0 %v2295
        %2315 = vmatprep.subr.bf16.mxu0 0
        %2316 = vmatpush1.bf16.msra.mxu0 %v2296
        %2317 = vmatprep.subr.bf16.mxu0 0
        %2318 = vmatpush1.bf16.msra.mxu0 %v2297
        %2319 = vmatprep.subr.bf16.mxu0 0
        %2320 = vmatpush1.bf16.msra.mxu0 %v2298
        %2321 = vmatprep.subr.bf16.mxu0 0
        %2322 = vmatpush1.bf16.msra.mxu0 %v2299
        %2323 = vmatprep.subr.bf16.mxu0 0
        %2324 = vmatpush1.bf16.msra.mxu0 %v2300
        %2325 = vmatprep.subr.bf16.mxu0 0
        %2326 = vmatpush1.bf16.msra.mxu0 0
        %2327 = vmatprep.subr.bf16.mxu0 0
        %2328 = vmatpush1.bf16.msra.mxu0 0
        %2329 = vmatprep.subr.bf16.mxu0 0
        %2330 = vmatpush1.bf16.msra.mxu0 0
        %2331 = vmatprep.subr.bf16.mxu0 0
        %2332 = vmatpush1.bf16.msra.mxu0 0
        %2333 = vmatprep.subr.bf16.mxu0 0
        %2334 = vmatpush1.bf16.msra.mxu0 0
        %2335 = vmatprep.subr.bf16.mxu0 0
        %2336 = vmatpush1.bf16.msra.mxu0 0
        %2337 = vmatprep.subr.bf16.mxu0 0
        %2338 = vmatpush1.bf16.msra.mxu0 0
        %2339 = vmatprep.subr.bf16.mxu0 0
        %2340 = vmatpush1.bf16.msra.mxu0 0
        %2341 = vmatprep.mubr.bf16.mxu0 0
        %2342 = vmatmul.mubr.bf16.gmra.mrb[0].mxu0 %v2241
        %v2343 = vpop.f32.mrb[0].mxu0
        %v2344 = vadd.f32 %v1961, %v2343
        %v2345 = vpop.f32.mrb[0].mxu0
        %v2346 = vpop.f32.mrb[0].mxu0
        %v2347 = vadd.f32 %v1962, %v2346
        %v2348 = vpop.f32.mrb[0].mxu0
        %2349 = vmatprep.mubr.bf16.mxu0 0
        %2350 = vmatmul.mubr.bf16.gmra.mrb[0].mxu0 %v2242
        %v2351 = vpop.f32.mrb[0].mxu0
        %v2352 = vadd.f32 %v1963, %v2351
        %v2353 = vpop.f32.mrb[0].mxu0
        %v2354 = vpop.f32.mrb[0].mxu0
        %v2355 = vadd.f32 %v1964, %v2354
        %v2356 = vpop.f32.mrb[0].mxu0
        %2357 = vmatprep.mubr.bf16.mxu0 0
        %2358 = vmatmul.mubr.bf16.gmra.mrb[0].mxu0 %v2243
        %v2359 = vpop.f32.mrb[0].mxu0
        %v2360 = vadd.f32 %v1965, %v2359
        %v2361 = vpop.f32.mrb[0].mxu0
        %v2362 = vpop.f32.mrb[0].mxu0
        %v2363 = vadd.f32 %v1966, %v2362
        %v2364 = vpop.f32.mrb[0].mxu0
        %2365 = vmatprep.mubr.bf16.mxu0 0
        %2366 = vmatmul.mubr.bf16.gmra.mrb[0].mxu0 %v2244
        %v2367 = vpop.f32.mrb[0].mxu0
        %v2368 = vadd.f32 %v1967, %v2367
        %v2369 = vpop.f32.mrb[0].mxu0
        %v2370 = vpop.f32.mrb[0].mxu0
        %v2371 = vadd.f32 %v1968, %v2370
        %v2372 = vpop.f32.mrb[0].mxu0
        %2373 = vdwg.mxu0
        %2374 = vst [vmem:[%s591] sm:$0xff] %v2344
        %2375 = vst [vmem:[%s591 + $0x8] sm:$0xff] %v2347
        %2376 = vst [vmem:[%s591 + $0x10] sm:$0xff] %v2352
        %2377 = vst [vmem:[%s591 + $0x18] sm:$0xff] %v2355
        %2378 = vst [vmem:[%s591 + $0x20] sm:$0xff] %v2360
        %2379 = vst [vmem:[%s591 + $0x28] sm:$0xff] %v2363
        %2380 = vst [vmem:[%s591 + $0x30] sm:$0xff] %v2368
        %2381 = vst [vmem:[%s591 + $0x38] sm:$0xff] %v2371
        %s2382 = sand.u32 %s300, 1
        %s2383 = scalar_lea.sflag [#allocation4], %s2382
        %s2384 = sand.u32 %s300, 1
        %s2385 = smul.addr %s2384, 64
        %s2386 = scalar_lea.vmem [#allocation22], %s2385
        // Predicated region
        $region117: #{_forward_impl.1} parent=67 // pred_check
          %p2387 = pneg %p310
        $region118: #{_forward_impl.1} parent=67 // pred_check_branch
          %2389 = sbr.rel (%p2387) target = $region120
        $region119: #{_forward_impl.1} parent=67 // pred_region
          %s2391 = ssub.s32 1024, 1024
          %2392 = vsyncadd %s2383, %s2391
          %s2393 = smul.addr %s35, 8
          %s2394 = smul.addr %s2393, 128
          %s2395 = scalar_lea.hbm %s12, %s2394
          %s2396 = sshll.u32 %s2386, 4
          %s2397 = int_to_ptr.vmem [resolvable:$true] %s2396
          %2402 = dma.vmem_to_hbm [thread:$0]  %s2397, 1024, %s2395, %s2383, 128, 128, 8
        $region120: #{_forward_impl.1} parent=67 // pred_fallthru
          _
      $region68: #{_forward_impl.1} parent=5 // pred_fallthru
        _
      %p2403 = scmp.le.s32.totalorder 2, %s30
      // Predicated region
      $region121: #{_forward_impl.1} parent=5 // pred_check
        %p2404 = pneg %p2403
      $region122: #{_forward_impl.1} parent=5 // pred_check_branch
        %2406 = sbr.rel (%p2404) target = $region124
      $region123: #{_forward_impl.1} parent=5 // pred_region
        %s2407 = ssub.s32 %s30, 2
        // Predicated region
        $region125: #{_forward_impl.1} parent=123 // pred_check
          %p2408 = pneg %p316
        $region126: #{_forward_impl.1} parent=123 // pred_check_branch
          %2410 = sbr.rel (%p2408) target = $region128
        $region127: #{_forward_impl.1} parent=123 // pred_region
          %s2411 = sand.u32 %s301, 1
          %s2412 = scalar_lea.sflag [#allocation4], %s2411
          %s2413 = sand.u32 %s301, 1
          %s2414 = smul.addr %s2413, 64
          %s2415 = scalar_lea.vmem [#allocation22], %s2414
          %2416 = dma.done %s2412, 1024
        $region128: #{_forward_impl.1} parent=123 // pred_fallthru
          _
      $region124: #{_forward_impl.1} parent=5 // pred_fallthru
        _
    $region6: #{_forward_impl.1} parent=1 // loop_footer
      %s34 = sadd.s32 1, %s30
    $region7: #{_forward_impl.1} parent=1 // loop_footer_branch
      %29 = sbr.rel target = $region3
    $region8: #{_forward_impl.1} parent=1 // loop_exit
      _
    %2417 = vsyncpa [#allocation3], 1
    %s2418 = scalar_lea.sflag [#allocation3], 1
    %2419 = vsyncpa %s2418, 1
    %2420 = vsyncpa [#allocation6], 1
    %2421 = vsyncpa [#allocation9], 1
    %2422 = vsyncpa [#allocation12], 1
    %2423 = vsyncpa [#allocation15], 1
    %2424 = vsyncpa [#allocation18], 1
    %2425 = vsyncpa [#allocation21], 1
    %2426 = vsyncpa [#allocation4], 1
    %s2427 = scalar_lea.sflag [#allocation4], 1
    %2428 = vsyncpa %s2427, 1

// kernel: squeeze.33
$region0: #{squeeze.33}
  %s0 = inlined_call_operand.vmem [shape: f32[24,4], index: 0, kind: input, shape index: {}]
  %s1 = inlined_call_operand.vmem [shape: f32[3,8,4], index: 1, kind: output, shape index: {}]
  $region1: #{squeeze.33} parent=0
    #allocation0 [shape = 'u8[16384]{0}', space=vmem, size = 0x4000, scoped, tag = 'scoped mem for output reshape']
    #allocation1 [shape = 'u8[4096]{0}', space=vmem, size = 0x1000, scoped, tag = 'scoped mem for input reshape']
    %s3 = sshllo.u32 0, 4
    %v4 = vld [vmem:[%s0] sm:%s3]
    %5 = vst [vmem:[#allocation1] sm:%s3] %v4
    %v6 = vld [vmem:[#allocation1] sm:$0xf]
    %vm7 = vcmask 64512
    %8 = vst.msk [vmem:[#allocation0] ss:$8 sm:$0xf] %vm7, %v6
    %v9 = vld [vmem:[#allocation1] sm:$0xf]
    %10 = vrot.lane.b32.xlu0 %v9, 120
    %v11 = vpop.permute.xlu0 %10
    %vm12 = vcmask 64512
    %s13 = scalar_lea.vmem [#allocation0], 1
    %14 = vst.msk [vmem:[%s13] ss:$8 sm:$0xf] %vm12, %v11
    %v15 = vld [vmem:[#allocation1] sm:$0xf]
    %16 = vrot.lane.b32.xlu0 %v15, 112
    %v17 = vpop.permute.xlu0 %16
    %vm18 = vcmask 64512
    %s19 = scalar_lea.vmem [#allocation0], 2
    %20 = vst.msk [vmem:[%s19] ss:$8 sm:$0xf] %vm18, %v17
    %s22 = sshllo.u32 0, 4
    %v24 = vld [vmem:[#allocation0] sm:%s22]
    %s25 = sshllo.u32 0, 4
    %26 = vst [vmem:[%s1] sm:%s25] %v24
    %s27 = scalar_lea.vmem [#allocation0], 8
    %v28 = vld [vmem:[%s27] sm:%s22]
    %s29 = sshllo.u32 0, 4
    %s30 = scalar_lea.vmem %s1, 4
    %31 = vst [vmem:[%s30] sm:%s29] %v28
    %s32 = scalar_lea.vmem [#allocation0], 16
    %v33 = vld [vmem:[%s32] sm:%s22]
    %s34 = sshllo.u32 0, 4
    %s35 = smul.addr 4, 2
    %s36 = scalar_lea.vmem %s1, %s35
    %37 = vst [vmem:[%s36] sm:%s34] %v33
    %s38 = scalar_lea.vmem [#allocation0], 24
    %v39 = vld [vmem:[%s38] sm:%s22]
    %s40 = sshllo.u32 0, 4
    %s41 = smul.addr 4, 3
    %s42 = scalar_lea.vmem %s1, %s41
    %43 = vst [vmem:[%s42] sm:%s40] %v39

// kernel: tile.30
$region0: #{tile.30}
  %s0 = inlined_call_operand.vmem [shape: f32[8,16], index: 0, kind: input, shape index: {}]
  %s1 = inlined_call_operand.vmem [shape: f32[128], index: 1, kind: output, shape index: {}]
  $region1: #{tile.30} parent=0
    #allocation0 [shape = 'u8[4096]{0}', space=vmem, size = 0x1000, scoped, tag = 'scoped mem for output reshape']
    %v2 = vld [vmem:[%s0] sm:$0x1]
    %vm3 = vcmask 130048
    %4 = vst.msk [vmem:[#allocation0] sm:$0x1] %vm3, %v2
    %s5 = scalar_lea.vmem %s0, 7
    %v6 = vld [vmem:[%s5] sm:$0x1]
    %7 = vrot.lane.b32.xlu0 %v6, 112
    %v8 = vpop.permute.xlu0 %7
    %vm9 = vcmask 1048448
    %10 = vst.msk [vmem:[#allocation0] sm:$0x1] %vm9, %v8
    %s11 = scalar_lea.vmem %s0, 6
    %v12 = vld [vmem:[%s11] sm:$0x1]
    %13 = vrot.lane.b32.xlu0 %v12, 96
    %v14 = vpop.permute.xlu0 %13
    %vm15 = vcmask 917248
    %16 = vst.msk [vmem:[#allocation0] sm:$0x1] %vm15, %v14
    %s17 = scalar_lea.vmem %s0, 5
    %v18 = vld [vmem:[%s17] sm:$0x1]
    %19 = vrot.lane.b32.xlu0 %v18, 80
    %v20 = vpop.permute.xlu0 %19
    %vm21 = vcmask 786048
    %22 = vst.msk [vmem:[#allocation0] sm:$0x1] %vm21, %v20
    %s23 = scalar_lea.vmem %s0, 4
    %v24 = vld [vmem:[%s23] sm:$0x1]
    %25 = vrot.lane.b32.xlu0 %v24, 64
    %v26 = vpop.permute.xlu0 %25
    %vm27 = vcmask 654848
    %28 = vst.msk [vmem:[#allocation0] sm:$0x1] %vm27, %v26
    %s29 = scalar_lea.vmem %s0, 3
    %v30 = vld [vmem:[%s29] sm:$0x1]
    %31 = vrot.lane.b32.xlu0 %v30, 48
    %v32 = vpop.permute.xlu0 %31
    %vm33 = vcmask 523648
    %34 = vst.msk [vmem:[#allocation0] sm:$0x1] %vm33, %v32
    %s35 = scalar_lea.vmem %s0, 2
    %v36 = vld [vmem:[%s35] sm:$0x1]
    %37 = vrot.lane.b32.xlu0 %v36, 32
    %v38 = vpop.permute.xlu0 %37
    %vm39 = vcmask 392448
    %40 = vst.msk [vmem:[#allocation0] sm:$0x1] %vm39, %v38
    %s41 = scalar_lea.vmem %s0, 1
    %v42 = vld [vmem:[%s41] sm:$0x1]
    %43 = vrot.lane.b32.xlu0 %v42, 16
    %v44 = vpop.permute.xlu0 %43
    %vm45 = vcmask 261248
    %46 = vst.msk [vmem:[#allocation0] sm:$0x1] %vm45, %v44
    %s48 = sshllo.u32 0, 1
    %v50 = vld [vmem:[#allocation0] sm:%s48]
    %s51 = sshllo.u32 0, 1
    %52 = vst [vmem:[%s1] sm:%s51] %v50

// kernel: squeeze.25
$region0: #{squeeze.25}
  %s0 = inlined_call_operand.vmem [shape: f32[12,4], index: 0, kind: input, shape index: {}]
  %s1 = inlined_call_operand.vmem [shape: f32[3,4,4], index: 1, kind: output, shape index: {}]
  $region1: #{squeeze.25} parent=0
    #allocation0 [shape = 'u8[16384]{0}', space=vmem, size = 0x4000, scoped, tag = 'scoped mem for output reshape']
    #allocation1 [shape = 'u8[4096]{0}', space=vmem, size = 0x1000, scoped, tag = 'scoped mem for input reshape']
    %s3 = sshllo.u32 0, 4
    %v4 = vld [vmem:[%s0] sm:%s3]
    %5 = vst [vmem:[#allocation1] sm:%s3] %v4
    %v6 = vld [vmem:[#allocation1] sm:$0xf]
    %vm7 = vcmask 31744
    %8 = vst.msk [vmem:[#allocation0] ss:$8 sm:$0xf] %vm7, %v6
    %v9 = vld [vmem:[#allocation1] sm:$0xf]
    %10 = vrot.lane.b32.xlu0 %v9, 124
    %v11 = vpop.permute.xlu0 %10
    %vm12 = vcmask 31744
    %s13 = scalar_lea.vmem [#allocation0], 1
    %14 = vst.msk [vmem:[%s13] ss:$8 sm:$0xf] %vm12, %v11
    %v15 = vld [vmem:[#allocation1] sm:$0xf]
    %16 = vrot.lane.b32.xlu0 %v15, 120
    %v17 = vpop.permute.xlu0 %16
    %vm18 = vcmask 31744
    %s19 = scalar_lea.vmem [#allocation0], 2
    %20 = vst.msk [vmem:[%s19] ss:$8 sm:$0xf] %vm18, %v17
    %s22 = sshllo.u32 0, 4
    %v24 = vld [vmem:[#allocation0] sm:%s22]
    %s25 = sshllo.u32 0, 4
    %26 = vst [vmem:[%s1] sm:%s25] %v24
    %s27 = scalar_lea.vmem [#allocation0], 8
    %v28 = vld [vmem:[%s27] sm:%s22]
    %s29 = sshllo.u32 0, 4
    %s30 = scalar_lea.vmem %s1, 4
    %31 = vst [vmem:[%s30] sm:%s29] %v28
    %s32 = scalar_lea.vmem [#allocation0], 16
    %v33 = vld [vmem:[%s32] sm:%s22]
    %s34 = sshllo.u32 0, 4
    %s35 = smul.addr 4, 2
    %s36 = scalar_lea.vmem %s1, %s35
    %37 = vst [vmem:[%s36] sm:%s34] %v33
    %s38 = scalar_lea.vmem [#allocation0], 24
    %v39 = vld [vmem:[%s38] sm:%s22]
    %s40 = sshllo.u32 0, 4
    %s41 = smul.addr 4, 3
    %s42 = scalar_lea.vmem %s1, %s41
    %43 = vst [vmem:[%s42] sm:%s40] %v39

// kernel: tile.22
$region0: #{tile.22}
  %s0 = inlined_call_operand.vmem [shape: f32[4,16], index: 0, kind: input, shape index: {}]
  %s1 = inlined_call_operand.vmem [shape: f32[64], index: 1, kind: output, shape index: {}]
  $region1: #{tile.22} parent=0
    #allocation0 [shape = 'u8[4096]{0}', space=vmem, size = 0x1000, scoped, tag = 'scoped mem for output reshape']
    #allocation1 [shape = 'u8[4096]{0}', space=vmem, size = 0x1000, scoped, tag = 'scoped mem for input reshape']
    %s3 = sshllo.u32 0, 4
    %v4 = vld [vmem:[%s0] sm:%s3]
    %5 = vst [vmem:[#allocation1] sm:%s3] %v4
    %v6 = vld [vmem:[#allocation1] sm:$0x1]
    %vm7 = vcmask 130048
    %8 = vst.msk [vmem:[#allocation0] sm:$0x1] %vm7, %v6
    %s9 = scalar_lea.vmem [#allocation1], 3
    %v10 = vld [vmem:[%s9] sm:$0x1]
    %11 = vrot.lane.b32.xlu0 %v10, 48
    %v12 = vpop.permute.xlu0 %11
    %vm13 = vcmask 523648
    %14 = vst.msk [vmem:[#allocation0] sm:$0x1] %vm13, %v12
    %s15 = scalar_lea.vmem [#allocation1], 2
    %v16 = vld [vmem:[%s15] sm:$0x1]
    %17 = vrot.lane.b32.xlu0 %v16, 32
    %v18 = vpop.permute.xlu0 %17
    %vm19 = vcmask 392448
    %20 = vst.msk [vmem:[#allocation0] sm:$0x1] %vm19, %v18
    %s21 = scalar_lea.vmem [#allocation1], 1
    %v22 = vld [vmem:[%s21] sm:$0x1]
    %23 = vrot.lane.b32.xlu0 %v22, 16
    %v24 = vpop.permute.xlu0 %23
    %vm25 = vcmask 261248
    %26 = vst.msk [vmem:[#allocation0] sm:$0x1] %vm25, %v24
    %s28 = sshllo.u32 0, 1
    %v30 = vld [vmem:[#allocation0] sm:%s28]
    %s31 = sshllo.u32 0, 1
    %32 = vst [vmem:[%s1] sm:%s31] %v30

// kernel: tile.23
$region0: #{tile.23}
  #allocation0 [shape = 's32[1]{0}', space=sflag, size = 0x4, scoped, tag = 'scoped memory for tile.23']
  %s0 = inlined_call_operand.vmem [shape: f32[64], index: 0, kind: input, shape index: {}]
  %s1 = inlined_call_operand.vmem [shape: f32[3,64], index: 1, kind: output, shape index: {}]
  // Predicated region
  $region2: #{tile.23} parent=0 // pred_check
    _
  $region3: #{tile.23} parent=0 // pred_check_branch
    %3 = sbr.rel (0) target = $region5
  $region4: #{tile.23} parent=0 // pred_region
    _
  $region5: #{tile.23} parent=0 // pred_fallthru
    _
  %v4 = vld [vmem:[%s0] ss:$0 sm:$0xff]
  %5 = vst [vmem:[%s1] sm:$0xf] %v4

// kernel: mul.114
$region0: #{mul.114}
  %s0 = inlined_call_operand.vmem [shape: f32[3,64], index: 0, kind: input, shape index: {}]
  %s1 = inlined_call_operand.vmem [shape: f32[192], index: 1, kind: output, shape index: {}]
  $region1: #{mul.114} parent=0
    #allocation0 [shape = 'u8[4096]{0}', space=vmem, size = 0x1000, scoped, tag = 'scoped mem for output reshape']
    #allocation1 [shape = 'u8[4096]{0}', space=vmem, size = 0x1000, scoped, tag = 'scoped mem for input reshape']
    %s3 = sshllo.u32 0, 4
    %v4 = vld [vmem:[%s0] sm:%s3]
    %5 = vst [vmem:[#allocation1] sm:%s3] %v4
    %s6 = smov 3
    %v7 = vld [vmem:[#allocation1] ss:$2 sm:%s6]
    %vm8 = vcmask 523264
    %9 = vst.msk [vmem:[#allocation0] sm:$0x3] %vm8, %v7
    %s10 = scalar_lea.vmem [#allocation1], 1
    %v11 = vld [vmem:[%s10] sm:$0x1]
    %12 = vrot.lane.b32.xlu0 %v11, 64
    %v13 = vpop.permute.xlu0 %12
    %vm14 = vcmask 1048064
    %15 = vst.msk [vmem:[#allocation0] sm:$0x1] %vm14, %v13
    %s17 = sshllo.u32 0, 2
    %v19 = vld [vmem:[#allocation0] sm:%s17]
    %s20 = sshllo.u32 0, 2
    %21 = vst [vmem:[%s1] sm:%s20] %v19

// kernel: mul.108
$region0: #{mul.108}
  %s0 = inlined_call_operand.vmem [shape: f32[8,8], index: 0, kind: input, shape index: {}]
  %s1 = inlined_call_operand.vmem [shape: f32[64], index: 1, kind: output, shape index: {}]
  $region1: #{mul.108} parent=0
    #allocation0 [shape = 'u8[4096]{0}', space=vmem, size = 0x1000, scoped, tag = 'scoped mem for output reshape']
    %v2 = vld [vmem:[%s0] sm:$0x1]
    %vm3 = vcmask 64512
    %4 = vst.msk [vmem:[#allocation0] sm:$0x1] %vm3, %v2
    %s5 = scalar_lea.vmem %s0, 7
    %v6 = vld [vmem:[%s5] sm:$0x1]
    %7 = vrot.lane.b32.xlu0 %v6, 56
    %v8 = vpop.permute.xlu0 %7
    %vm9 = vcmask 523712
    %10 = vst.msk [vmem:[#allocation0] sm:$0x1] %vm9, %v8
    %s11 = scalar_lea.vmem %s0, 6
    %v12 = vld [vmem:[%s11] sm:$0x1]
    %13 = vrot.lane.b32.xlu0 %v12, 48
    %v14 = vpop.permute.xlu0 %13
    %vm15 = vcmask 458112
    %16 = vst.msk [vmem:[#allocation0] sm:$0x1] %vm15, %v14
    %s17 = scalar_lea.vmem %s0, 5
    %v18 = vld [vmem:[%s17] sm:$0x1]
    %19 = vrot.lane.b32.xlu0 %v18, 40
    %v20 = vpop.permute.xlu0 %19
    %vm21 = vcmask 392512
    %22 = vst.msk [vmem:[#allocation0] sm:$0x1] %vm21, %v20
    %s23 = scalar_lea.vmem %s0, 4
    %v24 = vld [vmem:[%s23] sm:$0x1]
    %25 = vrot.lane.b32.xlu0 %v24, 32
    %v26 = vpop.permute.xlu0 %25
    %vm27 = vcmask 326912
    %28 = vst.msk [vmem:[#allocation0] sm:$0x1] %vm27, %v26
    %s29 = scalar_lea.vmem %s0, 3
    %v30 = vld [vmem:[%s29] sm:$0x1]
    %31 = vrot.lane.b32.xlu0 %v30, 24
    %v32 = vpop.permute.xlu0 %31
    %vm33 = vcmask 261312
    %34 = vst.msk [vmem:[#allocation0] sm:$0x1] %vm33, %v32
    %s35 = scalar_lea.vmem %s0, 2
    %v36 = vld [vmem:[%s35] sm:$0x1]
    %37 = vrot.lane.b32.xlu0 %v36, 16
    %v38 = vpop.permute.xlu0 %37
    %vm39 = vcmask 195712
    %40 = vst.msk [vmem:[#allocation0] sm:$0x1] %vm39, %v38
    %s41 = scalar_lea.vmem %s0, 1
    %v42 = vld [vmem:[%s41] sm:$0x1]
    %43 = vrot.lane.b32.xlu0 %v42, 8
    %v44 = vpop.permute.xlu0 %43
    %vm45 = vcmask 130112
    %46 = vst.msk [vmem:[#allocation0] sm:$0x1] %vm45, %v44
    %s48 = sshllo.u32 0, 1
    %v50 = vld [vmem:[#allocation0] sm:%s48]
    %s51 = sshllo.u32 0, 1
    %52 = vst [vmem:[%s1] sm:%s51] %v50

// kernel: tile.41
$region0: #{tile.41}
  %s0 = inlined_call_operand.vmem [shape: f32[128,5,25], index: 0, kind: input, shape index: {}]
  %s1 = inlined_call_operand.vmem [shape: f32[128,125], index: 1, kind: output, shape index: {}]
  %v2 = vld [vmem:[%s0] sm:$0xff]
  %3 = vst [vmem:[%s1] sm:$0xff] %v2
  %s4 = scalar_lea.vmem %s0, 8
  %v5 = vld [vmem:[%s4] sm:$0xff]
  %s6 = scalar_lea.vmem %s1, 8
  %7 = vst [vmem:[%s6] sm:$0xff] %v5
  %s8 = scalar_lea.vmem %s0, 16
  %v9 = vld [vmem:[%s8] sm:$0xff]
  %s10 = scalar_lea.vmem %s1, 16
  %11 = vst [vmem:[%s10] sm:$0xff] %v9
  %s12 = scalar_lea.vmem %s0, 24
  %s13 = smov 3
  %v14 = vld [vmem:[%s12] ss:$8 sm:%s13]
  %s15 = scalar_lea.vmem %s1, 24
  %16 = vst [vmem:[%s15] sm:$0x3] %v14
  %s17 = scalar_lea.vmem %s0, 33
  %v18 = vld [vmem:[%s17] sm:$0xff]
  %s19 = scalar_lea.vmem %s1, 26
  %20 = vst [vmem:[%s19] sm:$0xff] %v18
  %s21 = scalar_lea.vmem %s0, 41
  %v22 = vld [vmem:[%s21] sm:$0xff]
  %s23 = scalar_lea.vmem %s1, 34
  %24 = vst [vmem:[%s23] sm:$0xff] %v22
  %s25 = scalar_lea.vmem %s0, 49
  %v26 = vld [vmem:[%s25] sm:$0xff]
  %s27 = scalar_lea.vmem %s1, 42
  %28 = vst [vmem:[%s27] sm:$0xff] %v26
  %s29 = scalar_lea.vmem %s0, 64
  %v30 = vld [vmem:[%s29] sm:$0xff]
  %s31 = scalar_lea.vmem %s1, 50
  %32 = vst [vmem:[%s31] sm:$0xff] %v30
  %s33 = scalar_lea.vmem %s0, 72
  %v34 = vld [vmem:[%s33] sm:$0xff]
  %s35 = scalar_lea.vmem %s1, 58
  %36 = vst [vmem:[%s35] sm:$0xff] %v34
  %s37 = scalar_lea.vmem %s0, 80
  %v38 = vld [vmem:[%s37] sm:$0xff]
  %s39 = scalar_lea.vmem %s1, 66
  %40 = vst [vmem:[%s39] sm:$0xff] %v38
  %s41 = scalar_lea.vmem %s0, 88
  %s42 = smov 3
  %v43 = vld [vmem:[%s41] ss:$8 sm:%s42]
  %s44 = scalar_lea.vmem %s1, 74
  %45 = vst [vmem:[%s44] sm:$0x3] %v43
  %s46 = scalar_lea.vmem %s0, 97
  %v47 = vld [vmem:[%s46] sm:$0xff]
  %s48 = scalar_lea.vmem %s1, 76
  %49 = vst [vmem:[%s48] sm:$0xff] %v47
  %s50 = scalar_lea.vmem %s0, 105
  %v51 = vld [vmem:[%s50] sm:$0xff]
  %s52 = scalar_lea.vmem %s1, 84
  %53 = vst [vmem:[%s52] sm:$0xff] %v51
  %s54 = scalar_lea.vmem %s0, 113
  %v55 = vld [vmem:[%s54] sm:$0xff]
  %s56 = scalar_lea.vmem %s1, 92
  %57 = vst [vmem:[%s56] sm:$0xff] %v55
  %s58 = scalar_lea.vmem %s0, 128
  %v59 = vld [vmem:[%s58] sm:$0xff]
  %s60 = scalar_lea.vmem %s1, 100
  %61 = vst [vmem:[%s60] sm:$0xff] %v59
  %s62 = scalar_lea.vmem %s0, 136
  %v63 = vld [vmem:[%s62] sm:$0xff]
  %s64 = scalar_lea.vmem %s1, 108
  %65 = vst [vmem:[%s64] sm:$0xff] %v63
  %s66 = scalar_lea.vmem %s0, 144
  %v67 = vld [vmem:[%s66] sm:$0xff]
  %s68 = scalar_lea.vmem %s1, 116
  %69 = vst [vmem:[%s68] sm:$0xff] %v67
  %s70 = scalar_lea.vmem %s0, 152
  %v71 = vld [vmem:[%s70] sm:$0x1]
  %s72 = scalar_lea.vmem %s1, 124
  %73 = vst [vmem:[%s72] sm:$0x1] %v71

// kernel: tile.28
$region0: #{tile.28}
  %s0 = inlined_call_operand.vmem [shape: f32[64,5,25], index: 0, kind: input, shape index: {}]
  %s1 = inlined_call_operand.vmem [shape: f32[64,125], index: 1, kind: output, shape index: {}]
  %v2 = vld [vmem:[%s0] sm:$0xff]
  %vm3 = vcmask 523264
  %4 = vst.msk [vmem:[%s1] sm:$0xff] %vm3, %v2
  %s5 = scalar_lea.vmem %s0, 8
  %v6 = vld [vmem:[%s5] sm:$0xff]
  %vm7 = vcmask 523264
  %s8 = scalar_lea.vmem %s1, 8
  %9 = vst.msk [vmem:[%s8] sm:$0xff] %vm7, %v6
  %s10 = scalar_lea.vmem %s0, 16
  %v11 = vld [vmem:[%s10] sm:$0xff]
  %vm12 = vcmask 523264
  %s13 = scalar_lea.vmem %s1, 16
  %14 = vst.msk [vmem:[%s13] sm:$0xff] %vm12, %v11
  %s15 = scalar_lea.vmem %s0, 24
  %s16 = smov 3
  %v17 = vld [vmem:[%s15] ss:$8 sm:%s16]
  %vm18 = vcmask 523264
  %s19 = scalar_lea.vmem %s1, 24
  %20 = vst.msk [vmem:[%s19] sm:$0x3] %vm18, %v17
  %s21 = scalar_lea.vmem %s0, 33
  %v22 = vld [vmem:[%s21] sm:$0xff]
  %vm23 = vcmask 523264
  %s24 = scalar_lea.vmem %s1, 26
  %25 = vst.msk [vmem:[%s24] sm:$0xff] %vm23, %v22
  %s26 = scalar_lea.vmem %s0, 41
  %v27 = vld [vmem:[%s26] sm:$0xff]
  %vm28 = vcmask 523264
  %s29 = scalar_lea.vmem %s1, 34
  %30 = vst.msk [vmem:[%s29] sm:$0xff] %vm28, %v27
  %s31 = scalar_lea.vmem %s0, 49
  %v32 = vld [vmem:[%s31] sm:$0xff]
  %vm33 = vcmask 523264
  %s34 = scalar_lea.vmem %s1, 42
  %35 = vst.msk [vmem:[%s34] sm:$0xff] %vm33, %v32
  %s36 = scalar_lea.vmem %s0, 64
  %v37 = vld [vmem:[%s36] sm:$0xff]
  %vm38 = vcmask 523264
  %s39 = scalar_lea.vmem %s1, 50
  %40 = vst.msk [vmem:[%s39] sm:$0xff] %vm38, %v37
  %s41 = scalar_lea.vmem %s0, 72
  %v42 = vld [vmem:[%s41] sm:$0xff]
  %vm43 = vcmask 523264
  %s44 = scalar_lea.vmem %s1, 58
  %45 = vst.msk [vmem:[%s44] sm:$0xff] %vm43, %v42
  %s46 = scalar_lea.vmem %s0, 80
  %v47 = vld [vmem:[%s46] sm:$0xff]
  %vm48 = vcmask 523264
  %s49 = scalar_lea.vmem %s1, 66
  %50 = vst.msk [vmem:[%s49] sm:$0xff] %vm48, %v47
  %s51 = scalar_lea.vmem %s0, 88
  %s52 = smov 3
  %v53 = vld [vmem:[%s51] ss:$8 sm:%s52]
  %vm54 = vcmask 523264
  %s55 = scalar_lea.vmem %s1, 74
  %56 = vst.msk [vmem:[%s55] sm:$0x3] %vm54, %v53
  %s57 = scalar_lea.vmem %s0, 97
  %v58 = vld [vmem:[%s57] sm:$0xff]
  %vm59 = vcmask 523264
  %s60 = scalar_lea.vmem %s1, 76
  %61 = vst.msk [vmem:[%s60] sm:$0xff] %vm59, %v58
  %s62 = scalar_lea.vmem %s0, 105
  %v63 = vld [vmem:[%s62] sm:$0xff]
  %vm64 = vcmask 523264
  %s65 = scalar_lea.vmem %s1, 84
  %66 = vst.msk [vmem:[%s65] sm:$0xff] %vm64, %v63
  %s67 = scalar_lea.vmem %s0, 113
  %v68 = vld [vmem:[%s67] sm:$0xff]
  %vm69 = vcmask 523264
  %s70 = scalar_lea.vmem %s1, 92
  %71 = vst.msk [vmem:[%s70] sm:$0xff] %vm69, %v68
  %s72 = scalar_lea.vmem %s0, 128
  %v73 = vld [vmem:[%s72] sm:$0xff]
  %vm74 = vcmask 523264
  %s75 = scalar_lea.vmem %s1, 100
  %76 = vst.msk [vmem:[%s75] sm:$0xff] %vm74, %v73
  %s77 = scalar_lea.vmem %s0, 136
  %v78 = vld [vmem:[%s77] sm:$0xff]
  %vm79 = vcmask 523264
  %s80 = scalar_lea.vmem %s1, 108
  %81 = vst.msk [vmem:[%s80] sm:$0xff] %vm79, %v78
  %s82 = scalar_lea.vmem %s0, 144
  %v83 = vld [vmem:[%s82] sm:$0xff]
  %vm84 = vcmask 523264
  %s85 = scalar_lea.vmem %s1, 116
  %86 = vst.msk [vmem:[%s85] sm:$0xff] %vm84, %v83
  %s87 = scalar_lea.vmem %s0, 152
  %v88 = vld [vmem:[%s87] sm:$0x1]
  %vm89 = vcmask 523264
  %s90 = scalar_lea.vmem %s1, 124
  %91 = vst.msk [vmem:[%s90] sm:$0x1] %vm89, %v88

// kernel: tile.37
$region0: #{tile.37}
  %s0 = inlined_call_operand.vmem [shape: f32[3,5,25], index: 0, kind: input, shape index: {}]
  %s1 = inlined_call_operand.vmem [shape: f32[3,125], index: 1, kind: output, shape index: {}]
  $region1: #{tile.37} parent=0
    #allocation0 [shape = 'u8[4096]{0}', space=vmem, size = 0x1000, scoped, tag = 'scoped mem for output reshape']
    %v2 = vld [vmem:[%s0] ss:$8 sm:$0x7]
    %vm3 = vcmask 203776
    %4 = vst.msk [vmem:[#allocation0] sm:$0x7] %vm3, %v2
    %s5 = scalar_lea.vmem %s0, 4
    %v6 = vld [vmem:[%s5] ss:$8 sm:$0x7]
    %7 = vrot.lane.b32.xlu0 %v6, 100
    %v8 = vpop.permute.xlu0 %7
    %vm9 = vcmask 1023776
    %10 = vst.msk [vmem:[#allocation0] sm:$0x7] %vm9, %v8
    %s11 = scalar_lea.vmem %s0, 3
    %v12 = vld [vmem:[%s11] ss:$8 sm:$0x7]
    %13 = vrot.lane.b32.xlu0 %v12, 75
    %v14 = vpop.permute.xlu0 %13
    %vm15 = vcmask 818776
    %16 = vst.msk [vmem:[#allocation0] sm:$0x7] %vm15, %v14
    %s17 = scalar_lea.vmem %s0, 2
    %v18 = vld [vmem:[%s17] ss:$8 sm:$0x7]
    %19 = vrot.lane.b32.xlu0 %v18, 50
    %v20 = vpop.permute.xlu0 %19
    %vm21 = vcmask 613776
    %22 = vst.msk [vmem:[#allocation0] sm:$0x7] %vm21, %v20
    %s23 = scalar_lea.vmem %s0, 1
    %v24 = vld [vmem:[%s23] ss:$8 sm:$0x7]
    %25 = vrot.lane.b32.xlu0 %v24, 25
    %v26 = vpop.permute.xlu0 %25
    %vm27 = vcmask 408776
    %28 = vst.msk [vmem:[#allocation0] sm:$0x7] %vm27, %v26
    %s30 = sshllo.u32 0, 4
    %v32 = vld [vmem:[#allocation0] sm:%s30]
    %s33 = sshllo.u32 0, 4
    %34 = vst [vmem:[%s1] sm:%s33] %v32

// kernel: _forward_impl.1
$region0: #{_forward_impl.1}
  #allocation0 [shape = 'u32[]', space=smem, size = 0x4, offset = 0x4, fixed_abs, tag = 'smem constant byte address 0x4 - core index']
  #allocation1 [shape = 'u32[144,128]{1,0:T(1,128)}', space=vmem, size = 0x12000, scoped, tag = 'internal scratch']
  %s0 = inlined_call_operand.hbm [shape: bf16[2,64,128], index: 0, kind: input, shape index: {}]
  %s1 = inlined_call_operand.hbm [shape: bf16[640,64], index: 1, kind: input, shape index: {}]
  %s2 = inlined_call_operand.hbm [shape: bf16[3,128,128], index: 2, kind: input, shape index: {}]
  %s3 = inlined_call_operand.hbm [shape: f32[3,1,128], index: 3, kind: input, shape index: {}]
  %s4 = inlined_call_operand.hbm [shape: bf16[64,64], index: 4, kind: input, shape index: {}]
  %s5 = inlined_call_operand.hbm [shape: bf16[64,128], index: 5, kind: input, shape index: {}]
  %s6 = inlined_call_operand.hbm [shape: bf16[128,128], index: 6, kind: input, shape index: {}]
  %s7 = inlined_call_operand.hbm [shape: f32[64,128], index: 7, kind: input, shape index: {}]
  %s8 = inlined_call_operand.hbm [shape: f32[64,128], index: 8, kind: input, shape index: {}]
  %s9 = inlined_call_operand.hbm [shape: f32[64,128], index: 9, kind: input, shape index: {}]
  %s10 = inlined_call_operand.hbm [shape: f32[128,128], index: 10, kind: input, shape index: {}]
  %s11 = inlined_call_operand.hbm [shape: f32[64,128], index: 11, kind: input, shape index: {}]
  %s12 = inlined_call_operand.hbm [shape: f32[2,64,128], index: 12, kind: output, shape index: {}]
  %s13 = sld [smem:[#allocation0]]
  $region129: #{_forward_impl.1} parent=0
    _
  %s15 = ssub.s32 1, %s13
  %s16 = scalar_select 0, %s15, %s13
  $region1: #{_forward_impl.1} parent=0
    #allocation2 [shape = 'u8[32768]{0}', space=vmem, size = 0x8000, scoped, tag = 'input window, operand 0']
    #allocation3 [shape = 's32[2]{0}', space=sflag, size = 0x8, scoped, tag = 'scoped memory for _forward_impl.1']
    #allocation4 [shape = 's32[2]{0}', space=sflag, size = 0x8, scoped, tag = 'scoped memory for _forward_impl.1']
    #allocation5 [shape = 'u8[163840]{0}', space=vmem, size = 0x28000, scoped, tag = 'input window, operand 1, single buffered']
    #allocation6 [shape = 's32[1]{0}', space=sflag, size = 0x4, scoped, tag = 'scoped memory for _forward_impl.1']
    #allocation7 [shape = 'u8[98304]{0}', space=vmem, size = 0x18000, scoped, tag = 'input window, operand 2, single buffered']
    #allocation8 [shape = 'u8[1536]{0}', space=vmem, size = 0x800, scoped, tag = 'input window, operand 3, single buffered']
    #allocation9 [shape = 's32[1]{0}', space=sflag, size = 0x4, scoped, tag = 'scoped memory for _forward_impl.1']
    #allocation10 [shape = 'u8[16384]{0}', space=vmem, size = 0x4000, scoped, tag = 'input window, operand 4, single buffered']
    #allocation11 [shape = 'u8[16384]{0}', space=vmem, size = 0x4000, scoped, tag = 'input window, operand 5, single buffered']
    #allocation12 [shape = 's32[1]{0}', space=sflag, size = 0x4, scoped, tag = 'scoped memory for _forward_impl.1']
    #allocation13 [shape = 'u8[32768]{0}', space=vmem, size = 0x8000, scoped, tag = 'input window, operand 6, single buffered']
    #allocation14 [shape = 'u8[32768]{0}', space=vmem, size = 0x8000, scoped, tag = 'input window, operand 7, single buffered']
    #allocation15 [shape = 's32[1]{0}', space=sflag, size = 0x4, scoped, tag = 'scoped memory for _forward_impl.1']
    #allocation16 [shape = 'u8[32768]{0}', space=vmem, size = 0x8000, scoped, tag = 'input window, operand 8, single buffered']
    #allocation17 [shape = 'u8[32768]{0}', space=vmem, size = 0x8000, scoped, tag = 'input window, operand 9, single buffered']
    #allocation18 [shape = 's32[1]{0}', space=sflag, size = 0x4, scoped, tag = 'scoped memory for _forward_impl.1']
    #allocation19 [shape = 'u8[65536]{0}', space=vmem, size = 0x10000, scoped, tag = 'input window, operand 10, single buffered']
    #allocation20 [shape = 'u8[32768]{0}', space=vmem, size = 0x8000, scoped, tag = 'input window, operand 11, single buffered']
    #allocation21 [shape = 's32[1]{0}', space=sflag, size = 0x4, scoped, tag = 'scoped memory for _forward_impl.1']
    #allocation22 [shape = 'u8[65536]{0}', space=vmem, size = 0x10000, scoped, tag = 'output window, operand 0']
    %17 = vsyncpa [#allocation3], 0
    %s18 = scalar_lea.sflag [#allocation3], 1
    %19 = vsyncpa %s18, 0
    %20 = vsyncpa [#allocation6], 0
    %21 = vsyncpa [#allocation9], 0
    %22 = vsyncpa [#allocation12], 0
    %23 = vsyncpa [#allocation15], 0
    %24 = vsyncpa [#allocation18], 0
    %25 = vsyncpa [#allocation21], 0
    %26 = vsyncpa [#allocation4], 0
    %s27 = scalar_lea.sflag [#allocation4], 1
    %28 = vsyncpa %s27, 0
    loop: start=0, step=1, limit=4
    $region2: #{_forward_impl.1} parent=1 // loop_pre_header
      _
    $region3: #{_forward_impl.1} parent=1 // loop_header
      %s30 = sphi 0, %s34
      %p31 = scmp.ge.s32.totalorder %s30, 4
      %s40 = sphi 0, %s42
      %s43 = sphi 0, %s40
      %s44 = sphi 0, %s43
      %s60 = sphi 0, %s44
      %s64 = sphi 0, %s64
      %s66 = sphi 0, %s64
      %s67 = sphi 0, %s66
      %s81 = sphi 0, %s67
      %s85 = sphi 0, %s85
      %s87 = sphi 0, %s85
      %s88 = sphi 0, %s87
      %s102 = sphi 0, %s88
      %s106 = sphi 0, %s106
      %s108 = sphi 0, %s106
      %s109 = sphi 0, %s108
      %s123 = sphi 0, %s109
      %s127 = sphi 0, %s127
      %s129 = sphi 0, %s127
      %s130 = sphi 0, %s129
      %s144 = sphi 0, %s130
      %s148 = sphi 0, %s148
      %s150 = sphi 0, %s148
      %s151 = sphi 0, %s150
      %s165 = sphi 0, %s151
      %s169 = sphi 0, %s169
      %s171 = sphi 0, %s169
      %s172 = sphi 0, %s171
      %s186 = sphi 0, %s172
      %s190 = sphi 0, %s190
      %s192 = sphi 0, %s190
      %s193 = sphi 0, %s192
      %s207 = sphi 0, %s193
      %s211 = sphi 0, %s211
      %s213 = sphi 0, %s211
      %s214 = sphi 0, %s213
      %s228 = sphi 0, %s214
      %s232 = sphi 0, %s232
      %s234 = sphi 0, %s232
      %s235 = sphi 0, %s234
      %s249 = sphi 0, %s235
      %s253 = sphi 0, %s253
      %s255 = sphi 0, %s253
      %s256 = sphi 0, %s255
      %s270 = sphi 0, %s256
      %s274 = sphi 0, %s274
      %s276 = sphi 0, %s274
      %s277 = sphi 0, %s276
      %s291 = sphi 0, %s277
      %s297 = sphi 0, %s299
      %s300 = sphi 0, %s297
      %s301 = sphi 0, %s300
      %s317 = sphi 0, %s301
    $region4: #{_forward_impl.1} parent=1 // loop_header_branch
      %33 = sbr.rel (%p31) target = $region8
    $region5: #{_forward_impl.1} parent=1 // loop_body
      %s35 = ssub.s32 %s30, 1
      %s36 = ssub.s32 %s30, 2
      %s37 = sadd.s32 %s30, 1
      %s38 = ssub.s32 %s30, %s37
      %p39 = scmp.eq.s32.totalorder %s38, 0
      %s41 = sadd.s32 %s40, 1
      %s42 = scalar_select %p39, %s40, %s41
      %p45 = pneg %p39
      %p46 = scmp.eq.s32.totalorder %s30, 1
      %p47 = por %p45, %p46
      %p48 = scmp.ne.s32.totalorder %s40, %s43
      %p49 = scmp.eq.s32.totalorder %s30, 0
      %p50 = por %p48, %p49
      %p51 = scmp.ne.s32.totalorder %s40, %s43
      %p52 = scmp.eq.s32.totalorder %s35, 1
      %p53 = por %p51, %p52
      %p54 = scmp.ne.s32.totalorder %s43, %s44
      %p55 = scmp.eq.s32.totalorder %s35, 0
      %p56 = por %p54, %p55
      %p57 = scmp.ne.s32.totalorder %s43, %s44
      %p58 = scmp.eq.s32.totalorder %s36, 1
      %p59 = por %p57, %p58
      %p61 = scmp.ne.s32.totalorder %s44, %s60
      %p62 = scmp.eq.s32.totalorder %s36, 0
      %p63 = por %p61, %p62
      %s65 = sadd.s32 %s64, 1
      %p68 = scmp.eq.s32.totalorder %s30, 1
      %p69 = scmp.ne.s32.totalorder %s64, %s66
      %p70 = scmp.eq.s32.totalorder %s30, 0
      %p71 = por %p69, %p70
      %p72 = scmp.ne.s32.totalorder %s64, %s66
      %p73 = scmp.eq.s32.totalorder %s35, 1
      %p74 = por %p72, %p73
      %p75 = scmp.ne.s32.totalorder %s66, %s67
      %p76 = scmp.eq.s32.totalorder %s35, 0
      %p77 = por %p75, %p76
      %p78 = scmp.ne.s32.totalorder %s66, %s67
      %p79 = scmp.eq.s32.totalorder %s36, 1
      %p80 = por %p78, %p79
      %p82 = scmp.ne.s32.totalorder %s67, %s81
      %p83 = scmp.eq.s32.totalorder %s36, 0
      %p84 = por %p82, %p83
      %s86 = sadd.s32 %s85, 1
      %p89 = scmp.eq.s32.totalorder %s30, 1
      %p90 = scmp.ne.s32.totalorder %s85, %s87
      %p91 = scmp.eq.s32.totalorder %s30, 0
      %p92 = por %p90, %p91
      %p93 = scmp.ne.s32.totalorder %s85, %s87
      %p94 = scmp.eq.s32.totalorder %s35, 1
      %p95 = por %p93, %p94
      %p96 = scmp.ne.s32.totalorder %s87, %s88
      %p97 = scmp.eq.s32.totalorder %s35, 0
      %p98 = por %p96, %p97
      %p99 = scmp.ne.s32.totalorder %s87, %s88
      %p100 = scmp.eq.s32.totalorder %s36, 1
      %p101 = por %p99, %p100
      %p103 = scmp.ne.s32.totalorder %s88, %s102
      %p104 = scmp.eq.s32.totalorder %s36, 0
      %p105 = por %p103, %p104
      %s107 = sadd.s32 %s106, 1
      %p110 = scmp.eq.s32.totalorder %s30, 1
      %p111 = scmp.ne.s32.totalorder %s106, %s108
      %p112 = scmp.eq.s32.totalorder %s30, 0
      %p113 = por %p111, %p112
      %p114 = scmp.ne.s32.totalorder %s106, %s108
      %p115 = scmp.eq.s32.totalorder %s35, 1
      %p116 = por %p114, %p115
      %p117 = scmp.ne.s32.totalorder %s108, %s109
      %p118 = scmp.eq.s32.totalorder %s35, 0
      %p119 = por %p117, %p118
      %p120 = scmp.ne.s32.totalorder %s108, %s109
      %p121 = scmp.eq.s32.totalorder %s36, 1
      %p122 = por %p120, %p121
      %p124 = scmp.ne.s32.totalorder %s109, %s123
      %p125 = scmp.eq.s32.totalorder %s36, 0
      %p126 = por %p124, %p125
      %s128 = sadd.s32 %s127, 1
      %p131 = scmp.eq.s32.totalorder %s30, 1
      %p132 = scmp.ne.s32.totalorder %s127, %s129
      %p133 = scmp.eq.s32.totalorder %s30, 0
      %p134 = por %p132, %p133
      %p135 = scmp.ne.s32.totalorder %s127, %s129
      %p136 = scmp.eq.s32.totalorder %s35, 1
      %p137 = por %p135, %p136
      %p138 = scmp.ne.s32.totalorder %s129, %s130
      %p139 = scmp.eq.s32.totalorder %s35, 0
      %p140 = por %p138, %p139
      %p141 = scmp.ne.s32.totalorder %s129, %s130
      %p142 = scmp.eq.s32.totalorder %s36, 1
      %p143 = por %p141, %p142
      %p145 = scmp.ne.s32.totalorder %s130, %s144
      %p146 = scmp.eq.s32.totalorder %s36, 0
      %p147 = por %p145, %p146
      %s149 = sadd.s32 %s148, 1
      %p152 = scmp.eq.s32.totalorder %s30, 1
      %p153 = scmp.ne.s32.totalorder %s148, %s150
      %p154 = scmp.eq.s32.totalorder %s30, 0
      %p155 = por %p153, %p154
      %p156 = scmp.ne.s32.totalorder %s148, %s150
      %p157 = scmp.eq.s32.totalorder %s35, 1
      %p158 = por %p156, %p157
      %p159 = scmp.ne.s32.totalorder %s150, %s151
      %p160 = scmp.eq.s32.totalorder %s35, 0
      %p161 = por %p159, %p160
      %p162 = scmp.ne.s32.totalorder %s150, %s151
      %p163 = scmp.eq.s32.totalorder %s36, 1
      %p164 = por %p162, %p163
      %p166 = scmp.ne.s32.totalorder %s151, %s165
      %p167 = scmp.eq.s32.totalorder %s36, 0
      %p168 = por %p166, %p167
      %s170 = sadd.s32 %s169, 1
      %p173 = scmp.eq.s32.totalorder %s30, 1
      %p174 = scmp.ne.s32.totalorder %s169, %s171
      %p175 = scmp.eq.s32.totalorder %s30, 0
      %p176 = por %p174, %p175
      %p177 = scmp.ne.s32.totalorder %s169, %s171
      %p178 = scmp.eq.s32.totalorder %s35, 1
      %p179 = por %p177, %p178
      %p180 = scmp.ne.s32.totalorder %s171, %s172
      %p181 = scmp.eq.s32.totalorder %s35, 0
      %p182 = por %p180, %p181
      %p183 = scmp.ne.s32.totalorder %s171, %s172
      %p184 = scmp.eq.s32.totalorder %s36, 1
      %p185 = por %p183, %p184
      %p187 = scmp.ne.s32.totalorder %s172, %s186
      %p188 = scmp.eq.s32.totalorder %s36, 0
      %p189 = por %p187, %p188
      %s191 = sadd.s32 %s190, 1
      %p194 = scmp.eq.s32.totalorder %s30, 1
      %p195 = scmp.ne.s32.totalorder %s190, %s192
      %p196 = scmp.eq.s32.totalorder %s30, 0
      %p197 = por %p195, %p196
      %p198 = scmp.ne.s32.totalorder %s190, %s192
      %p199 = scmp.eq.s32.totalorder %s35, 1
      %p200 = por %p198, %p199
      %p201 = scmp.ne.s32.totalorder %s192, %s193
      %p202 = scmp.eq.s32.totalorder %s35, 0
      %p203 = por %p201, %p202
      %p204 = scmp.ne.s32.totalorder %s192, %s193
      %p205 = scmp.eq.s32.totalorder %s36, 1
      %p206 = por %p204, %p205
      %p208 = scmp.ne.s32.totalorder %s193, %s207
      %p209 = scmp.eq.s32.totalorder %s36, 0
      %p210 = por %p208, %p209
      %s212 = sadd.s32 %s211, 1
      %p215 = scmp.eq.s32.totalorder %s30, 1
      %p216 = scmp.ne.s32.totalorder %s211, %s213
      %p217 = scmp.eq.s32.totalorder %s30, 0
      %p218 = por %p216, %p217
      %p219 = scmp.ne.s32.totalorder %s211, %s213
      %p220 = scmp.eq.s32.totalorder %s35, 1
      %p221 = por %p219, %p220
      %p222 = scmp.ne.s32.totalorder %s213, %s214
      %p223 = scmp.eq.s32.totalorder %s35, 0
      %p224 = por %p222, %p223
      %p225 = scmp.ne.s32.totalorder %s213, %s214
      %p226 = scmp.eq.s32.totalorder %s36, 1
      %p227 = por %p225, %p226
      %p229 = scmp.ne.s32.totalorder %s214, %s228
      %p230 = scmp.eq.s32.totalorder %s36, 0
      %p231 = por %p229, %p230
      %s233 = sadd.s32 %s232, 1
      %p236 = scmp.eq.s32.totalorder %s30, 1
      %p237 = scmp.ne.s32.totalorder %s232, %s234
      %p238 = scmp.eq.s32.totalorder %s30, 0
      %p239 = por %p237, %p238
      %p240 = scmp.ne.s32.totalorder %s232, %s234
      %p241 = scmp.eq.s32.totalorder %s35, 1
      %p242 = por %p240, %p241
      %p243 = scmp.ne.s32.totalorder %s234, %s235
      %p244 = scmp.eq.s32.totalorder %s35, 0
      %p245 = por %p243, %p244
      %p246 = scmp.ne.s32.totalorder %s234, %s235
      %p247 = scmp.eq.s32.totalorder %s36, 1
      %p248 = por %p246, %p247
      %p250 = scmp.ne.s32.totalorder %s235, %s249
      %p251 = scmp.eq.s32.totalorder %s36, 0
      %p252 = por %p250, %p251
      %s254 = sadd.s32 %s253, 1
      %p257 = scmp.eq.s32.totalorder %s30, 1
      %p258 = scmp.ne.s32.totalorder %s253, %s255
      %p259 = scmp.eq.s32.totalorder %s30, 0
      %p260 = por %p258, %p259
      %p261 = scmp.ne.s32.totalorder %s253, %s255
      %p262 = scmp.eq.s32.totalorder %s35, 1
      %p263 = por %p261, %p262
      %p264 = scmp.ne.s32.totalorder %s255, %s256
      %p265 = scmp.eq.s32.totalorder %s35, 0
      %p266 = por %p264, %p265
      %p267 = scmp.ne.s32.totalorder %s255, %s256
      %p268 = scmp.eq.s32.totalorder %s36, 1
      %p269 = por %p267, %p268
      %p271 = scmp.ne.s32.totalorder %s256, %s270
      %p272 = scmp.eq.s32.totalorder %s36, 0
      %p273 = por %p271, %p272
      %s275 = sadd.s32 %s274, 1
      %p278 = scmp.eq.s32.totalorder %s30, 1
      %p279 = scmp.ne.s32.totalorder %s274, %s276
      %p280 = scmp.eq.s32.totalorder %s30, 0
      %p281 = por %p279, %p280
      %p282 = scmp.ne.s32.totalorder %s274, %s276
      %p283 = scmp.eq.s32.totalorder %s35, 1
      %p284 = por %p282, %p283
      %p285 = scmp.ne.s32.totalorder %s276, %s277
      %p286 = scmp.eq.s32.totalorder %s35, 0
      %p287 = por %p285, %p286
      %p288 = scmp.ne.s32.totalorder %s276, %s277
      %p289 = scmp.eq.s32.totalorder %s36, 1
      %p290 = por %p288, %p289
      %p292 = scmp.ne.s32.totalorder %s277, %s291
      %p293 = scmp.eq.s32.totalorder %s36, 0
      %p294 = por %p292, %p293
      %s295 = ssub.s32 %s30, %s37
      %p296 = scmp.eq.s32.totalorder %s295, 0
      %s298 = sadd.s32 %s297, 1
      %s299 = scalar_select %p296, %s297, %s298
      %p302 = pneg %p296
      %p303 = scmp.eq.s32.totalorder %s30, 1
      %p304 = por %p302, %p303
      %p305 = scmp.ne.s32.totalorder %s297, %s300
      %p306 = scmp.eq.s32.totalorder %s30, 0
      %p307 = por %p305, %p306
      %p308 = scmp.ne.s32.totalorder %s297, %s300
      %p309 = scmp.eq.s32.totalorder %s35, 1
      %p310 = por %p308, %p309
      %p311 = scmp.ne.s32.totalorder %s300, %s301
      %p312 = scmp.eq.s32.totalorder %s35, 0
      %p313 = por %p311, %p312
      %p314 = scmp.ne.s32.totalorder %s300, %s301
      %p315 = scmp.eq.s32.totalorder %s36, 1
      %p316 = por %p314, %p315
      %p318 = scmp.ne.s32.totalorder %s301, %s317
      %p319 = scmp.eq.s32.totalorder %s36, 0
      %p320 = por %p318, %p319
      %p321 = scmp.le.s32.totalorder 1, %s30
      %p322 = scmp.lt.s32.totalorder %s30, 3
      %p323 = pnand %p321, %p322
      %p324 = pneg %p323
      // Predicated region
      $region9: #{_forward_impl.1} parent=5 // pred_check
        _
      $region10: #{_forward_impl.1} parent=5 // pred_check_branch
        %326 = sbr.rel (%p323) target = $region12
      $region11: #{_forward_impl.1} parent=5 // pred_region
        %s327 = ssub.s32 %s30, 1
        // Predicated region
        $region13: #{_forward_impl.1} parent=11 // pred_check
          %p328 = pneg %p77
        $region14: #{_forward_impl.1} parent=11 // pred_check_branch
          %330 = sbr.rel (%p328) target = $region16
        $region15: #{_forward_impl.1} parent=11 // pred_region
          %s332 = ssub.s32 5120, 5120
          %333 = vsyncadd [#allocation6], %s332
          %s334 = sshll.u32 [#allocation5], 4
          %s335 = int_to_ptr.vmem [resolvable:$true] %s334
          %340 = dma.hbm_to_vmem [thread:$0]  %s1, 5120, %s335, [#allocation6], 64, 64, 4
        $region16: #{_forward_impl.1} parent=11 // pred_fallthru
          _
        // Predicated region
        $region17: #{_forward_impl.1} parent=11 // pred_check
          %p341 = pneg %p98
        $region18: #{_forward_impl.1} parent=11 // pred_check_branch
          %343 = sbr.rel (%p341) target = $region20
        $region19: #{_forward_impl.1} parent=11 // pred_region
          %s345 = ssub.s32 3072, 3072
          %346 = vsyncadd [#allocation6], %s345
          %s347 = sshll.u32 [#allocation7], 4
          %s348 = int_to_ptr.vmem [resolvable:$true] %s347
          %353 = dma.hbm_to_vmem [thread:$0]  %s2, 3072, %s348, [#allocation6], 64, 64, 4
        $region20: #{_forward_impl.1} parent=11 // pred_fallthru
          _
        // Predicated region
        $region21: #{_forward_impl.1} parent=11 // pred_check
          %p354 = pneg %p119
        $region22: #{_forward_impl.1} parent=11 // pred_check_branch
          %356 = sbr.rel (%p354) target = $region24
        $region23: #{_forward_impl.1} parent=11 // pred_region
          %s358 = ssub.s32 48, 48
          %359 = vsyncadd [#allocation9], %s358
          %s360 = sshll.u32 [#allocation8], 4
          %s361 = int_to_ptr.vmem [resolvable:$true] %s360
          %366 = dma.hbm_to_vmem [thread:$0]  %s3, 48, %s361, [#allocation9], 16, 16, 1
        $region24: #{_forward_impl.1} parent=11 // pred_fallthru
          _
        // Predicated region
        $region25: #{_forward_impl.1} parent=11 // pred_check
          %p367 = pneg %p140
        $region26: #{_forward_impl.1} parent=11 // pred_check_branch
          %369 = sbr.rel (%p367) target = $region28
        $region27: #{_forward_impl.1} parent=11 // pred_region
          %s371 = ssub.s32 512, 512
          %372 = vsyncadd [#allocation9], %s371
          %s373 = sshll.u32 [#allocation10], 4
          %s374 = int_to_ptr.vmem [resolvable:$true] %s373
          %379 = dma.hbm_to_vmem [thread:$0]  %s4, 512, %s374, [#allocation9], 64, 64, 4
        $region28: #{_forward_impl.1} parent=11 // pred_fallthru
          _
        // Predicated region
        $region29: #{_forward_impl.1} parent=11 // pred_check
          %p380 = pneg %p161
        $region30: #{_forward_impl.1} parent=11 // pred_check_branch
          %382 = sbr.rel (%p380) target = $region32
        $region31: #{_forward_impl.1} parent=11 // pred_region
          %s384 = ssub.s32 512, 512
          %385 = vsyncadd [#allocation12], %s384
          %s386 = sshll.u32 [#allocation11], 4
          %s387 = int_to_ptr.vmem [resolvable:$true] %s386
          %392 = dma.hbm_to_vmem [thread:$0]  %s5, 512, %s387, [#allocation12], 64, 64, 4
        $region32: #{_forward_impl.1} parent=11 // pred_fallthru
          _
        // Predicated region
        $region33: #{_forward_impl.1} parent=11 // pred_check
          %p393 = pneg %p182
        $region34: #{_forward_impl.1} parent=11 // pred_check_branch
          %395 = sbr.rel (%p393) target = $region36
        $region35: #{_forward_impl.1} parent=11 // pred_region
          %s397 = ssub.s32 1024, 1024
          %398 = vsyncadd [#allocation12], %s397
          %s399 = sshll.u32 [#allocation13], 4
          %s400 = int_to_ptr.vmem [resolvable:$true] %s399
          %405 = dma.hbm_to_vmem [thread:$0]  %s6, 1024, %s400, [#allocation12], 64, 64, 4
        $region36: #{_forward_impl.1} parent=11 // pred_fallthru
          _
        // Predicated region
        $region37: #{_forward_impl.1} parent=11 // pred_check
          %p406 = pneg %p203
        $region38: #{_forward_impl.1} parent=11 // pred_check_branch
          %408 = sbr.rel (%p406) target = $region40
        $region39: #{_forward_impl.1} parent=11 // pred_region
          %s410 = ssub.s32 1024, 1024
          %411 = vsyncadd [#allocation15], %s410
          %s412 = sshll.u32 [#allocation14], 4
          %s413 = int_to_ptr.vmem [resolvable:$true] %s412
          %418 = dma.hbm_to_vmem [thread:$0]  %s7, 1024, %s413, [#allocation15], 128, 128, 8
        $region40: #{_forward_impl.1} parent=11 // pred_fallthru
          _
        // Predicated region
        $region41: #{_forward_impl.1} parent=11 // pred_check
          %p419 = pneg %p224
        $region42: #{_forward_impl.1} parent=11 // pred_check_branch
          %421 = sbr.rel (%p419) target = $region44
        $region43: #{_forward_impl.1} parent=11 // pred_region
          %s423 = ssub.s32 1024, 1024
          %424 = vsyncadd [#allocation15], %s423
          %s425 = sshll.u32 [#allocation16], 4
          %s426 = int_to_ptr.vmem [resolvable:$true] %s425
          %431 = dma.hbm_to_vmem [thread:$0]  %s8, 1024, %s426, [#allocation15], 128, 128, 8
        $region44: #{_forward_impl.1} parent=11 // pred_fallthru
          _
        // Predicated region
        $region45: #{_forward_impl.1} parent=11 // pred_check
          %p432 = pneg %p245
        $region46: #{_forward_impl.1} parent=11 // pred_check_branch
          %434 = sbr.rel (%p432) target = $region48
        $region47: #{_forward_impl.1} parent=11 // pred_region
          %s436 = ssub.s32 1024, 1024
          %437 = vsyncadd [#allocation18], %s436
          %s438 = sshll.u32 [#allocation17], 4
          %s439 = int_to_ptr.vmem [resolvable:$true] %s438
          %444 = dma.hbm_to_vmem [thread:$0]  %s9, 1024, %s439, [#allocation18], 128, 128, 8
        $region48: #{_forward_impl.1} parent=11 // pred_fallthru
          _
        // Predicated region
        $region49: #{_forward_impl.1} parent=11 // pred_check
          %p445 = pneg %p266
        $region50: #{_forward_impl.1} parent=11 // pred_check_branch
          %447 = sbr.rel (%p445) target = $region52
        $region51: #{_forward_impl.1} parent=11 // pred_region
          %s449 = ssub.s32 2048, 2048
          %450 = vsyncadd [#allocation18], %s449
          %s451 = sshll.u32 [#allocation19], 4
          %s452 = int_to_ptr.vmem [resolvable:$true] %s451
          %457 = dma.hbm_to_vmem [thread:$0]  %s10, 2048, %s452, [#allocation18], 128, 128, 8
        $region52: #{_forward_impl.1} parent=11 // pred_fallthru
          _
        // Predicated region
        $region53: #{_forward_impl.1} parent=11 // pred_check
          %p458 = pneg %p287
        $region54: #{_forward_impl.1} parent=11 // pred_check_branch
          %460 = sbr.rel (%p458) target = $region56
        $region55: #{_forward_impl.1} parent=11 // pred_region
          %s462 = ssub.s32 1024, 1024
          %463 = vsyncadd [#allocation21], %s462
          %s464 = sshll.u32 [#allocation20], 4
          %s465 = int_to_ptr.vmem [resolvable:$true] %s464
          %470 = dma.hbm_to_vmem [thread:$0]  %s11, 1024, %s465, [#allocation21], 128, 128, 8
        $region56: #{_forward_impl.1} parent=11 // pred_fallthru
          _
      $region12: #{_forward_impl.1} parent=5 // pred_fallthru
        _
      %p471 = scmp.lt.s32.totalorder %s30, 2
      // Predicated region
      $region57: #{_forward_impl.1} parent=5 // pred_check
        %p472 = pneg %p471
      $region58: #{_forward_impl.1} parent=5 // pred_check_branch
        %474 = sbr.rel (%p472) target = $region60
      $region59: #{_forward_impl.1} parent=5 // pred_region
        // Predicated region
        $region61: #{_forward_impl.1} parent=59 // pred_check
          %p475 = pneg %p50
        $region62: #{_forward_impl.1} parent=59 // pred_check_branch
          %477 = sbr.rel (%p475) target = $region64
        $region63: #{_forward_impl.1} parent=59 // pred_region
          %s478 = sand.u32 %s40, 1
          %s479 = scalar_lea.sflag [#allocation3], %s478
          %s480 = sand.u32 %s40, 1
          %s481 = smul.addr %s480, 32
          %s482 = scalar_lea.vmem [#allocation2], %s481
          %s484 = ssub.s32 512, 512
          %485 = vsyncadd %s479, %s484
          %s486 = smul.addr %s30, 8
          %s487 = smul.addr %s486, 64
          %s488 = scalar_lea.hbm %s0, %s487
          %s489 = sshll.u32 %s482, 4
          %s490 = int_to_ptr.vmem [resolvable:$true] %s489
          %495 = dma.hbm_to_vmem [thread:$0]  %s488, 512, %s490, %s479, 64, 64, 4
        $region64: #{_forward_impl.1} parent=59 // pred_fallthru
          _
      $region60: #{_forward_impl.1} parent=5 // pred_fallthru
        _
      %p496 = scmp.le.s32.totalorder 1, %s30
      %p497 = scmp.lt.s32.totalorder %s30, 3
      %p498 = pnand %p496, %p497
      %p499 = pneg %p498
      // Predicated region
      $region65: #{_forward_impl.1} parent=5 // pred_check
        _
      $region66: #{_forward_impl.1} parent=5 // pred_check_branch
        %501 = sbr.rel (%p498) target = $region68
      $region67: #{_forward_impl.1} parent=5 // pred_region
        %s502 = ssub.s32 %s30, 1
        %s503 = sand.u32 %s43, 1
        %s504 = scalar_lea.sflag [#allocation3], %s503
        %s505 = sand.u32 %s43, 1
        %s506 = smul.addr %s505, 32
        %s507 = scalar_lea.vmem [#allocation2], %s506
        // Predicated region
        $region69: #{_forward_impl.1} parent=67 // pred_check
          %p508 = pneg %p56
        $region70: #{_forward_impl.1} parent=67 // pred_check_branch
          %510 = sbr.rel (%p508) target = $region72
        $region71: #{_forward_impl.1} parent=67 // pred_region
          %511 = dma.done %s504, 512
        $region72: #{_forward_impl.1} parent=67 // pred_fallthru
          _
        // Predicated region
        $region73: #{_forward_impl.1} parent=67 // pred_check
          %p512 = pneg %p77
        $region74: #{_forward_impl.1} parent=67 // pred_check_branch
          %514 = sbr.rel (%p512) target = $region76
        $region75: #{_forward_impl.1} parent=67 // pred_region
          %515 = dma.done [#allocation6], 5120
        $region76: #{_forward_impl.1} parent=67 // pred_fallthru
          _
        // Predicated region
        $region77: #{_forward_impl.1} parent=67 // pred_check
          %p516 = pneg %p98
        $region78: #{_forward_impl.1} parent=67 // pred_check_branch
          %518 = sbr.rel (%p516) target = $region80
        $region79: #{_forward_impl.1} parent=67 // pred_region
          %519 = dma.done [#allocation6], 3072
        $region80: #{_forward_impl.1} parent=67 // pred_fallthru
          _
        // Predicated region
        $region81: #{_forward_impl.1} parent=67 // pred_check
          %p520 = pneg %p119
        $region82: #{_forward_impl.1} parent=67 // pred_check_branch
          %522 = sbr.rel (%p520) target = $region84
        $region83: #{_forward_impl.1} parent=67 // pred_region
          %523 = dma.done [#allocation9], 48
        $region84: #{_forward_impl.1} parent=67 // pred_fallthru
          _
        // Predicated region
        $region85: #{_forward_impl.1} parent=67 // pred_check
          %p524 = pneg %p140
        $region86: #{_forward_impl.1} parent=67 // pred_check_branch
          %526 = sbr.rel (%p524) target = $region88
        $region87: #{_forward_impl.1} parent=67 // pred_region
          %527 = dma.done [#allocation9], 512
        $region88: #{_forward_impl.1} parent=67 // pred_fallthru
          _
        // Predicated region
        $region89: #{_forward_impl.1} parent=67 // pred_check
          %p528 = pneg %p161
        $region90: #{_forward_impl.1} parent=67 // pred_check_branch
          %530 = sbr.rel (%p528) target = $region92
        $region91: #{_forward_impl.1} parent=67 // pred_region
          %531 = dma.done [#allocation12], 512
        $region92: #{_forward_impl.1} parent=67 // pred_fallthru
          _
        // Predicated region
        $region93: #{_forward_impl.1} parent=67 // pred_check
          %p532 = pneg %p182
        $region94: #{_forward_impl.1} parent=67 // pred_check_branch
          %534 = sbr.rel (%p532) target = $region96
        $region95: #{_forward_impl.1} parent=67 // pred_region
          %535 = dma.done [#allocation12], 1024
        $region96: #{_forward_impl.1} parent=67 // pred_fallthru
          _
        // Predicated region
        $region97: #{_forward_impl.1} parent=67 // pred_check
          %p536 = pneg %p203
        $region98: #{_forward_impl.1} parent=67 // pred_check_branch
          %538 = sbr.rel (%p536) target = $region100
        $region99: #{_forward_impl.1} parent=67 // pred_region
          %539 = dma.done [#allocation15], 1024
        $region100: #{_forward_impl.1} parent=67 // pred_fallthru
          _
        // Predicated region
        $region101: #{_forward_impl.1} parent=67 // pred_check
          %p540 = pneg %p224
        $region102: #{_forward_impl.1} parent=67 // pred_check_branch
          %542 = sbr.rel (%p540) target = $region104
        $region103: #{_forward_impl.1} parent=67 // pred_region
          %543 = dma.done [#allocation15], 1024
        $region104: #{_forward_impl.1} parent=67 // pred_fallthru
          _
        // Predicated region
        $region105: #{_forward_impl.1} parent=67 // pred_check
          %p544 = pneg %p245
        $region106: #{_forward_impl.1} parent=67 // pred_check_branch
          %546 = sbr.rel (%p544) target = $region108
        $region107: #{_forward_impl.1} parent=67 // pred_region
          %547 = dma.done [#allocation18], 1024
        $region108: #{_forward_impl.1} parent=67 // pred_fallthru
          _
        // Predicated region
        $region109: #{_forward_impl.1} parent=67 // pred_check
          %p548 = pneg %p266
        $region110: #{_forward_impl.1} parent=67 // pred_check_branch
          %550 = sbr.rel (%p548) target = $region112
        $region111: #{_forward_impl.1} parent=67 // pred_region
          %551 = dma.done [#allocation18], 2048
        $region112: #{_forward_impl.1} parent=67 // pred_fallthru
          _
        // Predicated region
        $region113: #{_forward_impl.1} parent=67 // pred_check
          %p552 = pneg %p287
        $region114: #{_forward_impl.1} parent=67 // pred_check_branch
          %554 = sbr.rel (%p552) target = $region116
        $region115: #{_forward_impl.1} parent=67 // pred_region
          %555 = dma.done [#allocation21], 1024
        $region116: #{_forward_impl.1} parent=67 // pred_fallthru
          _
        %s556 = sand.u32 %s43, 1
        %s557 = scalar_lea.sflag [#allocation3], %s556
        %s558 = sand.u32 %s43, 1
        %s559 = smul.addr %s558, 32
        %s560 = scalar_lea.vmem [#allocation2], %s559
        %p561 = pneg %p56
        %p562 = pneg %p53
        %p563 = pneg %p77
        %p564 = pneg %p74
        %p565 = pneg %p98
        %p566 = pneg %p95
        %p567 = pneg %p119
        %p568 = pneg %p116
        %p569 = pneg %p140
        %p570 = pneg %p137
        %p571 = pneg %p161
        %p572 = pneg %p158
        %p573 = pneg %p182
        %p574 = pneg %p179
        %p575 = pneg %p203
        %p576 = pneg %p200
        %p577 = pneg %p224
        %p578 = pneg %p221
        %p579 = pneg %p245
        %p580 = pneg %p242
        %p581 = pneg %p266
        %p582 = pneg %p263
        %p583 = pneg %p287
        %p584 = pneg %p284
        %p585 = pneg %p313
        %p586 = pneg %p310
        %s587 = sand.u32 %s300, 1
        %s588 = scalar_lea.sflag [#allocation4], %s587
        %s589 = sand.u32 %s300, 1
        %s590 = smul.addr %s589, 64
        %s591 = scalar_lea.vmem [#allocation22], %s590
        %v593 = vld [vmem:[%s507] sm:$0xf]
        %v594 = vld [vmem:[%s507 + $0x4] sm:$0xf]
        %v595 = vld [vmem:[%s507 + $0x8] sm:$0xf]
        %v596 = vld [vmem:[%s507 + $0xc] sm:$0xf]
        %v597 = vld [vmem:[%s507 + $0x10] sm:$0xf]
        %v598 = vld [vmem:[%s507 + $0x14] sm:$0xf]
        %v599 = vld [vmem:[%s507 + $0x18] sm:$0xf]
        %v600 = vld [vmem:[%s507 + $0x1c] sm:$0xf]
        %v601 = vld [vmem:[#allocation5] sm:$0xf]
        %v602 = vld [vmem:[#allocation5 + $0x4] sm:$0xf]
        %v603 = vld [vmem:[#allocation5 + $0x8] sm:$0xf]
        %v604 = vld [vmem:[#allocation5 + $0xc] sm:$0xf]
        %v605 = vld [vmem:[#allocation5 + $0x10] sm:$0xf]
        %v606 = vld [vmem:[#allocation5 + $0x14] sm:$0xf]
        %v607 = vld [vmem:[#allocation5 + $0x18] sm:$0xf]
        %v608 = vld [vmem:[#allocation5 + $0x1c] sm:$0xf]
        %v609 = vld [vmem:[#allocation5 + $0x20] sm:$0xf]
        %v610 = vld [vmem:[#allocation5 + $0x24] sm:$0xf]
        %v611 = vld [vmem:[#allocation5 + $0x28] sm:$0xf]
        %v612 = vld [vmem:[#allocation5 + $0x2c] sm:$0xf]
        %v613 = vld [vmem:[#allocation5 + $0x30] sm:$0xf]
        %v614 = vld [vmem:[#allocation5 + $0x34] sm:$0xf]
        %v615 = vld [vmem:[#allocation5 + $0x38] sm:$0xf]
        %v616 = vld [vmem:[#allocation5 + $0x3c] sm:$0xf]
        %v617 = vld [vmem:[#allocation5 + $0x40] sm:$0xf]
        %v618 = vld [vmem:[#allocation5 + $0x44] sm:$0xf]
        %v619 = vld [vmem:[#allocation5 + $0x48] sm:$0xf]
        %v620 = vld [vmem:[#allocation5 + $0x4c] sm:$0xf]
        %v621 = vld [vmem:[#allocation5 + $0x50] sm:$0xf]
        %v622 = vld [vmem:[#allocation5 + $0x54] sm:$0xf]
        %v623 = vld [vmem:[#allocation5 + $0x58] sm:$0xf]
        %v624 = vld [vmem:[#allocation5 + $0x5c] sm:$0xf]
        %v625 = vld [vmem:[#allocation5 + $0x60] sm:$0xf]
        %v626 = vld [vmem:[#allocation5 + $0x64] sm:$0xf]
        %v627 = vld [vmem:[#allocation5 + $0x68] sm:$0xf]
        %v628 = vld [vmem:[#allocation5 + $0x6c] sm:$0xf]
        %v629 = vld [vmem:[#allocation5 + $0x70] sm:$0xf]
        %v630 = vld [vmem:[#allocation5 + $0x74] sm:$0xf]
        %v631 = vld [vmem:[#allocation5 + $0x78] sm:$0xf]
        %v632 = vld [vmem:[#allocation5 + $0x7c] sm:$0xf]
        %v633 = vld [vmem:[#allocation5 + $0x80] sm:$0xf]
        %v634 = vld [vmem:[#allocation5 + $0x84] sm:$0xf]
        %v635 = vld [vmem:[#allocation5 + $0x88] sm:$0xf]
        %v636 = vld [vmem:[#allocation5 + $0x8c] sm:$0xf]
        %v637 = vld [vmem:[#allocation5 + $0x90] sm:$0xf]
        %v638 = vld [vmem:[#allocation5 + $0x94] sm:$0xf]
        %v639 = vld [vmem:[#allocation5 + $0x98] sm:$0xf]
        %v640 = vld [vmem:[#allocation5 + $0x9c] sm:$0xf]
        %v641 = vld [vmem:[#allocation5 + $0xa0] sm:$0xf]
        %v642 = vld [vmem:[#allocation5 + $0xa4] sm:$0xf]
        %v643 = vld [vmem:[#allocation5 + $0xa8] sm:$0xf]
        %v644 = vld [vmem:[#allocation5 + $0xac] sm:$0xf]
        %v645 = vld [vmem:[#allocation5 + $0xb0] sm:$0xf]
        %v646 = vld [vmem:[#allocation5 + $0xb4] sm:$0xf]
        %v647 = vld [vmem:[#allocation5 + $0xb8] sm:$0xf]
        %v648 = vld [vmem:[#allocation5 + $0xbc] sm:$0xf]
        %v649 = vld [vmem:[#allocation5 + $0xc0] sm:$0xf]
        %v650 = vld [vmem:[#allocation5 + $0xc4] sm:$0xf]
        %v651 = vld [vmem:[#allocation5 + $0xc8] sm:$0xf]
        %v652 = vld [vmem:[#allocation5 + $0xcc] sm:$0xf]
        %v653 = vld [vmem:[#allocation5 + $0xd0] sm:$0xf]
        %v654 = vld [vmem:[#allocation5 + $0xd4] sm:$0xf]
        %v655 = vld [vmem:[#allocation5 + $0xd8] sm:$0xf]
        %v656 = vld [vmem:[#allocation5 + $0xdc] sm:$0xf]
        %v657 = vld [vmem:[#allocation5 + $0xe0] sm:$0xf]
        %v658 = vld [vmem:[#allocation5 + $0xe4] sm:$0xf]
        %v659 = vld [vmem:[#allocation5 + $0xe8] sm:$0xf]
        %v660 = vld [vmem:[#allocation5 + $0xec] sm:$0xf]
        %v661 = vld [vmem:[#allocation5 + $0xf0] sm:$0xf]
        %v662 = vld [vmem:[#allocation5 + $0xf4] sm:$0xf]
        %v663 = vld [vmem:[#allocation5 + $0xf8] sm:$0xf]
        %v664 = vld [vmem:[#allocation5 + $0xfc] sm:$0xf]
        %v665 = vld [vmem:[#allocation5 + $0x100] sm:$0xf]
        %v666 = vld [vmem:[#allocation5 + $0x104] sm:$0xf]
        %v667 = vld [vmem:[#allocation5 + $0x108] sm:$0xf]
        %v668 = vld [vmem:[#allocation5 + $0x10c] sm:$0xf]
        %v669 = vld [vmem:[#allocation5 + $0x110] sm:$0xf]
        %v670 = vld [vmem:[#allocation5 + $0x114] sm:$0xf]
        %v671 = vld [vmem:[#allocation5 + $0x118] sm:$0xf]
        %v672 = vld [vmem:[#allocation5 + $0x11c] sm:$0xf]
        %v673 = vld [vmem:[#allocation5 + $0x120] sm:$0xf]
        %v674 = vld [vmem:[#allocation5 + $0x124] sm:$0xf]
        %v675 = vld [vmem:[#allocation5 + $0x128] sm:$0xf]
        %v676 = vld [vmem:[#allocation5 + $0x12c] sm:$0xf]
        %v677 = vld [vmem:[#allocation5 + $0x130] sm:$0xf]
        %v678 = vld [vmem:[#allocation5 + $0x134] sm:$0xf]
        %v679 = vld [vmem:[#allocation5 + $0x138] sm:$0xf]
        %v680 = vld [vmem:[#allocation5 + $0x13c] sm:$0xf]
        %v761 = vunpack.c.l.b16 %v601
        %v762 = vunpack.c.l.b16 %v602
        %v763 = vunpack.c.l.b16 %v603
        %v764 = vunpack.c.l.b16 %v604
        %v765 = vunpack.c.l.b16 %v605
        %v766 = vunpack.c.l.b16 %v606
        %v767 = vunpack.c.l.b16 %v607
        %v768 = vunpack.c.l.b16 %v608
        %v769 = vunpack.c.l.b16 %v609
        %v770 = vunpack.c.l.b16 %v610
        %v771 = vunpack.c.l.b16 %v611
        %v772 = vunpack.c.l.b16 %v612
        %v773 = vunpack.c.l.b16 %v613
        %v774 = vunpack.c.l.b16 %v614
        %v775 = vunpack.c.l.b16 %v615
        %v776 = vunpack.c.l.b16 %v616
        %v777 = vunpack.c.l.b16 %v617
        %v778 = vunpack.c.l.b16 %v618
        %v779 = vunpack.c.l.b16 %v619
        %v780 = vunpack.c.l.b16 %v620
        %v781 = vunpack.c.l.b16 %v621
        %v782 = vunpack.c.l.b16 %v622
        %v783 = vunpack.c.l.b16 %v623
        %v784 = vunpack.c.l.b16 %v624
        %v785 = vunpack.c.l.b16 %v625
        %v786 = vunpack.c.l.b16 %v626
        %v787 = vunpack.c.l.b16 %v627
        %v788 = vunpack.c.l.b16 %v628
        %v789 = vunpack.c.l.b16 %v629
        %v790 = vunpack.c.l.b16 %v630
        %v791 = vunpack.c.l.b16 %v631
        %v792 = vunpack.c.l.b16 %v632
        %v793 = vunpack.c.l.b16 %v633
        %v794 = vunpack.c.l.b16 %v634
        %v795 = vunpack.c.l.b16 %v635
        %v796 = vunpack.c.l.b16 %v636
        %v797 = vunpack.c.l.b16 %v637
        %v798 = vunpack.c.l.b16 %v638
        %v799 = vunpack.c.l.b16 %v639
        %v800 = vunpack.c.l.b16 %v640
        %v801 = vunpack.c.l.b16 %v641
        %v802 = vunpack.c.l.b16 %v642
        %v803 = vunpack.c.l.b16 %v643
        %v804 = vunpack.c.l.b16 %v644
        %v805 = vunpack.c.l.b16 %v645
        %v806 = vunpack.c.l.b16 %v646
        %v807 = vunpack.c.l.b16 %v647
        %v808 = vunpack.c.l.b16 %v648
        %v809 = vunpack.c.l.b16 %v649
        %v810 = vunpack.c.l.b16 %v650
        %v811 = vunpack.c.l.b16 %v651
        %v812 = vunpack.c.l.b16 %v652
        %v813 = vunpack.c.l.b16 %v653
        %v814 = vunpack.c.l.b16 %v654
        %v815 = vunpack.c.l.b16 %v655
        %v816 = vunpack.c.l.b16 %v656
        %v817 = vunpack.c.l.b16 %v657
        %v818 = vunpack.c.l.b16 %v658
        %v819 = vunpack.c.l.b16 %v659
        %v820 = vunpack.c.l.b16 %v660
        %v821 = vunpack.c.l.b16 %v661
        %v822 = vunpack.c.l.b16 %v662
        %v823 = vunpack.c.l.b16 %v663
        %v824 = vunpack.c.l.b16 %v664
        %v825 = vunpack.c.l.b16 %v665
        %v826 = vunpack.c.l.b16 %v666
        %v827 = vunpack.c.l.b16 %v667
        %v828 = vunpack.c.l.b16 %v668
        %v829 = vunpack.c.l.b16 %v669
        %v830 = vunpack.c.l.b16 %v670
        %v831 = vunpack.c.l.b16 %v671
        %v832 = vunpack.c.l.b16 %v672
        %v833 = vunpack.c.l.b16 %v673
        %v834 = vunpack.c.l.b16 %v674
        %v835 = vunpack.c.l.b16 %v675
        %v836 = vunpack.c.l.b16 %v676
        %v837 = vunpack.c.l.b16 %v677
        %v838 = vunpack.c.l.b16 %v678
        %v839 = vunpack.c.l.b16 %v679
        %v840 = vunpack.c.l.b16 %v680
        %v841 = vpack.c.b16 %v762, %v761
        %v842 = vpack.c.b16 %v764, %v763
        %v843 = vpack.c.b16 %v766, %v765
        %v844 = vpack.c.b16 %v768, %v767
        %v845 = vpack.c.b16 %v770, %v769
        %v846 = vpack.c.b16 %v772, %v771
        %v847 = vpack.c.b16 %v774, %v773
        %v848 = vpack.c.b16 %v776, %v775
        %v849 = vpack.c.b16 %v778, %v777
        %v850 = vpack.c.b16 %v780, %v779
        %v851 = vpack.c.b16 %v782, %v781
        %v852 = vpack.c.b16 %v784, %v783
        %v853 = vpack.c.b16 %v786, %v785
        %v854 = vpack.c.b16 %v788, %v787
        %v855 = vpack.c.b16 %v790, %v789
        %v856 = vpack.c.b16 %v792, %v791
        %v857 = vpack.c.b16 %v794, %v793
        %v858 = vpack.c.b16 %v796, %v795
        %v859 = vpack.c.b16 %v798, %v797
        %v860 = vpack.c.b16 %v800, %v799
        %v861 = vpack.c.b16 %v802, %v801
        %v862 = vpack.c.b16 %v804, %v803
        %v863 = vpack.c.b16 %v806, %v805
        %v864 = vpack.c.b16 %v808, %v807
        %v865 = vpack.c.b16 %v810, %v809
        %v866 = vpack.c.b16 %v812, %v811
        %v867 = vpack.c.b16 %v814, %v813
        %v868 = vpack.c.b16 %v816, %v815
        %v869 = vpack.c.b16 %v818, %v817
        %v870 = vpack.c.b16 %v820, %v819
        %v871 = vpack.c.b16 %v822, %v821
        %v872 = vpack.c.b16 %v824, %v823
        %v873 = vpack.c.b16 %v826, %v825
        %v874 = vpack.c.b16 %v828, %v827
        %v875 = vpack.c.b16 %v830, %v829
        %v876 = vpack.c.b16 %v832, %v831
        %v877 = vpack.c.b16 %v834, %v833
        %v878 = vpack.c.b16 %v836, %v835
        %v879 = vpack.c.b16 %v838, %v837
        %v880 = vpack.c.b16 %v840, %v839
        %v889 = vunpack.c.l.b16 %v593
        %v890 = vunpack.c.l.b16 %v594
        %v891 = vunpack.c.l.b16 %v595
        %v892 = vunpack.c.l.b16 %v596
        %v893 = vunpack.c.l.b16 %v597
        %v894 = vunpack.c.l.b16 %v598
        %v895 = vunpack.c.l.b16 %v599
        %v896 = vunpack.c.l.b16 %v600
        %v897 = vpack.c.b16 %v890, %v889
        %v898 = vpack.c.b16 %v892, %v891
        %v899 = vpack.c.b16 %v894, %v893
        %v900 = vpack.c.b16 %v896, %v895
        %vm905 = vcmask 523264
        %v907 = vsel %vm905, %v841, 0
        %v910 = vsel %vm905, %v842, 0
        %v913 = vsel %vm905, %v843, 0
        %v916 = vsel %vm905, %v844, 0
        %v919 = vsel %vm905, %v845, 0
        %v922 = vsel %vm905, %v846, 0
        %v925 = vsel %vm905, %v847, 0
        %v928 = vsel %vm905, %v848, 0
        %v931 = vsel %vm905, %v849, 0
        %v934 = vsel %vm905, %v850, 0
        %v937 = vsel %vm905, %v851, 0
        %v940 = vsel %vm905, %v852, 0
        %v943 = vsel %vm905, %v853, 0
        %v946 = vsel %vm905, %v854, 0
        %v949 = vsel %vm905, %v855, 0
        %v952 = vsel %vm905, %v856, 0
        %v955 = vsel %vm905, %v857, 0
        %v958 = vsel %vm905, %v858, 0
        %v961 = vsel %vm905, %v859, 0
        %v964 = vsel %vm905, %v860, 0
        %v967 = vsel %vm905, %v861, 0
        %v970 = vsel %vm905, %v862, 0
        %v973 = vsel %vm905, %v863, 0
        %v976 = vsel %vm905, %v864, 0
        %v979 = vsel %vm905, %v865, 0
        %v982 = vsel %vm905, %v866, 0
        %v985 = vsel %vm905, %v867, 0
        %v988 = vsel %vm905, %v868, 0
        %v991 = vsel %vm905, %v869, 0
        %v994 = vsel %vm905, %v870, 0
        %v997 = vsel %vm905, %v871, 0
        %v1000 = vsel %vm905, %v872, 0
        %v1003 = vsel %vm905, %v873, 0
        %v1006 = vsel %vm905, %v874, 0
        %v1009 = vsel %vm905, %v875, 0
        %v1012 = vsel %vm905, %v876, 0
        %v1015 = vsel %vm905, %v877, 0
        %v1018 = vsel %vm905, %v878, 0
        %v1021 = vsel %vm905, %v879, 0
        %v1024 = vsel %vm905, %v880, 0
        %1026 = vmatprep.subr.bf16.mxu0 0
        %1027 = vmatpush1.bf16.msra.mxu0 %v897
        %1028 = vmatprep.subr.bf16.mxu0 0
        %1029 = vmatpush1.bf16.msra.mxu0 %v898
        %1030 = vmatprep.subr.bf16.mxu0 0
        %1031 = vmatpush1.bf16.msra.mxu0 %v899
        %1032 = vmatprep.subr.bf16.mxu0 0
        %1033 = vmatpush1.bf16.msra.mxu0 %v900
        %1034 = vmatprep.subr.bf16.mxu0 0
        %1035 = vmatpush1.bf16.msra.mxu0 0
        %1036 = vmatprep.subr.bf16.mxu0 0
        %1037 = vmatpush1.bf16.msra.mxu0 0
        %1038 = vmatprep.subr.bf16.mxu0 0
        %1039 = vmatpush1.bf16.msra.mxu0 0
        %1040 = vmatprep.subr.bf16.mxu0 0
        %1041 = vmatpush1.bf16.msra.mxu0 0
        %1042 = vmatprep.subr.bf16.mxu0 0
        %1043 = vmatpush1.bf16.msra.mxu0 0
        %1044 = vmatprep.subr.bf16.mxu0 0
        %1045 = vmatpush1.bf16.msra.mxu0 0
        %1046 = vmatprep.subr.bf16.mxu0 0
        %1047 = vmatpush1.bf16.msra.mxu0 0
        %1048 = vmatprep.subr.bf16.mxu0 0
        %1049 = vmatpush1.bf16.msra.mxu0 0
        %1050 = vmatprep.subr.bf16.mxu0 0
        %1051 = vmatpush1.bf16.msra.mxu0 0
        %1052 = vmatprep.subr.bf16.mxu0 0
        %1053 = vmatpush1.bf16.msra.mxu0 0
        %1054 = vmatprep.subr.bf16.mxu0 0
        %1055 = vmatpush1.bf16.msra.mxu0 0
        %1056 = vmatprep.subr.bf16.mxu0 0
        %1057 = vmatpush1.bf16.msra.mxu0 0
        %1058 = vmatprep.mubr.bf16.mxu0 0
        %1059 = vmatmul.mubr.bf16.gmra.mrb[0].mxu0 %v907
        %v1060 = vpop.f32.mrb[0].mxu0
        %v1061 = vadd.f32 0.0, %v1060
        %v1062 = vpop.f32.mrb[0].mxu0
        %v1063 = vpop.f32.mrb[0].mxu0
        %v1064 = vadd.f32 0.0, %v1063
        %v1065 = vpop.f32.mrb[0].mxu0
        %1066 = vmatprep.mubr.bf16.mxu0 0
        %1067 = vmatmul.mubr.bf16.gmra.mrb[0].mxu0 %v910
        %v1068 = vpop.f32.mrb[0].mxu0
        %v1069 = vadd.f32 0.0, %v1068
        %v1070 = vpop.f32.mrb[0].mxu0
        %v1071 = vpop.f32.mrb[0].mxu0
        %v1072 = vadd.f32 0.0, %v1071
        %v1073 = vpop.f32.mrb[0].mxu0
        %1074 = vmatprep.mubr.bf16.mxu0 0
        %1075 = vmatmul.mubr.bf16.gmra.mrb[0].mxu0 %v913
        %v1076 = vpop.f32.mrb[0].mxu0
        %v1077 = vadd.f32 0.0, %v1076
        %v1078 = vpop.f32.mrb[0].mxu0
        %v1079 = vpop.f32.mrb[0].mxu0
        %v1080 = vadd.f32 0.0, %v1079
        %v1081 = vpop.f32.mrb[0].mxu0
        %1082 = vmatprep.mubr.bf16.mxu0 0
        %1083 = vmatmul.mubr.bf16.gmra.mrb[0].mxu0 %v916
        %v1084 = vpop.f32.mrb[0].mxu0
        %v1085 = vadd.f32 0.0, %v1084
        %v1086 = vpop.f32.mrb[0].mxu0
        %v1087 = vpop.f32.mrb[0].mxu0
        %v1088 = vadd.f32 0.0, %v1087
        %v1089 = vpop.f32.mrb[0].mxu0
        %1090 = vmatprep.mubr.bf16.mxu0 0
        %1091 = vmatmul.mubr.bf16.gmra.mrb[0].mxu0 %v919
        %v1092 = vpop.f32.mrb[0].mxu0
        %v1093 = vadd.f32 0.0, %v1092
        %v1094 = vpop.f32.mrb[0].mxu0
        %v1095 = vpop.f32.mrb[0].mxu0
        %v1096 = vadd.f32 0.0, %v1095
        %v1097 = vpop.f32.mrb[0].mxu0
        %1098 = vmatprep.mubr.bf16.mxu0 0
        %1099 = vmatmul.mubr.bf16.gmra.mrb[0].mxu0 %v922
        %v1100 = vpop.f32.mrb[0].mxu0
        %v1101 = vadd.f32 0.0, %v1100
        %v1102 = vpop.f32.mrb[0].mxu0
        %v1103 = vpop.f32.mrb[0].mxu0
        %v1104 = vadd.f32 0.0, %v1103
        %v1105 = vpop.f32.mrb[0].mxu0
        %1106 = vmatprep.mubr.bf16.mxu0 0
        %1107 = vmatmul.mubr.bf16.gmra.mrb[0].mxu0 %v925
        %v1108 = vpop.f32.mrb[0].mxu0
        %v1109 = vadd.f32 0.0, %v1108
        %v1110 = vpop.f32.mrb[0].mxu0
        %v1111 = vpop.f32.mrb[0].mxu0
        %v1112 = vadd.f32 0.0, %v1111
        %v1113 = vpop.f32.mrb[0].mxu0
        %1114 = vmatprep.mubr.bf16.mxu0 0
        %1115 = vmatmul.mubr.bf16.gmra.mrb[0].mxu0 %v928
        %v1116 = vpop.f32.mrb[0].mxu0
        %v1117 = vadd.f32 0.0, %v1116
        %v1118 = vpop.f32.mrb[0].mxu0
        %v1119 = vpop.f32.mrb[0].mxu0
        %v1120 = vadd.f32 0.0, %v1119
        %v1121 = vpop.f32.mrb[0].mxu0
        %1122 = vmatprep.mubr.bf16.mxu0 0
        %1123 = vmatmul.mubr.bf16.gmra.mrb[0].mxu0 %v931
        %v1124 = vpop.f32.mrb[0].mxu0
        %v1125 = vadd.f32 0.0, %v1124
        %v1126 = vpop.f32.mrb[0].mxu0
        %v1127 = vpop.f32.mrb[0].mxu0
        %v1128 = vadd.f32 0.0, %v1127
        %v1129 = vpop.f32.mrb[0].mxu0
        %1130 = vmatprep.mubr.bf16.mxu0 0
        %1131 = vmatmul.mubr.bf16.gmra.mrb[0].mxu0 %v934
        %v1132 = vpop.f32.mrb[0].mxu0
        %v1133 = vadd.f32 0.0, %v1132
        %v1134 = vpop.f32.mrb[0].mxu0
        %v1135 = vpop.f32.mrb[0].mxu0
        %v1136 = vadd.f32 0.0, %v1135
        %v1137 = vpop.f32.mrb[0].mxu0
        %1138 = vmatprep.mubr.bf16.mxu0 0
        %1139 = vmatmul.mubr.bf16.gmra.mrb[0].mxu0 %v937
        %v1140 = vpop.f32.mrb[0].mxu0
        %v1141 = vadd.f32 0.0, %v1140
        %v1142 = vpop.f32.mrb[0].mxu0
        %v1143 = vpop.f32.mrb[0].mxu0
        %v1144 = vadd.f32 0.0, %v1143
        %v1145 = vpop.f32.mrb[0].mxu0
        %1146 = vmatprep.mubr.bf16.mxu0 0
        %1147 = vmatmul.mubr.bf16.gmra.mrb[0].mxu0 %v940
        %v1148 = vpop.f32.mrb[0].mxu0
        %v1149 = vadd.f32 0.0, %v1148
        %v1150 = vpop.f32.mrb[0].mxu0
        %v1151 = vpop.f32.mrb[0].mxu0
        %v1152 = vadd.f32 0.0, %v1151
        %v1153 = vpop.f32.mrb[0].mxu0
        %1154 = vmatprep.mubr.bf16.mxu0 0
        %1155 = vmatmul.mubr.bf16.gmra.mrb[0].mxu0 %v943
        %v1156 = vpop.f32.mrb[0].mxu0
        %v1157 = vadd.f32 0.0, %v1156
        %v1158 = vpop.f32.mrb[0].mxu0
        %v1159 = vpop.f32.mrb[0].mxu0
        %v1160 = vadd.f32 0.0, %v1159
        %v1161 = vpop.f32.mrb[0].mxu0
        %1162 = vmatprep.mubr.bf16.mxu0 0
        %1163 = vmatmul.mubr.bf16.gmra.mrb[0].mxu0 %v946
        %v1164 = vpop.f32.mrb[0].mxu0
        %v1165 = vadd.f32 0.0, %v1164
        %v1166 = vpop.f32.mrb[0].mxu0
        %v1167 = vpop.f32.mrb[0].mxu0
        %v1168 = vadd.f32 0.0, %v1167
        %v1169 = vpop.f32.mrb[0].mxu0
        %1170 = vmatprep.mubr.bf16.mxu0 0
        %1171 = vmatmul.mubr.bf16.gmra.mrb[0].mxu0 %v949
        %v1172 = vpop.f32.mrb[0].mxu0
        %v1173 = vadd.f32 0.0, %v1172
        %v1174 = vpop.f32.mrb[0].mxu0
        %v1175 = vpop.f32.mrb[0].mxu0
        %v1176 = vadd.f32 0.0, %v1175
        %v1177 = vpop.f32.mrb[0].mxu0
        %1178 = vmatprep.mubr.bf16.mxu0 0
        %1179 = vmatmul.mubr.bf16.gmra.mrb[0].mxu0 %v952
        %v1180 = vpop.f32.mrb[0].mxu0
        %v1181 = vadd.f32 0.0, %v1180
        %v1182 = vpop.f32.mrb[0].mxu0
        %v1183 = vpop.f32.mrb[0].mxu0
        %v1184 = vadd.f32 0.0, %v1183
        %v1185 = vpop.f32.mrb[0].mxu0
        %1186 = vmatprep.mubr.bf16.mxu0 0
        %1187 = vmatmul.mubr.bf16.gmra.mrb[0].mxu0 %v955
        %v1188 = vpop.f32.mrb[0].mxu0
        %v1189 = vadd.f32 0.0, %v1188
        %v1190 = vpop.f32.mrb[0].mxu0
        %v1191 = vpop.f32.mrb[0].mxu0
        %v1192 = vadd.f32 0.0, %v1191
        %v1193 = vpop.f32.mrb[0].mxu0
        %1194 = vmatprep.mubr.bf16.mxu0 0
        %1195 = vmatmul.mubr.bf16.gmra.mrb[0].mxu0 %v958
        %v1196 = vpop.f32.mrb[0].mxu0
        %v1197 = vadd.f32 0.0, %v1196
        %v1198 = vpop.f32.mrb[0].mxu0
        %v1199 = vpop.f32.mrb[0].mxu0
        %v1200 = vadd.f32 0.0, %v1199
        %v1201 = vpop.f32.mrb[0].mxu0
        %1202 = vmatprep.mubr.bf16.mxu0 0
        %1203 = vmatmul.mubr.bf16.gmra.mrb[0].mxu0 %v961
        %v1204 = vpop.f32.mrb[0].mxu0
        %v1205 = vadd.f32 0.0, %v1204
        %v1206 = vpop.f32.mrb[0].mxu0
        %v1207 = vpop.f32.mrb[0].mxu0
        %v1208 = vadd.f32 0.0, %v1207
        %v1209 = vpop.f32.mrb[0].mxu0
        %1210 = vmatprep.mubr.bf16.mxu0 0
        %1211 = vmatmul.mubr.bf16.gmra.mrb[0].mxu0 %v964
        %v1212 = vpop.f32.mrb[0].mxu0
        %v1213 = vadd.f32 0.0, %v1212
        %v1214 = vpop.f32.mrb[0].mxu0
        %v1215 = vpop.f32.mrb[0].mxu0
        %v1216 = vadd.f32 0.0, %v1215
        %v1217 = vpop.f32.mrb[0].mxu0
        %1218 = vmatprep.mubr.bf16.mxu0 0
        %1219 = vmatmul.mubr.bf16.gmra.mrb[0].mxu0 %v967
        %v1220 = vpop.f32.mrb[0].mxu0
        %v1221 = vadd.f32 0.0, %v1220
        %v1222 = vpop.f32.mrb[0].mxu0
        %v1223 = vpop.f32.mrb[0].mxu0
        %v1224 = vadd.f32 0.0, %v1223
        %v1225 = vpop.f32.mrb[0].mxu0
        %1226 = vmatprep.mubr.bf16.mxu0 0
        %1227 = vmatmul.mubr.bf16.gmra.mrb[0].mxu0 %v970
        %v1228 = vpop.f32.mrb[0].mxu0
        %v1229 = vadd.f32 0.0, %v1228
        %v1230 = vpop.f32.mrb[0].mxu0
        %v1231 = vpop.f32.mrb[0].mxu0
        %v1232 = vadd.f32 0.0, %v1231
        %v1233 = vpop.f32.mrb[0].mxu0
        %1234 = vmatprep.mubr.bf16.mxu0 0
        %1235 = vmatmul.mubr.bf16.gmra.mrb[0].mxu0 %v973
        %v1236 = vpop.f32.mrb[0].mxu0
        %v1237 = vadd.f32 0.0, %v1236
        %v1238 = vpop.f32.mrb[0].mxu0
        %v1239 = vpop.f32.mrb[0].mxu0
        %v1240 = vadd.f32 0.0, %v1239
        %v1241 = vpop.f32.mrb[0].mxu0
        %1242 = vmatprep.mubr.bf16.mxu0 0
        %1243 = vmatmul.mubr.bf16.gmra.mrb[0].mxu0 %v976
        %v1244 = vpop.f32.mrb[0].mxu0
        %v1245 = vadd.f32 0.0, %v1244
        %v1246 = vpop.f32.mrb[0].mxu0
        %v1247 = vpop.f32.mrb[0].mxu0
        %v1248 = vadd.f32 0.0, %v1247
        %v1249 = vpop.f32.mrb[0].mxu0
        %1250 = vmatprep.mubr.bf16.mxu0 0
        %1251 = vmatmul.mubr.bf16.gmra.mrb[0].mxu0 %v979
        %v1252 = vpop.f32.mrb[0].mxu0
        %v1253 = vadd.f32 0.0, %v1252
        %v1254 = vpop.f32.mrb[0].mxu0
        %v1255 = vpop.f32.mrb[0].mxu0
        %v1256 = vadd.f32 0.0, %v1255
        %v1257 = vpop.f32.mrb[0].mxu0
        %1258 = vmatprep.mubr.bf16.mxu0 0
        %1259 = vmatmul.mubr.bf16.gmra.mrb[0].mxu0 %v982
        %v1260 = vpop.f32.mrb[0].mxu0
        %v1261 = vadd.f32 0.0, %v1260
        %v1262 = vpop.f32.mrb[0].mxu0
        %v1263 = vpop.f32.mrb[0].mxu0
        %v1264 = vadd.f32 0.0, %v1263
        %v1265 = vpop.f32.mrb[0].mxu0
        %1266 = vmatprep.mubr.bf16.mxu0 0
        %1267 = vmatmul.mubr.bf16.gmra.mrb[0].mxu0 %v985
        %v1268 = vpop.f32.mrb[0].mxu0
        %v1269 = vadd.f32 0.0, %v1268
        %v1270 = vpop.f32.mrb[0].mxu0
        %v1271 = vpop.f32.mrb[0].mxu0
        %v1272 = vadd.f32 0.0, %v1271
        %v1273 = vpop.f32.mrb[0].mxu0
        %1274 = vmatprep.mubr.bf16.mxu0 0
        %1275 = vmatmul.mubr.bf16.gmra.mrb[0].mxu0 %v988
        %v1276 = vpop.f32.mrb[0].mxu0
        %v1277 = vadd.f32 0.0, %v1276
        %v1278 = vpop.f32.mrb[0].mxu0
        %v1279 = vpop.f32.mrb[0].mxu0
        %v1280 = vadd.f32 0.0, %v1279
        %v1281 = vpop.f32.mrb[0].mxu0
        %1282 = vmatprep.mubr.bf16.mxu0 0
        %1283 = vmatmul.mubr.bf16.gmra.mrb[0].mxu0 %v991
        %v1284 = vpop.f32.mrb[0].mxu0
        %v1285 = vadd.f32 0.0, %v1284
        %v1286 = vpop.f32.mrb[0].mxu0
        %v1287 = vpop.f32.mrb[0].mxu0
        %v1288 = vadd.f32 0.0, %v1287
        %v1289 = vpop.f32.mrb[0].mxu0
        %1290 = vmatprep.mubr.bf16.mxu0 0
        %1291 = vmatmul.mubr.bf16.gmra.mrb[0].mxu0 %v994
        %v1292 = vpop.f32.mrb[0].mxu0
        %v1293 = vadd.f32 0.0, %v1292
        %v1294 = vpop.f32.mrb[0].mxu0
        %v1295 = vpop.f32.mrb[0].mxu0
        %v1296 = vadd.f32 0.0, %v1295
        %v1297 = vpop.f32.mrb[0].mxu0
        %1298 = vmatprep.mubr.bf16.mxu0 0
        %1299 = vmatmul.mubr.bf16.gmra.mrb[0].mxu0 %v997
        %v1300 = vpop.f32.mrb[0].mxu0
        %v1301 = vadd.f32 0.0, %v1300
        %v1302 = vpop.f32.mrb[0].mxu0
        %v1303 = vpop.f32.mrb[0].mxu0
        %v1304 = vadd.f32 0.0, %v1303
        %v1305 = vpop.f32.mrb[0].mxu0
        %1306 = vmatprep.mubr.bf16.mxu0 0
        %1307 = vmatmul.mubr.bf16.gmra.mrb[0].mxu0 %v1000
        %v1308 = vpop.f32.mrb[0].mxu0
        %v1309 = vadd.f32 0.0, %v1308
        %v1310 = vpop.f32.mrb[0].mxu0
        %v1311 = vpop.f32.mrb[0].mxu0
        %v1312 = vadd.f32 0.0, %v1311
        %v1313 = vpop.f32.mrb[0].mxu0
        %1314 = vmatprep.mubr.bf16.mxu0 0
        %1315 = vmatmul.mubr.bf16.gmra.mrb[0].mxu0 %v1003
        %v1316 = vpop.f32.mrb[0].mxu0
        %v1317 = vadd.f32 0.0, %v1316
        %v1318 = vpop.f32.mrb[0].mxu0
        %v1319 = vpop.f32.mrb[0].mxu0
        %v1320 = vadd.f32 0.0, %v1319
        %v1321 = vpop.f32.mrb[0].mxu0
        %1322 = vmatprep.mubr.bf16.mxu0 0
        %1323 = vmatmul.mubr.bf16.gmra.mrb[0].mxu0 %v1006
        %v1324 = vpop.f32.mrb[0].mxu0
        %v1325 = vadd.f32 0.0, %v1324
        %v1326 = vpop.f32.mrb[0].mxu0
        %v1327 = vpop.f32.mrb[0].mxu0
        %v1328 = vadd.f32 0.0, %v1327
        %v1329 = vpop.f32.mrb[0].mxu0
        %1330 = vmatprep.mubr.bf16.mxu0 0
        %1331 = vmatmul.mubr.bf16.gmra.mrb[0].mxu0 %v1009
        %v1332 = vpop.f32.mrb[0].mxu0
        %v1333 = vadd.f32 0.0, %v1332
        %v1334 = vpop.f32.mrb[0].mxu0
        %v1335 = vpop.f32.mrb[0].mxu0
        %v1336 = vadd.f32 0.0, %v1335
        %v1337 = vpop.f32.mrb[0].mxu0
        %1338 = vmatprep.mubr.bf16.mxu0 0
        %1339 = vmatmul.mubr.bf16.gmra.mrb[0].mxu0 %v1012
        %v1340 = vpop.f32.mrb[0].mxu0
        %v1341 = vadd.f32 0.0, %v1340
        %v1342 = vpop.f32.mrb[0].mxu0
        %v1343 = vpop.f32.mrb[0].mxu0
        %v1344 = vadd.f32 0.0, %v1343
        %v1345 = vpop.f32.mrb[0].mxu0
        %1346 = vmatprep.mubr.bf16.mxu0 0
        %1347 = vmatmul.mubr.bf16.gmra.mrb[0].mxu0 %v1015
        %v1348 = vpop.f32.mrb[0].mxu0
        %v1349 = vadd.f32 0.0, %v1348
        %v1350 = vpop.f32.mrb[0].mxu0
        %v1351 = vpop.f32.mrb[0].mxu0
        %v1352 = vadd.f32 0.0, %v1351
        %v1353 = vpop.f32.mrb[0].mxu0
        %1354 = vmatprep.mubr.bf16.mxu0 0
        %1355 = vmatmul.mubr.bf16.gmra.mrb[0].mxu0 %v1018
        %v1356 = vpop.f32.mrb[0].mxu0
        %v1357 = vadd.f32 0.0, %v1356
        %v1358 = vpop.f32.mrb[0].mxu0
        %v1359 = vpop.f32.mrb[0].mxu0
        %v1360 = vadd.f32 0.0, %v1359
        %v1361 = vpop.f32.mrb[0].mxu0
        %1362 = vmatprep.mubr.bf16.mxu0 0
        %1363 = vmatmul.mubr.bf16.gmra.mrb[0].mxu0 %v1021
        %v1364 = vpop.f32.mrb[0].mxu0
        %v1365 = vadd.f32 0.0, %v1364
        %v1366 = vpop.f32.mrb[0].mxu0
        %v1367 = vpop.f32.mrb[0].mxu0
        %v1368 = vadd.f32 0.0, %v1367
        %v1369 = vpop.f32.mrb[0].mxu0
        %1370 = vmatprep.mubr.bf16.mxu0 0
        %1371 = vmatmul.mubr.bf16.gmra.mrb[0].mxu0 %v1024
        %v1372 = vpop.f32.mrb[0].mxu0
        %v1373 = vadd.f32 0.0, %v1372
        %v1374 = vpop.f32.mrb[0].mxu0
        %v1375 = vpop.f32.mrb[0].mxu0
        %v1376 = vadd.f32 0.0, %v1375
        %v1377 = vpop.f32.mrb[0].mxu0
        %1378 = vdwg.mxu0
        %v1379 = vld [vmem:[#allocation14] sm:$0xff]
        %v1380 = vld [vmem:[#allocation14 + $0x8] sm:$0xff]
        %v1381 = vld [vmem:[#allocation14 + $0x10] sm:$0xff]
        %v1382 = vld [vmem:[#allocation14 + $0x18] sm:$0xff]
        %v1383 = vld [vmem:[#allocation14 + $0x20] sm:$0xff]
        %v1384 = vld [vmem:[#allocation14 + $0x28] sm:$0xff]
        %v1385 = vld [vmem:[#allocation14 + $0x30] sm:$0xff]
        %v1386 = vld [vmem:[#allocation14 + $0x38] sm:$0xff]
        %v1387 = vadd.f32 %v1061, %v1379
        %v1388 = vadd.f32 %v1064, %v1380
        %v1389 = vadd.f32 %v1069, %v1381
        %v1390 = vadd.f32 %v1072, %v1382
        %v1391 = vadd.f32 %v1077, %v1383
        %v1392 = vadd.f32 %v1080, %v1384
        %v1393 = vadd.f32 %v1085, %v1385
        %v1394 = vadd.f32 %v1088, %v1386
        %v1395 = vmax.f32 %v1387, 0.0
        %v1396 = vmax.f32 %v1388, 0.0
        %v1397 = vmax.f32 %v1389, 0.0
        %v1398 = vmax.f32 %v1390, 0.0
        %v1399 = vmax.f32 %v1391, 0.0
        %v1400 = vmax.f32 %v1392, 0.0
        %v1401 = vmax.f32 %v1393, 0.0
        %v1402 = vmax.f32 %v1394, 0.0
        %v1403 = vpack.c.bf16 %v1096, %v1093
        %v1404 = vpack.c.bf16 %v1104, %v1101
        %v1405 = vpack.c.bf16 %v1112, %v1109
        %v1406 = vpack.c.bf16 %v1120, %v1117
        %v1407 = vld [vmem:[#allocation7] sm:$0xf]
        %v1408 = vld [vmem:[#allocation7 + $0x4] sm:$0xf]
        %v1409 = vld [vmem:[#allocation7 + $0x8] sm:$0xf]
        %v1410 = vld [vmem:[#allocation7 + $0xc] sm:$0xf]
        %v1411 = vld [vmem:[#allocation7 + $0x10] sm:$0xf]
        %v1412 = vld [vmem:[#allocation7 + $0x14] sm:$0xf]
        %v1413 = vld [vmem:[#allocation7 + $0x18] sm:$0xf]
        %v1414 = vld [vmem:[#allocation7 + $0x1c] sm:$0xf]
        %v1415 = vld [vmem:[#allocation7 + $0x20] sm:$0xf]
        %v1416 = vld [vmem:[#allocation7 + $0x24] sm:$0xf]
        %v1417 = vld [vmem:[#allocation7 + $0x28] sm:$0xf]
        %v1418 = vld [vmem:[#allocation7 + $0x2c] sm:$0xf]
        %v1419 = vld [vmem:[#allocation7 + $0x30] sm:$0xf]
        %v1420 = vld [vmem:[#allocation7 + $0x34] sm:$0xf]
        %v1421 = vld [vmem:[#allocation7 + $0x38] sm:$0xf]
        %v1422 = vld [vmem:[#allocation7 + $0x3c] sm:$0xf]
        %v1423 = vpack.c.bf16 %v1128, %v1125
        %v1424 = vpack.c.bf16 %v1136, %v1133
        %v1425 = vpack.c.bf16 %v1144, %v1141
        %v1426 = vpack.c.bf16 %v1152, %v1149
        %s1427 = scalar_lea.vmem [#allocation7], 64
        %v1428 = vld [vmem:[%s1427] sm:$0xf]
        %v1429 = vld [vmem:[%s1427 + $0x4] sm:$0xf]
        %v1430 = vld [vmem:[%s1427 + $0x8] sm:$0xf]
        %v1431 = vld [vmem:[%s1427 + $0xc] sm:$0xf]
        %v1432 = vld [vmem:[%s1427 + $0x10] sm:$0xf]
        %v1433 = vld [vmem:[%s1427 + $0x14] sm:$0xf]
        %v1434 = vld [vmem:[%s1427 + $0x18] sm:$0xf]
        %v1435 = vld [vmem:[%s1427 + $0x1c] sm:$0xf]
        %v1436 = vld [vmem:[%s1427 + $0x20] sm:$0xf]
        %v1437 = vld [vmem:[%s1427 + $0x24] sm:$0xf]
        %v1438 = vld [vmem:[%s1427 + $0x28] sm:$0xf]
        %v1439 = vld [vmem:[%s1427 + $0x2c] sm:$0xf]
        %v1440 = vld [vmem:[%s1427 + $0x30] sm:$0xf]
        %v1441 = vld [vmem:[%s1427 + $0x34] sm:$0xf]
        %v1442 = vld [vmem:[%s1427 + $0x38] sm:$0xf]
        %v1443 = vld [vmem:[%s1427 + $0x3c] sm:$0xf]
        %v1460 = vunpack.c.l.b16 %v1428
        %v1461 = vunpack.c.l.b16 %v1429
        %v1462 = vunpack.c.l.b16 %v1430
        %v1463 = vunpack.c.l.b16 %v1431
        %v1464 = vunpack.c.l.b16 %v1432
        %v1465 = vunpack.c.l.b16 %v1433
        %v1466 = vunpack.c.l.b16 %v1434
        %v1467 = vunpack.c.l.b16 %v1435
        %v1468 = vunpack.c.l.b16 %v1436
        %v1469 = vunpack.c.l.b16 %v1437
        %v1470 = vunpack.c.l.b16 %v1438
        %v1471 = vunpack.c.l.b16 %v1439
        %v1472 = vunpack.c.l.b16 %v1440
        %v1473 = vunpack.c.l.b16 %v1441
        %v1474 = vunpack.c.l.b16 %v1442
        %v1475 = vunpack.c.l.b16 %v1443
        %v1476 = vpack.c.b16 %v1461, %v1460
        %v1477 = vpack.c.b16 %v1463, %v1462
        %v1478 = vpack.c.b16 %v1465, %v1464
        %v1479 = vpack.c.b16 %v1467, %v1466
        %v1480 = vpack.c.b16 %v1469, %v1468
        %v1481 = vpack.c.b16 %v1471, %v1470
        %v1482 = vpack.c.b16 %v1473, %v1472
        %v1483 = vpack.c.b16 %v1475, %v1474
        %1492 = vmatprep.subr.bf16.mxu0 0
        %1493 = vmatpush1.bf16.msra.mxu0 %v1476
        %1494 = vmatprep.subr.bf16.mxu0 0
        %1495 = vmatpush1.bf16.msra.mxu0 %v1477
        %1496 = vmatprep.subr.bf16.mxu0 0
        %1497 = vmatpush1.bf16.msra.mxu0 %v1478
        %1498 = vmatprep.subr.bf16.mxu0 0
        %1499 = vmatpush1.bf16.msra.mxu0 %v1479
        %1500 = vmatprep.subr.bf16.mxu0 0
        %1501 = vmatpush1.bf16.msra.mxu0 %v1480
        %1502 = vmatprep.subr.bf16.mxu0 0
        %1503 = vmatpush1.bf16.msra.mxu0 %v1481
        %1504 = vmatprep.subr.bf16.mxu0 0
        %1505 = vmatpush1.bf16.msra.mxu0 %v1482
        %1506 = vmatprep.subr.bf16.mxu0 0
        %1507 = vmatpush1.bf16.msra.mxu0 %v1483
        %1508 = vmatprep.subr.bf16.mxu0 0
        %1509 = vmatpush1.bf16.msra.mxu0 0
        %1510 = vmatprep.subr.bf16.mxu0 0
        %1511 = vmatpush1.bf16.msra.mxu0 0
        %1512 = vmatprep.subr.bf16.mxu0 0
        %1513 = vmatpush1.bf16.msra.mxu0 0
        %1514 = vmatprep.subr.bf16.mxu0 0
        %1515 = vmatpush1.bf16.msra.mxu0 0
        %1516 = vmatprep.subr.bf16.mxu0 0
        %1517 = vmatpush1.bf16.msra.mxu0 0
        %1518 = vmatprep.subr.bf16.mxu0 0
        %1519 = vmatpush1.bf16.msra.mxu0 0
        %1520 = vmatprep.subr.bf16.mxu0 0
        %1521 = vmatpush1.bf16.msra.mxu0 0
        %1522 = vmatprep.subr.bf16.mxu0 0
        %1523 = vmatpush1.bf16.msra.mxu0 0
        %1524 = vmatprep.mubr.bf16.mxu0 0
        %1525 = vmatmul.mubr.bf16.gmra.mrb[0].mxu0 %v1423
        %v1526 = vpop.f32.mrb[0].mxu0
        %v1527 = vadd.f32 0.0, %v1526
        %v1528 = vpop.f32.mrb[0].mxu0
        %v1529 = vpop.f32.mrb[0].mxu0
        %v1530 = vadd.f32 0.0, %v1529
        %v1531 = vpop.f32.mrb[0].mxu0
        %1532 = vmatprep.mubr.bf16.mxu0 0
        %1533 = vmatmul.mubr.bf16.gmra.mrb[0].mxu0 %v1424
        %v1534 = vpop.f32.mrb[0].mxu0
        %v1535 = vadd.f32 0.0, %v1534
        %v1536 = vpop.f32.mrb[0].mxu0
        %v1537 = vpop.f32.mrb[0].mxu0
        %v1538 = vadd.f32 0.0, %v1537
        %v1539 = vpop.f32.mrb[0].mxu0
        %1540 = vmatprep.mubr.bf16.mxu0 0
        %1541 = vmatmul.mubr.bf16.gmra.mrb[0].mxu0 %v1425
        %v1542 = vpop.f32.mrb[0].mxu0
        %v1543 = vadd.f32 0.0, %v1542
        %v1544 = vpop.f32.mrb[0].mxu0
        %v1545 = vpop.f32.mrb[0].mxu0
        %v1546 = vadd.f32 0.0, %v1545
        %v1547 = vpop.f32.mrb[0].mxu0
        %1548 = vmatprep.mubr.bf16.mxu0 0
        %1549 = vmatmul.mubr.bf16.gmra.mrb[0].mxu0 %v1426
        %v1550 = vpop.f32.mrb[0].mxu0
        %v1551 = vadd.f32 0.0, %v1550
        %v1552 = vpop.f32.mrb[0].mxu0
        %v1553 = vpop.f32.mrb[0].mxu0
        %v1554 = vadd.f32 0.0, %v1553
        %v1555 = vpop.f32.mrb[0].mxu0
        %1556 = vdwg.mxu0
        %v1573 = vunpack.c.l.b16 %v1407
        %v1574 = vunpack.c.l.b16 %v1408
        %v1575 = vunpack.c.l.b16 %v1409
        %v1576 = vunpack.c.l.b16 %v1410
        %v1577 = vunpack.c.l.b16 %v1411
        %v1578 = vunpack.c.l.b16 %v1412
        %v1579 = vunpack.c.l.b16 %v1413
        %v1580 = vunpack.c.l.b16 %v1414
        %v1581 = vunpack.c.l.b16 %v1415
        %v1582 = vunpack.c.l.b16 %v1416
        %v1583 = vunpack.c.l.b16 %v1417
        %v1584 = vunpack.c.l.b16 %v1418
        %v1585 = vunpack.c.l.b16 %v1419
        %v1586 = vunpack.c.l.b16 %v1420
        %v1587 = vunpack.c.l.b16 %v1421
        %v1588 = vunpack.c.l.b16 %v1422
        %v1589 = vpack.c.b16 %v1574, %v1573
        %v1590 = vpack.c.b16 %v1576, %v1575
        %v1591 = vpack.c.b16 %v1578, %v1577
        %v1592 = vpack.c.b16 %v1580, %v1579
        %v1593 = vpack.c.b16 %v1582, %v1581
        %v1594 = vpack.c.b16 %v1584, %v1583
        %v1595 = vpack.c.b16 %v1586, %v1585
        %v1596 = vpack.c.b16 %v1588, %v1587
        %1605 = vmatprep.subr.bf16.mxu0 0
        %1606 = vmatpush1.bf16.msra.mxu0 %v1589
        %1607 = vmatprep.subr.bf16.mxu0 0
        %1608 = vmatpush1.bf16.msra.mxu0 %v1590
        %1609 = vmatprep.subr.bf16.mxu0 0
        %1610 = vmatpush1.bf16.msra.mxu0 %v1591
        %1611 = vmatprep.subr.bf16.mxu0 0
        %1612 = vmatpush1.bf16.msra.mxu0 %v1592
        %1613 = vmatprep.subr.bf16.mxu0 0
        %1614 = vmatpush1.bf16.msra.mxu0 %v1593
        %1615 = vmatprep.subr.bf16.mxu0 0
        %1616 = vmatpush1.bf16.msra.mxu0 %v1594
        %1617 = vmatprep.subr.bf16.mxu0 0
        %1618 = vmatpush1.bf16.msra.mxu0 %v1595
        %1619 = vmatprep.subr.bf16.mxu0 0
        %1620 = vmatpush1.bf16.msra.mxu0 %v1596
        %1621 = vmatprep.subr.bf16.mxu0 0
        %1622 = vmatpush1.bf16.msra.mxu0 0
        %1623 = vmatprep.subr.bf16.mxu0 0
        %1624 = vmatpush1.bf16.msra.mxu0 0
        %1625 = vmatprep.subr.bf16.mxu0 0
        %1626 = vmatpush1.bf16.msra.mxu0 0
        %1627 = vmatprep.subr.bf16.mxu0 0
        %1628 = vmatpush1.bf16.msra.mxu0 0
        %1629 = vmatprep.subr.bf16.mxu0 0
        %1630 = vmatpush1.bf16.msra.mxu0 0
        %1631 = vmatprep.subr.bf16.mxu0 0
        %1632 = vmatpush1.bf16.msra.mxu0 0
        %1633 = vmatprep.subr.bf16.mxu0 0
        %1634 = vmatpush1.bf16.msra.mxu0 0
        %1635 = vmatprep.subr.bf16.mxu0 0
        %1636 = vmatpush1.bf16.msra.mxu0 0
        %1637 = vmatprep.mubr.bf16.mxu0 0
        %1638 = vmatmul.mubr.bf16.gmra.mrb[0].mxu0 %v1403
        %v1639 = vpop.f32.mrb[0].mxu0
        %v1640 = vadd.f32 %v1527, %v1639
        %v1641 = vpop.f32.mrb[0].mxu0
        %v1642 = vpop.f32.mrb[0].mxu0
        %v1643 = vadd.f32 %v1530, %v1642
        %v1644 = vpop.f32.mrb[0].mxu0
        %1645 = vmatprep.mubr.bf16.mxu0 0
        %1646 = vmatmul.mubr.bf16.gmra.mrb[0].mxu0 %v1404
        %v1647 = vpop.f32.mrb[0].mxu0
        %v1648 = vadd.f32 %v1535, %v1647
        %v1649 = vpop.f32.mrb[0].mxu0
        %v1650 = vpop.f32.mrb[0].mxu0
        %v1651 = vadd.f32 %v1538, %v1650
        %v1652 = vpop.f32.mrb[0].mxu0
        %1653 = vmatprep.mubr.bf16.mxu0 0
        %1654 = vmatmul.mubr.bf16.gmra.mrb[0].mxu0 %v1405
        %v1655 = vpop.f32.mrb[0].mxu0
        %v1656 = vadd.f32 %v1543, %v1655
        %v1657 = vpop.f32.mrb[0].mxu0
        %v1658 = vpop.f32.mrb[0].mxu0
        %v1659 = vadd.f32 %v1546, %v1658
        %v1660 = vpop.f32.mrb[0].mxu0
        %1661 = vmatprep.mubr.bf16.mxu0 0
        %1662 = vmatmul.mubr.bf16.gmra.mrb[0].mxu0 %v1406
        %v1663 = vpop.f32.mrb[0].mxu0
        %v1664 = vadd.f32 %v1551, %v1663
        %v1665 = vpop.f32.mrb[0].mxu0
        %v1666 = vpop.f32.mrb[0].mxu0
        %v1667 = vadd.f32 %v1554, %v1666
        %v1668 = vpop.f32.mrb[0].mxu0
        %1669 = vdwg.mxu0
        %v1670 = vpack.c.bf16 %v1160, %v1157
        %v1671 = vpack.c.bf16 %v1168, %v1165
        %v1672 = vpack.c.bf16 %v1176, %v1173
        %v1673 = vpack.c.bf16 %v1184, %v1181
        %s1674 = scalar_lea.vmem [#allocation7], 128
        %v1675 = vld [vmem:[%s1674] sm:$0xf]
        %v1676 = vld [vmem:[%s1674 + $0x4] sm:$0xf]
        %v1677 = vld [vmem:[%s1674 + $0x8] sm:$0xf]
        %v1678 = vld [vmem:[%s1674 + $0xc] sm:$0xf]
        %v1679 = vld [vmem:[%s1674 + $0x10] sm:$0xf]
        %v1680 = vld [vmem:[%s1674 + $0x14] sm:$0xf]
        %v1681 = vld [vmem:[%s1674 + $0x18] sm:$0xf]
        %v1682 = vld [vmem:[%s1674 + $0x1c] sm:$0xf]
        %v1683 = vld [vmem:[%s1674 + $0x20] sm:$0xf]
        %v1684 = vld [vmem:[%s1674 + $0x24] sm:$0xf]
        %v1685 = vld [vmem:[%s1674 + $0x28] sm:$0xf]
        %v1686 = vld [vmem:[%s1674 + $0x2c] sm:$0xf]
        %v1687 = vld [vmem:[%s1674 + $0x30] sm:$0xf]
        %v1688 = vld [vmem:[%s1674 + $0x34] sm:$0xf]
        %v1689 = vld [vmem:[%s1674 + $0x38] sm:$0xf]
        %v1690 = vld [vmem:[%s1674 + $0x3c] sm:$0xf]
        %v1707 = vunpack.c.l.b16 %v1675
        %v1708 = vunpack.c.l.b16 %v1676
        %v1709 = vunpack.c.l.b16 %v1677
        %v1710 = vunpack.c.l.b16 %v1678
        %v1711 = vunpack.c.l.b16 %v1679
        %v1712 = vunpack.c.l.b16 %v1680
        %v1713 = vunpack.c.l.b16 %v1681
        %v1714 = vunpack.c.l.b16 %v1682
        %v1715 = vunpack.c.l.b16 %v1683
        %v1716 = vunpack.c.l.b16 %v1684
        %v1717 = vunpack.c.l.b16 %v1685
        %v1718 = vunpack.c.l.b16 %v1686
        %v1719 = vunpack.c.l.b16 %v1687
        %v1720 = vunpack.c.l.b16 %v1688
        %v1721 = vunpack.c.l.b16 %v1689
        %v1722 = vunpack.c.l.b16 %v1690
        %v1723 = vpack.c.b16 %v1708, %v1707
        %v1724 = vpack.c.b16 %v1710, %v1709
        %v1725 = vpack.c.b16 %v1712, %v1711
        %v1726 = vpack.c.b16 %v1714, %v1713
        %v1727 = vpack.c.b16 %v1716, %v1715
        %v1728 = vpack.c.b16 %v1718, %v1717
        %v1729 = vpack.c.b16 %v1720, %v1719
        %v1730 = vpack.c.b16 %v1722, %v1721
        %1739 = vmatprep.subr.bf16.mxu0 0
        %1740 = vmatpush1.bf16.msra.mxu0 %v1723
        %1741 = vmatprep.subr.bf16.mxu0 0
        %1742 = vmatpush1.bf16.msra.mxu0 %v1724
        %1743 = vmatprep.subr.bf16.mxu0 0
        %1744 = vmatpush1.bf16.msra.mxu0 %v1725
        %1745 = vmatprep.subr.bf16.mxu0 0
        %1746 = vmatpush1.bf16.msra.mxu0 %v1726
        %1747 = vmatprep.subr.bf16.mxu0 0
        %1748 = vmatpush1.bf16.msra.mxu0 %v1727
        %1749 = vmatprep.subr.bf16.mxu0 0
        %1750 = vmatpush1.bf16.msra.mxu0 %v1728
        %1751 = vmatprep.subr.bf16.mxu0 0
        %1752 = vmatpush1.bf16.msra.mxu0 %v1729
        %1753 = vmatprep.subr.bf16.mxu0 0
        %1754 = vmatpush1.bf16.msra.mxu0 %v1730
        %1755 = vmatprep.subr.bf16.mxu0 0
        %1756 = vmatpush1.bf16.msra.mxu0 0
        %1757 = vmatprep.subr.bf16.mxu0 0
        %1758 = vmatpush1.bf16.msra.mxu0 0
        %1759 = vmatprep.subr.bf16.mxu0 0
        %1760 = vmatpush1.bf16.msra.mxu0 0
        %1761 = vmatprep.subr.bf16.mxu0 0
        %1762 = vmatpush1.bf16.msra.mxu0 0
        %1763 = vmatprep.subr.bf16.mxu0 0
        %1764 = vmatpush1.bf16.msra.mxu0 0
        %1765 = vmatprep.subr.bf16.mxu0 0
        %1766 = vmatpush1.bf16.msra.mxu0 0
        %1767 = vmatprep.subr.bf16.mxu0 0
        %1768 = vmatpush1.bf16.msra.mxu0 0
        %1769 = vmatprep.subr.bf16.mxu0 0
        %1770 = vmatpush1.bf16.msra.mxu0 0
        %1771 = vmatprep.mubr.bf16.mxu0 0
        %1772 = vmatmul.mubr.bf16.gmra.mrb[0].mxu0 %v1670
        %v1773 = vpop.f32.mrb[0].mxu0
        %v1774 = vadd.f32 0.0, %v1773
        %v1775 = vpop.f32.mrb[0].mxu0
        %v1776 = vpop.f32.mrb[0].mxu0
        %v1777 = vadd.f32 0.0, %v1776
        %v1778 = vpop.f32.mrb[0].mxu0
        %1779 = vmatprep.mubr.bf16.mxu0 0
        %1780 = vmatmul.mubr.bf16.gmra.mrb[0].mxu0 %v1671
        %v1781 = vpop.f32.mrb[0].mxu0
        %v1782 = vadd.f32 0.0, %v1781
        %v1783 = vpop.f32.mrb[0].mxu0
        %v1784 = vpop.f32.mrb[0].mxu0
        %v1785 = vadd.f32 0.0, %v1784
        %v1786 = vpop.f32.mrb[0].mxu0
        %1787 = vmatprep.mubr.bf16.mxu0 0
        %1788 = vmatmul.mubr.bf16.gmra.mrb[0].mxu0 %v1672
        %v1789 = vpop.f32.mrb[0].mxu0
        %v1790 = vadd.f32 0.0, %v1789
        %v1791 = vpop.f32.mrb[0].mxu0
        %v1792 = vpop.f32.mrb[0].mxu0
        %v1793 = vadd.f32 0.0, %v1792
        %v1794 = vpop.f32.mrb[0].mxu0
        %1795 = vmatprep.mubr.bf16.mxu0 0
        %1796 = vmatmul.mubr.bf16.gmra.mrb[0].mxu0 %v1673
        %v1797 = vpop.f32.mrb[0].mxu0
        %v1798 = vadd.f32 0.0, %v1797
        %v1799 = vpop.f32.mrb[0].mxu0
        %v1800 = vpop.f32.mrb[0].mxu0
        %v1801 = vadd.f32 0.0, %v1800
        %v1802 = vpop.f32.mrb[0].mxu0
        %1803 = vdwg.mxu0
        %v1804 = vadd.f32 %v1640, %v1774
        %v1805 = vadd.f32 %v1643, %v1777
        %v1806 = vadd.f32 %v1648, %v1782
        %v1807 = vadd.f32 %v1651, %v1785
        %v1808 = vadd.f32 %v1656, %v1790
        %v1809 = vadd.f32 %v1659, %v1793
        %v1810 = vadd.f32 %v1664, %v1798
        %v1811 = vadd.f32 %v1667, %v1801
        %v1812 = vld [vmem:[#allocation16] sm:$0xff]
        %v1813 = vld [vmem:[#allocation16 + $0x8] sm:$0xff]
        %v1814 = vld [vmem:[#allocation16 + $0x10] sm:$0xff]
        %v1815 = vld [vmem:[#allocation16 + $0x18] sm:$0xff]
        %v1816 = vld [vmem:[#allocation16 + $0x20] sm:$0xff]
        %v1817 = vld [vmem:[#allocation16 + $0x28] sm:$0xff]
        %v1818 = vld [vmem:[#allocation16 + $0x30] sm:$0xff]
        %v1819 = vld [vmem:[#allocation16 + $0x38] sm:$0xff]
        %v1820 = vadd.f32 %v1804, %v1812
        %v1821 = vadd.f32 %v1805, %v1813
        %v1822 = vadd.f32 %v1806, %v1814
        %v1823 = vadd.f32 %v1807, %v1815
        %v1824 = vadd.f32 %v1808, %v1816
        %v1825 = vadd.f32 %v1809, %v1817
        %v1826 = vadd.f32 %v1810, %v1818
        %v1827 = vadd.f32 %v1811, %v1819
        %v1828 = vmax.f32 %v1820, 0.0
        %v1829 = vmax.f32 %v1821, 0.0
        %v1830 = vmax.f32 %v1822, 0.0
        %v1831 = vmax.f32 %v1823, 0.0
        %v1832 = vmax.f32 %v1824, 0.0
        %v1833 = vmax.f32 %v1825, 0.0
        %v1834 = vmax.f32 %v1826, 0.0
        %v1835 = vmax.f32 %v1827, 0.0
        %v1836 = vpack.c.bf16 %v1829, %v1828
        %v1837 = vpack.c.bf16 %v1831, %v1830
        %v1838 = vpack.c.bf16 %v1833, %v1832
        %v1839 = vpack.c.bf16 %v1835, %v1834
        %v1840 = vld [vmem:[#allocation10] sm:$0xf]
        %v1841 = vld [vmem:[#allocation10 + $0x4] sm:$0xf]
        %v1842 = vld [vmem:[#allocation10 + $0x8] sm:$0xf]
        %v1843 = vld [vmem:[#allocation10 + $0xc] sm:$0xf]
        %v1844 = vld [vmem:[#allocation10 + $0x10] sm:$0xf]
        %v1845 = vld [vmem:[#allocation10 + $0x14] sm:$0xf]
        %v1846 = vld [vmem:[#allocation10 + $0x18] sm:$0xf]
        %v1847 = vld [vmem:[#allocation10 + $0x1c] sm:$0xf]
        %v1848 = vld [vmem:[#allocation17] sm:$0xff]
        %v1849 = vld [vmem:[#allocation17 + $0x8] sm:$0xff]
        %v1850 = vld [vmem:[#allocation17 + $0x10] sm:$0xff]
        %v1851 = vld [vmem:[#allocation17 + $0x18] sm:$0xff]
        %v1852 = vld [vmem:[#allocation17 + $0x20] sm:$0xff]
        %v1853 = vld [vmem:[#allocation17 + $0x28] sm:$0xff]
        %v1854 = vld [vmem:[#allocation17 + $0x30] sm:$0xff]
        %v1855 = vld [vmem:[#allocation17 + $0x38] sm:$0xff]
        %v1864 = vunpack.c.l.b16 %v1840
        %v1865 = vunpack.c.l.b16 %v1841
        %v1866 = vunpack.c.l.b16 %v1842
        %v1867 = vunpack.c.l.b16 %v1843
        %v1868 = vunpack.c.l.b16 %v1844
        %v1869 = vunpack.c.l.b16 %v1845
        %v1870 = vunpack.c.l.b16 %v1846
        %v1871 = vunpack.c.l.b16 %v1847
        %v1872 = vpack.c.b16 %v1865, %v1864
        %v1873 = vpack.c.b16 %v1867, %v1866
        %v1874 = vpack.c.b16 %v1869, %v1868
        %v1875 = vpack.c.b16 %v1871, %v1870
        %v1877 = vsel %vm905, %v1872, 0
        %v1880 = vsel %vm905, %v1873, 0
        %v1883 = vsel %vm905, %v1874, 0
        %v1886 = vsel %vm905, %v1875, 0
        %1888 = vmatprep.subr.bf16.mxu0 0
        %1889 = vmatpush1.bf16.msra.mxu0 %v1836
        %1890 = vmatprep.subr.bf16.mxu0 0
        %1891 = vmatpush1.bf16.msra.mxu0 %v1837
        %1892 = vmatprep.subr.bf16.mxu0 0
        %1893 = vmatpush1.bf16.msra.mxu0 %v1838
        %1894 = vmatprep.subr.bf16.mxu0 0
        %1895 = vmatpush1.bf16.msra.mxu0 %v1839
        %1896 = vmatprep.subr.bf16.mxu0 0
        %1897 = vmatpush1.bf16.msra.mxu0 0
        %1898 = vmatprep.subr.bf16.mxu0 0
        %1899 = vmatpush1.bf16.msra.mxu0 0
        %1900 = vmatprep.subr.bf16.mxu0 0
        %1901 = vmatpush1.bf16.msra.mxu0 0
        %1902 = vmatprep.subr.bf16.mxu0 0
        %1903 = vmatpush1.bf16.msra.mxu0 0
        %1904 = vmatprep.subr.bf16.mxu0 0
        %1905 = vmatpush1.bf16.msra.mxu0 0
        %1906 = vmatprep.subr.bf16.mxu0 0
        %1907 = vmatpush1.bf16.msra.mxu0 0
        %1908 = vmatprep.subr.bf16.mxu0 0
        %1909 = vmatpush1.bf16.msra.mxu0 0
        %1910 = vmatprep.subr.bf16.mxu0 0
        %1911 = vmatpush1.bf16.msra.mxu0 0
        %1912 = vmatprep.subr.bf16.mxu0 0
        %1913 = vmatpush1.bf16.msra.mxu0 0
        %1914 = vmatprep.subr.bf16.mxu0 0
        %1915 = vmatpush1.bf16.msra.mxu0 0
        %1916 = vmatprep.subr.bf16.mxu0 0
        %1917 = vmatpush1.bf16.msra.mxu0 0
        %1918 = vmatprep.subr.bf16.mxu0 0
        %1919 = vmatpush1.bf16.msra.mxu0 0
        %1920 = vmatprep.mubr.bf16.mxu0 0
        %1921 = vmatmul.mubr.bf16.gmra.mrb[0].mxu0 %v1877
        %v1922 = vpop.f32.mrb[0].mxu0
        %v1923 = vadd.f32 %v1848, %v1922
        %v1924 = vpop.f32.mrb[0].mxu0
        %v1925 = vpop.f32.mrb[0].mxu0
        %v1926 = vadd.f32 %v1849, %v1925
        %v1927 = vpop.f32.mrb[0].mxu0
        %1928 = vmatprep.mubr.bf16.mxu0 0
        %1929 = vmatmul.mubr.bf16.gmra.mrb[0].mxu0 %v1880
        %v1930 = vpop.f32.mrb[0].mxu0
        %v1931 = vadd.f32 %v1850, %v1930
        %v1932 = vpop.f32.mrb[0].mxu0
        %v1933 = vpop.f32.mrb[0].mxu0
        %v1934 = vadd.f32 %v1851, %v1933
        %v1935 = vpop.f32.mrb[0].mxu0
        %1936 = vmatprep.mubr.bf16.mxu0 0
        %1937 = vmatmul.mubr.bf16.gmra.mrb[0].mxu0 %v1883
        %v1938 = vpop.f32.mrb[0].mxu0
        %v1939 = vadd.f32 %v1852, %v1938
        %v1940 = vpop.f32.mrb[0].mxu0
        %v1941 = vpop.f32.mrb[0].mxu0
        %v1942 = vadd.f32 %v1853, %v1941
        %v1943 = vpop.f32.mrb[0].mxu0
        %1944 = vmatprep.mubr.bf16.mxu0 0
        %1945 = vmatmul.mubr.bf16.gmra.mrb[0].mxu0 %v1886
        %v1946 = vpop.f32.mrb[0].mxu0
        %v1947 = vadd.f32 %v1854, %v1946
        %v1948 = vpop.f32.mrb[0].mxu0
        %v1949 = vpop.f32.mrb[0].mxu0
        %v1950 = vadd.f32 %v1855, %v1949
        %v1951 = vpop.f32.mrb[0].mxu0
        %1952 = vdwg.mxu0
        %v1953 = vmax.f32 %v1923, 0.0
        %v1954 = vmax.f32 %v1926, 0.0
        %v1955 = vmax.f32 %v1931, 0.0
        %v1956 = vmax.f32 %v1934, 0.0
        %v1957 = vmax.f32 %v1939, 0.0
        %v1958 = vmax.f32 %v1942, 0.0
        %v1959 = vmax.f32 %v1947, 0.0
        %v1960 = vmax.f32 %v1950, 0.0
        %v1961 = vadd.f32 %v1395, %v1953
        %v1962 = vadd.f32 %v1396, %v1954
        %v1963 = vadd.f32 %v1397, %v1955
        %v1964 = vadd.f32 %v1398, %v1956
        %v1965 = vadd.f32 %v1399, %v1957
        %v1966 = vadd.f32 %v1400, %v1958
        %v1967 = vadd.f32 %v1401, %v1959
        %v1968 = vadd.f32 %v1402, %v1960
        %v1969 = vld [vmem:[#allocation8] sm:$0x1]
        %v1971 = vlaneseq
        %v1972 = vshrl.u32 %v1971, 7
        %v1973 = vsub.s32 0, %v1972
        %v1974 = vrot.slane %v1969, %v1973
        %v1976 = vmul.f32 %v1189, %v1974
        %v1977 = vmul.f32 %v1192, %v1974
        %v1978 = vmul.f32 %v1197, %v1974
        %v1979 = vmul.f32 %v1200, %v1974
        %v1980 = vmul.f32 %v1205, %v1974
        %v1981 = vmul.f32 %v1208, %v1974
        %v1982 = vmul.f32 %v1213, %v1974
        %v1983 = vmul.f32 %v1216, %v1974
        %v1984 = vmul.f32 %v1221, %v1974
        %v1985 = vmul.f32 %v1224, %v1974
        %v1986 = vmul.f32 %v1229, %v1974
        %v1987 = vmul.f32 %v1232, %v1974
        %v1988 = vmul.f32 %v1237, %v1974
        %v1989 = vmul.f32 %v1240, %v1974
        %v1990 = vmul.f32 %v1245, %v1974
        %v1991 = vmul.f32 %v1248, %v1974
        %s1992 = scalar_lea.vmem [#allocation8], 1
        %v1993 = vld [vmem:[%s1992] sm:$0x1]
        %v1995 = vlaneseq
        %v1996 = vshrl.u32 %v1995, 7
        %v1997 = vsub.s32 0, %v1996
        %v1998 = vrot.slane %v1993, %v1997
        %v2000 = vmul.f32 %v1253, %v1998
        %v2001 = vmul.f32 %v1256, %v1998
        %v2002 = vmul.f32 %v1261, %v1998
        %v2003 = vmul.f32 %v1264, %v1998
        %v2004 = vmul.f32 %v1269, %v1998
        %v2005 = vmul.f32 %v1272, %v1998
        %v2006 = vmul.f32 %v1277, %v1998
        %v2007 = vmul.f32 %v1280, %v1998
        %v2008 = vmul.f32 %v1285, %v1998
        %v2009 = vmul.f32 %v1288, %v1998
        %v2010 = vmul.f32 %v1293, %v1998
        %v2011 = vmul.f32 %v1296, %v1998
        %v2012 = vmul.f32 %v1301, %v1998
        %v2013 = vmul.f32 %v1304, %v1998
        %v2014 = vmul.f32 %v1309, %v1998
        %v2015 = vmul.f32 %v1312, %v1998
        %v2016 = vadd.f32 %v1976, %v2000
        %v2017 = vadd.f32 %v1977, %v2001
        %v2018 = vadd.f32 %v1978, %v2002
        %v2019 = vadd.f32 %v1979, %v2003
        %v2020 = vadd.f32 %v1980, %v2004
        %v2021 = vadd.f32 %v1981, %v2005
        %v2022 = vadd.f32 %v1982, %v2006
        %v2023 = vadd.f32 %v1983, %v2007
        %v2024 = vadd.f32 %v1984, %v2008
        %v2025 = vadd.f32 %v1985, %v2009
        %v2026 = vadd.f32 %v1986, %v2010
        %v2027 = vadd.f32 %v1987, %v2011
        %v2028 = vadd.f32 %v1988, %v2012
        %v2029 = vadd.f32 %v1989, %v2013
        %v2030 = vadd.f32 %v1990, %v2014
        %v2031 = vadd.f32 %v1991, %v2015
        %s2032 = scalar_lea.vmem [#allocation8], 2
        %v2033 = vld [vmem:[%s2032] sm:$0x1]
        %v2035 = vlaneseq
        %v2036 = vshrl.u32 %v2035, 7
        %v2037 = vsub.s32 0, %v2036
        %v2038 = vrot.slane %v2033, %v2037
        %v2040 = vmul.f32 %v1317, %v2038
        %v2041 = vmul.f32 %v1320, %v2038
        %v2042 = vmul.f32 %v1325, %v2038
        %v2043 = vmul.f32 %v1328, %v2038
        %v2044 = vmul.f32 %v1333, %v2038
        %v2045 = vmul.f32 %v1336, %v2038
        %v2046 = vmul.f32 %v1341, %v2038
        %v2047 = vmul.f32 %v1344, %v2038
        %v2048 = vmul.f32 %v1349, %v2038
        %v2049 = vmul.f32 %v1352, %v2038
        %v2050 = vmul.f32 %v1357, %v2038
        %v2051 = vmul.f32 %v1360, %v2038
        %v2052 = vmul.f32 %v1365, %v2038
        %v2053 = vmul.f32 %v1368, %v2038
        %v2054 = vmul.f32 %v1373, %v2038
        %v2055 = vmul.f32 %v1376, %v2038
        %v2056 = vadd.f32 %v2016, %v2040
        %v2057 = vadd.f32 %v2017, %v2041
        %v2058 = vadd.f32 %v2018, %v2042
        %v2059 = vadd.f32 %v2019, %v2043
        %v2060 = vadd.f32 %v2020, %v2044
        %v2061 = vadd.f32 %v2021, %v2045
        %v2062 = vadd.f32 %v2022, %v2046
        %v2063 = vadd.f32 %v2023, %v2047
        %v2064 = vadd.f32 %v2024, %v2048
        %v2065 = vadd.f32 %v2025, %v2049
        %v2066 = vadd.f32 %v2026, %v2050
        %v2067 = vadd.f32 %v2027, %v2051
        %v2068 = vadd.f32 %v2028, %v2052
        %v2069 = vadd.f32 %v2029, %v2053
        %v2070 = vadd.f32 %v2030, %v2054
        %v2071 = vadd.f32 %v2031, %v2055
        %v2072 = vld [vmem:[#allocation19] sm:$0xff]
        %v2073 = vld [vmem:[#allocation19 + $0x8] sm:$0xff]
        %v2074 = vld [vmem:[#allocation19 + $0x10] sm:$0xff]
        %v2075 = vld [vmem:[#allocation19 + $0x18] sm:$0xff]
        %v2076 = vld [vmem:[#allocation19 + $0x20] sm:$0xff]
        %v2077 = vld [vmem:[#allocation19 + $0x28] sm:$0xff]
        %v2078 = vld [vmem:[#allocation19 + $0x30] sm:$0xff]
        %v2079 = vld [vmem:[#allocation19 + $0x38] sm:$0xff]
        %v2080 = vld [vmem:[#allocation19 + $0x40] sm:$0xff]
        %v2081 = vld [vmem:[#allocation19 + $0x48] sm:$0xff]
        %v2082 = vld [vmem:[#allocation19 + $0x50] sm:$0xff]
        %v2083 = vld [vmem:[#allocation19 + $0x58] sm:$0xff]
        %v2084 = vld [vmem:[#allocation19 + $0x60] sm:$0xff]
        %v2085 = vld [vmem:[#allocation19 + $0x68] sm:$0xff]
        %v2086 = vld [vmem:[#allocation19 + $0x70] sm:$0xff]
        %v2087 = vld [vmem:[#allocation19 + $0x78] sm:$0xff]
        %v2088 = vadd.f32 %v2056, %v2072
        %v2089 = vadd.f32 %v2057, %v2073
        %v2090 = vadd.f32 %v2058, %v2074
        %v2091 = vadd.f32 %v2059, %v2075
        %v2092 = vadd.f32 %v2060, %v2076
        %v2093 = vadd.f32 %v2061, %v2077
        %v2094 = vadd.f32 %v2062, %v2078
        %v2095 = vadd.f32 %v2063, %v2079
        %v2096 = vadd.f32 %v2064, %v2080
        %v2097 = vadd.f32 %v2065, %v2081
        %v2098 = vadd.f32 %v2066, %v2082
        %v2099 = vadd.f32 %v2067, %v2083
        %v2100 = vadd.f32 %v2068, %v2084
        %v2101 = vadd.f32 %v2069, %v2085
        %v2102 = vadd.f32 %v2070, %v2086
        %v2103 = vadd.f32 %v2071, %v2087
        %v2104 = vmax.f32 %v2088, 0.0
        %v2105 = vmax.f32 %v2089, 0.0
        %v2106 = vmax.f32 %v2090, 0.0
        %v2107 = vmax.f32 %v2091, 0.0
        %v2108 = vmax.f32 %v2092, 0.0
        %v2109 = vmax.f32 %v2093, 0.0
        %v2110 = vmax.f32 %v2094, 0.0
        %v2111 = vmax.f32 %v2095, 0.0
        %v2112 = vmax.f32 %v2096, 0.0
        %v2113 = vmax.f32 %v2097, 0.0
        %v2114 = vmax.f32 %v2098, 0.0
        %v2115 = vmax.f32 %v2099, 0.0
        %v2116 = vmax.f32 %v2100, 0.0
        %v2117 = vmax.f32 %v2101, 0.0
        %v2118 = vmax.f32 %v2102, 0.0
        %v2119 = vmax.f32 %v2103, 0.0
        %v2120 = vpack.c.bf16 %v2105, %v2104
        %v2121 = vpack.c.bf16 %v2107, %v2106
        %v2122 = vpack.c.bf16 %v2109, %v2108
        %v2123 = vpack.c.bf16 %v2111, %v2110
        %v2124 = vpack.c.bf16 %v2113, %v2112
        %v2125 = vpack.c.bf16 %v2115, %v2114
        %v2126 = vpack.c.bf16 %v2117, %v2116
        %v2127 = vpack.c.bf16 %v2119, %v2118
        %v2128 = vld [vmem:[#allocation11] sm:$0xf]
        %v2129 = vld [vmem:[#allocation11 + $0x4] sm:$0xf]
        %v2130 = vld [vmem:[#allocation11 + $0x8] sm:$0xf]
        %v2131 = vld [vmem:[#allocation11 + $0xc] sm:$0xf]
        %v2132 = vld [vmem:[#allocation11 + $0x10] sm:$0xf]
        %v2133 = vld [vmem:[#allocation11 + $0x14] sm:$0xf]
        %v2134 = vld [vmem:[#allocation11 + $0x18] sm:$0xf]
        %v2135 = vld [vmem:[#allocation11 + $0x1c] sm:$0xf]
        %v2136 = vld [vmem:[#allocation20] sm:$0xff]
        %v2137 = vld [vmem:[#allocation20 + $0x8] sm:$0xff]
        %v2138 = vld [vmem:[#allocation20 + $0x10] sm:$0xff]
        %v2139 = vld [vmem:[#allocation20 + $0x18] sm:$0xff]
        %v2140 = vld [vmem:[#allocation20 + $0x20] sm:$0xff]
        %v2141 = vld [vmem:[#allocation20 + $0x28] sm:$0xff]
        %v2142 = vld [vmem:[#allocation20 + $0x30] sm:$0xff]
        %v2143 = vld [vmem:[#allocation20 + $0x38] sm:$0xff]
        %v2152 = vunpack.c.l.b16 %v2128
        %v2153 = vunpack.c.l.b16 %v2129
        %v2154 = vunpack.c.l.b16 %v2130
        %v2155 = vunpack.c.l.b16 %v2131
        %v2156 = vunpack.c.l.b16 %v2132
        %v2157 = vunpack.c.l.b16 %v2133
        %v2158 = vunpack.c.l.b16 %v2134
        %v2159 = vunpack.c.l.b16 %v2135
        %v2160 = vpack.c.b16 %v2153, %v2152
        %v2161 = vpack.c.b16 %v2155, %v2154
        %v2162 = vpack.c.b16 %v2157, %v2156
        %v2163 = vpack.c.b16 %v2159, %v2158
        %2168 = vmatprep.subr.bf16.mxu0 0
        %2169 = vmatpush1.bf16.msra.mxu0 %v2120
        %2170 = vmatprep.subr.bf16.mxu0 0
        %2171 = vmatpush1.bf16.msra.mxu0 %v2121
        %2172 = vmatprep.subr.bf16.mxu0 0
        %2173 = vmatpush1.bf16.msra.mxu0 %v2122
        %2174 = vmatprep.subr.bf16.mxu0 0
        %2175 = vmatpush1.bf16.msra.mxu0 %v2123
        %2176 = vmatprep.subr.bf16.mxu0 0
        %2177 = vmatpush1.bf16.msra.mxu0 %v2124
        %2178 = vmatprep.subr.bf16.mxu0 0
        %2179 = vmatpush1.bf16.msra.mxu0 %v2125
        %2180 = vmatprep.subr.bf16.mxu0 0
        %2181 = vmatpush1.bf16.msra.mxu0 %v2126
        %2182 = vmatprep.subr.bf16.mxu0 0
        %2183 = vmatpush1.bf16.msra.mxu0 %v2127
        %2184 = vmatprep.subr.bf16.mxu0 0
        %2185 = vmatpush1.bf16.msra.mxu0 0
        %2186 = vmatprep.subr.bf16.mxu0 0
        %2187 = vmatpush1.bf16.msra.mxu0 0
        %2188 = vmatprep.subr.bf16.mxu0 0
        %2189 = vmatpush1.bf16.msra.mxu0 0
        %2190 = vmatprep.subr.bf16.mxu0 0
        %2191 = vmatpush1.bf16.msra.mxu0 0
        %2192 = vmatprep.subr.bf16.mxu0 0
        %2193 = vmatpush1.bf16.msra.mxu0 0
        %2194 = vmatprep.subr.bf16.mxu0 0
        %2195 = vmatpush1.bf16.msra.mxu0 0
        %2196 = vmatprep.subr.bf16.mxu0 0
        %2197 = vmatpush1.bf16.msra.mxu0 0
        %2198 = vmatprep.subr.bf16.mxu0 0
        %2199 = vmatpush1.bf16.msra.mxu0 0
        %2200 = vmatprep.mubr.bf16.mxu0 0
        %2201 = vmatmul.mubr.bf16.gmra.mrb[0].mxu0 %v2160
        %v2202 = vpop.f32.mrb[0].mxu0
        %v2203 = vadd.f32 %v2136, %v2202
        %v2204 = vpop.f32.mrb[0].mxu0
        %v2205 = vpop.f32.mrb[0].mxu0
        %v2206 = vadd.f32 %v2137, %v2205
        %v2207 = vpop.f32.mrb[0].mxu0
        %2208 = vmatprep.mubr.bf16.mxu0 0
        %2209 = vmatmul.mubr.bf16.gmra.mrb[0].mxu0 %v2161
        %v2210 = vpop.f32.mrb[0].mxu0
        %v2211 = vadd.f32 %v2138, %v2210
        %v2212 = vpop.f32.mrb[0].mxu0
        %v2213 = vpop.f32.mrb[0].mxu0
        %v2214 = vadd.f32 %v2139, %v2213
        %v2215 = vpop.f32.mrb[0].mxu0
        %2216 = vmatprep.mubr.bf16.mxu0 0
        %2217 = vmatmul.mubr.bf16.gmra.mrb[0].mxu0 %v2162
        %v2218 = vpop.f32.mrb[0].mxu0
        %v2219 = vadd.f32 %v2140, %v2218
        %v2220 = vpop.f32.mrb[0].mxu0
        %v2221 = vpop.f32.mrb[0].mxu0
        %v2222 = vadd.f32 %v2141, %v2221
        %v2223 = vpop.f32.mrb[0].mxu0
        %2224 = vmatprep.mubr.bf16.mxu0 0
        %2225 = vmatmul.mubr.bf16.gmra.mrb[0].mxu0 %v2163
        %v2226 = vpop.f32.mrb[0].mxu0
        %v2227 = vadd.f32 %v2142, %v2226
        %v2228 = vpop.f32.mrb[0].mxu0
        %v2229 = vpop.f32.mrb[0].mxu0
        %v2230 = vadd.f32 %v2143, %v2229
        %v2231 = vpop.f32.mrb[0].mxu0
        %2232 = vdwg.mxu0
        %v2233 = vmax.f32 %v2203, 0.0
        %v2234 = vmax.f32 %v2206, 0.0
        %v2235 = vmax.f32 %v2211, 0.0
        %v2236 = vmax.f32 %v2214, 0.0
        %v2237 = vmax.f32 %v2219, 0.0
        %v2238 = vmax.f32 %v2222, 0.0
        %v2239 = vmax.f32 %v2227, 0.0
        %v2240 = vmax.f32 %v2230, 0.0
        %v2241 = vpack.c.bf16 %v2234, %v2233
        %v2242 = vpack.c.bf16 %v2236, %v2235
        %v2243 = vpack.c.bf16 %v2238, %v2237
        %v2244 = vpack.c.bf16 %v2240, %v2239
        %v2245 = vld [vmem:[#allocation13] sm:$0xf]
        %v2246 = vld [vmem:[#allocation13 + $0x4] sm:$0xf]
        %v2247 = vld [vmem:[#allocation13 + $0x8] sm:$0xf]
        %v2248 = vld [vmem:[#allocation13 + $0xc] sm:$0xf]
        %v2249 = vld [vmem:[#allocation13 + $0x10] sm:$0xf]
        %v2250 = vld [vmem:[#allocation13 + $0x14] sm:$0xf]
        %v2251 = vld [vmem:[#allocation13 + $0x18] sm:$0xf]
        %v2252 = vld [vmem:[#allocation13 + $0x1c] sm:$0xf]
        %v2253 = vld [vmem:[#allocation13 + $0x20] sm:$0xf]
        %v2254 = vld [vmem:[#allocation13 + $0x24] sm:$0xf]
        %v2255 = vld [vmem:[#allocation13 + $0x28] sm:$0xf]
        %v2256 = vld [vmem:[#allocation13 + $0x2c] sm:$0xf]
        %v2257 = vld [vmem:[#allocation13 + $0x30] sm:$0xf]
        %v2258 = vld [vmem:[#allocation13 + $0x34] sm:$0xf]
        %v2259 = vld [vmem:[#allocation13 + $0x38] sm:$0xf]
        %v2260 = vld [vmem:[#allocation13 + $0x3c] sm:$0xf]
        %v2277 = vunpack.c.l.b16 %v2245
        %v2278 = vunpack.c.l.b16 %v2246
        %v2279 = vunpack.c.l.b16 %v2247
        %v2280 = vunpack.c.l.b16 %v2248
        %v2281 = vunpack.c.l.b16 %v2249
        %v2282 = vunpack.c.l.b16 %v2250
        %v2283 = vunpack.c.l.b16 %v2251
        %v2284 = vunpack.c.l.b16 %v2252
        %v2285 = vunpack.c.l.b16 %v2253
        %v2286 = vunpack.c.l.b16 %v2254
        %v2287 = vunpack.c.l.b16 %v2255
        %v2288 = vunpack.c.l.b16 %v2256
        %v2289 = vunpack.c.l.b16 %v2257
        %v2290 = vunpack.c.l.b16 %v2258
        %v2291 = vunpack.c.l.b16 %v2259
        %v2292 = vunpack.c.l.b16 %v2260
        %v2293 = vpack.c.b16 %v2278, %v2277
        %v2294 = vpack.c.b16 %v2280, %v2279
        %v2295 = vpack.c.b16 %v2282, %v2281
        %v2296 = vpack.c.b16 %v2284, %v2283
        %v2297 = vpack.c.b16 %v2286, %v2285
        %v2298 = vpack.c.b16 %v2288, %v2287
        %v2299 = vpack.c.b16 %v2290, %v2289
        %v2300 = vpack.c.b16 %v2292, %v2291
        %2309 = vmatprep.subr.bf16.mxu0 0
        %2310 = vmatpush1.bf16.msra.mxu0 %v2293
        %2311 = vmatprep.subr.bf16.mxu0 0
        %2312 = vmatpush1.bf16.msra.mxu0 %v2294
        %2313 = vmatprep.subr.bf16.mxu0 0
        %2314 = vmatpush1.bf16.msra.mxu0 %v2295
        %2315 = vmatprep.subr.bf16.mxu0 0
        %2316 = vmatpush1.bf16.msra.mxu0 %v2296
        %2317 = vmatprep.subr.bf16.mxu0 0
        %2318 = vmatpush1.bf16.msra.mxu0 %v2297
        %2319 = vmatprep.subr.bf16.mxu0 0
        %2320 = vmatpush1.bf16.msra.mxu0 %v2298
        %2321 = vmatprep.subr.bf16.mxu0 0
        %2322 = vmatpush1.bf16.msra.mxu0 %v2299
        %2323 = vmatprep.subr.bf16.mxu0 0
        %2324 = vmatpush1.bf16.msra.mxu0 %v2300
        %2325 = vmatprep.subr.bf16.mxu0 0
        %2326 = vmatpush1.bf16.msra.mxu0 0
        %2327 = vmatprep.subr.bf16.mxu0 0
        %2328 = vmatpush1.bf16.msra.mxu0 0
        %2329 = vmatprep.subr.bf16.mxu0 0
        %2330 = vmatpush1.bf16.msra.mxu0 0
        %2331 = vmatprep.subr.bf16.mxu0 0
        %2332 = vmatpush1.bf16.msra.mxu0 0
        %2333 = vmatprep.subr.bf16.mxu0 0
        %2334 = vmatpush1.bf16.msra.mxu0 0
        %2335 = vmatprep.subr.bf16.mxu0 0
        %2336 = vmatpush1.bf16.msra.mxu0 0
        %2337 = vmatprep.subr.bf16.mxu0 0
        %2338 = vmatpush1.bf16.msra.mxu0 0
        %2339 = vmatprep.subr.bf16.mxu0 0
        %2340 = vmatpush1.bf16.msra.mxu0 0
        %2341 = vmatprep.mubr.bf16.mxu0 0
        %2342 = vmatmul.mubr.bf16.gmra.mrb[0].mxu0 %v2241
        %v2343 = vpop.f32.mrb[0].mxu0
        %v2344 = vadd.f32 %v1961, %v2343
        %v2345 = vpop.f32.mrb[0].mxu0
        %v2346 = vpop.f32.mrb[0].mxu0
        %v2347 = vadd.f32 %v1962, %v2346
        %v2348 = vpop.f32.mrb[0].mxu0
        %2349 = vmatprep.mubr.bf16.mxu0 0
        %2350 = vmatmul.mubr.bf16.gmra.mrb[0].mxu0 %v2242
        %v2351 = vpop.f32.mrb[0].mxu0
        %v2352 = vadd.f32 %v1963, %v2351
        %v2353 = vpop.f32.mrb[0].mxu0
        %v2354 = vpop.f32.mrb[0].mxu0
        %v2355 = vadd.f32 %v1964, %v2354
        %v2356 = vpop.f32.mrb[0].mxu0
        %2357 = vmatprep.mubr.bf16.mxu0 0
        %2358 = vmatmul.mubr.bf16.gmra.mrb[0].mxu0 %v2243
        %v2359 = vpop.f32.mrb[0].mxu0
        %v2360 = vadd.f32 %v1965, %v2359
        %v2361 = vpop.f32.mrb[0].mxu0
        %v2362 = vpop.f32.mrb[0].mxu0
        %v2363 = vadd.f32 %v1966, %v2362
        %v2364 = vpop.f32.mrb[0].mxu0
        %2365 = vmatprep.mubr.bf16.mxu0 0
        %2366 = vmatmul.mubr.bf16.gmra.mrb[0].mxu0 %v2244
        %v2367 = vpop.f32.mrb[0].mxu0
        %v2368 = vadd.f32 %v1967, %v2367
        %v2369 = vpop.f32.mrb[0].mxu0
        %v2370 = vpop.f32.mrb[0].mxu0
        %v2371 = vadd.f32 %v1968, %v2370
        %v2372 = vpop.f32.mrb[0].mxu0
        %2373 = vdwg.mxu0
        %2374 = vst [vmem:[%s591] sm:$0xff] %v2344
        %2375 = vst [vmem:[%s591 + $0x8] sm:$0xff] %v2347
        %2376 = vst [vmem:[%s591 + $0x10] sm:$0xff] %v2352
        %2377 = vst [vmem:[%s591 + $0x18] sm:$0xff] %v2355
        %2378 = vst [vmem:[%s591 + $0x20] sm:$0xff] %v2360
        %2379 = vst [vmem:[%s591 + $0x28] sm:$0xff] %v2363
        %2380 = vst [vmem:[%s591 + $0x30] sm:$0xff] %v2368
        %2381 = vst [vmem:[%s591 + $0x38] sm:$0xff] %v2371
        %s2382 = sand.u32 %s300, 1
        %s2383 = scalar_lea.sflag [#allocation4], %s2382
        %s2384 = sand.u32 %s300, 1
        %s2385 = smul.addr %s2384, 64
        %s2386 = scalar_lea.vmem [#allocation22], %s2385
        // Predicated region
        $region117: #{_forward_impl.1} parent=67 // pred_check
          %p2387 = pneg %p310
        $region118: #{_forward_impl.1} parent=67 // pred_check_branch
          %2389 = sbr.rel (%p2387) target = $region120
        $region119: #{_forward_impl.1} parent=67 // pred_region
          %s2391 = ssub.s32 1024, 1024
          %2392 = vsyncadd %s2383, %s2391
          %s2393 = smul.addr %s35, 8
          %s2394 = smul.addr %s2393, 128
          %s2395 = scalar_lea.hbm %s12, %s2394
          %s2396 = sshll.u32 %s2386, 4
          %s2397 = int_to_ptr.vmem [resolvable:$true] %s2396
          %2402 = dma.vmem_to_hbm [thread:$0]  %s2397, 1024, %s2395, %s2383, 128, 128, 8
        $region120: #{_forward_impl.1} parent=67 // pred_fallthru
          _
      $region68: #{_forward_impl.1} parent=5 // pred_fallthru
        _
      %p2403 = scmp.le.s32.totalorder 2, %s30
      // Predicated region
      $region121: #{_forward_impl.1} parent=5 // pred_check
        %p2404 = pneg %p2403
      $region122: #{_forward_impl.1} parent=5 // pred_check_branch
        %2406 = sbr.rel (%p2404) target = $region124
      $region123: #{_forward_impl.1} parent=5 // pred_region
        %s2407 = ssub.s32 %s30, 2
        // Predicated region
        $region125: #{_forward_impl.1} parent=123 // pred_check
          %p2408 = pneg %p316
        $region126: #{_forward_impl.1} parent=123 // pred_check_branch
          %2410 = sbr.rel (%p2408) target = $region128
        $region127: #{_forward_impl.1} parent=123 // pred_region
          %s2411 = sand.u32 %s301, 1
          %s2412 = scalar_lea.sflag [#allocation4], %s2411
          %s2413 = sand.u32 %s301, 1
          %s2414 = smul.addr %s2413, 64
          %s2415 = scalar_lea.vmem [#allocation22], %s2414
          %2416 = dma.done %s2412, 1024
        $region128: #{_forward_impl.1} parent=123 // pred_fallthru
          _
      $region124: #{_forward_impl.1} parent=5 // pred_fallthru
        _
    $region6: #{_forward_impl.1} parent=1 // loop_footer
      %s34 = sadd.s32 1, %s30
    $region7: #{_forward_impl.1} parent=1 // loop_footer_branch
      %29 = sbr.rel target = $region3
    $region8: #{_forward_impl.1} parent=1 // loop_exit
      _
    %2417 = vsyncpa [#allocation3], 1
    %s2418 = scalar_lea.sflag [#allocation3], 1
    %2419 = vsyncpa %s2418, 1
    %2420 = vsyncpa [#allocation6], 1
    %2421 = vsyncpa [#allocation9], 1
    %2422 = vsyncpa [#allocation12], 1
    %2423 = vsyncpa [#allocation15], 1
    %2424 = vsyncpa [#allocation18], 1
    %2425 = vsyncpa [#allocation21], 1
    %2426 = vsyncpa [#allocation4], 1
    %s2427 = scalar_lea.sflag [#allocation4], 1
    %2428 = vsyncpa %s2427, 1

</llo_original>
